<compile_context>
chip_gen: v6e
topology: v6e:2x2x1
jax: 0.10.0
libtpu: 0.0.40
codegen_flags: <defaults>
</compile_context>

<pallas_src>
import functools

import jax
import jax.numpy as jnp
from jax import lax
from jax.experimental import pallas as pl
from jax.experimental.pallas import tpu as pltpu

F32 = jnp.float32
BF16 = jnp.bfloat16
LOSS_LANES = 128


def _round_up(x, m):
  return ((x + m - 1) // m) * m


# --------------------------------------------------------------------------
# Fused kernel.  Grid axis 0 = relation index (reduction, "arbitrary").
# --------------------------------------------------------------------------

def _modest_kernel(
    # scalar-prefetch refs (SMEM)
    idx1_ref, idx2_ref,                       # [P] int32 each
    # inputs (VMEM)
    kg_adj_ref,                               # (Ne, Ne) bf16  -- tile of [R*Ne, Ne]
    kg_emb_ref,                               # (Ne, Hp) bf16
    kg_wr_ref,                                # (Hp, Hp) bf16  -- tile of [R*Hp, Hp]
    kg_wself_ref,                             # (Hp, Hp) bf16
    kg_b_ref,                                 # (1, Hp) f32
    g2o_ref, g2o_inv_ref,                     # (Ng, Ne) bf16, (Ng, 1) f32
    g_adj_ref,                                # (2Ng, 2Ng) bf16  block-diag(adj, adj_svd)
    gcn_w1_ref, gcn_b1_ref, gcn_w2_ref, gcn_b2_ref,
    d2g_ref, d2g_inv_ref,                     # (Nd, Ng) bf16, (Nd, 1) f32
    proj1_w_ref, proj1_b_ref,                 # (Hp, Zp) bf16, (1, Zp) f32
    d_h2_ref,                                 # (Nd, Dg) bf16
    proj2_w_ref, proj2_b_ref,                 # (Dg, Zp) bf16, (1, Zp) f32
    sim_true_ref,                             # (P, P) f32
    # outputs
    d_z_ref, d_emb_ref, sim_ref, loss_ref,
    # scratch
    kg_acc, dz2_s, z1_s, z2_s,
    *, tau, lam_1, lam_2, num_g):

  r = pl.program_id(0)
  emb = kg_emb_ref[...]                       # bf16, already lane-padded

  # ---- RGCN: acc = E @ W_self + b + sum_r A_r @ E @ W_r --------------------
  @pl.when(r == 0)
  def _init():
    kg_acc[...] = (jnp.dot(emb, kg_wself_ref[...],
                           preferred_element_type=F32) + kg_b_ref[...])

  msgs = jnp.dot(kg_adj_ref[...], emb, preferred_element_type=F32)  # (Ne, Hp)
  kg_acc[...] += jnp.dot(msgs.astype(BF16), kg_wr_ref[...],
                         preferred_element_type=F32)

  # ---- everything after the relational reduction runs once, on last step ---
  @pl.when(r == pl.num_programs(0) - 1)
  def _finish():
    kg_h = jnp.maximum(kg_acc[...], 0.0).astype(BF16)               # relu

    # gene pooling (denominator precomputed host-side, exact divide)
    g_x = (jnp.dot(g2o_ref[...], kg_h, preferred_element_type=F32)
           * g2o_inv_ref[...]).astype(BF16)                          # (Ng, Hp)

    # two shared-weight GCN passes, batched via block-diagonal adjacency
    adj = g_adj_ref[...]                                             # (2Ng, 2Ng)
    w1 = gcn_w1_ref[...]; b1 = gcn_b1_ref[...]
    w2 = gcn_w2_ref[...]; b2 = gcn_b2_ref[...]
    gx2 = jnp.concatenate([g_x, g_x], axis=0)                        # (2Ng, Hp)
    hh = jnp.dot(adj, gx2, preferred_element_type=F32)
    hh = jnp.maximum(jnp.dot(hh.astype(BF16), w1,
                             preferred_element_type=F32) + b1, 0.0)
    hh = jnp.dot(adj, hh.astype(BF16), preferred_element_type=F32)
    gh = jnp.dot(hh.astype(BF16), w2, preferred_element_type=F32) + b2
    g_h1 = gh[:num_g, :]                                             # (Ng, Hp)
    g_h2 = gh[num_g:, :]
    g_h = (0.5 * (g_h1 + g_h2)).astype(BF16)

    # disease pooling + projections
    d_h1 = (jnp.dot(d2g_ref[...], g_h, preferred_element_type=F32)
            * d2g_inv_ref[...]).astype(BF16)                         # (Nd, Hp)
    d_embedding = (jnp.dot(d_h1, proj1_w_ref[...],
                           preferred_element_type=F32) + proj1_b_ref[...])
    d_emb_ref[...] = d_embedding
    dz2_s[...] = (jnp.dot(d_h2_ref[...], proj2_w_ref[...],
                          preferred_element_type=F32) + proj2_b_ref[...])

    # exact row gather: SMEM indices + dynamic-row VMEM copies
    num_pairs = idx1_ref.shape[0]

    def gather_row(i, carry):
      r1 = idx1_ref[i]
      r2 = idx2_ref[i]
      z1_s[pl.ds(i, 1), :] = d_emb_ref[pl.ds(r1, 1), :]
      z2_s[pl.ds(i, 1), :] = dz2_s[pl.ds(r2, 1), :]
      return carry

    lax.fori_loop(0, num_pairs, gather_row, 0, unroll=True)

    z1 = z1_s[...]
    z2 = z2_s[...]
    d_z1 = jnp.where(z1 > 0, z1, 0.01 * z1)   # LeakyReLU (default slope 0.01)
    d_z2 = jnp.where(z2 > 0, z2, 0.01 * z2)
    d_z = 0.5 * (d_z1 + d_z2)
    d_z_ref[...] = d_z

    # pairwise Gram matrix, then F.normalize over rows (dim=1, eps=1e-12)
    s = lax.dot_general(d_z, d_z, (((1,), (1,)), ((), ())),
                        preferred_element_type=F32)                  # (P, P)
    s_norm = jnp.sqrt(jnp.sum(s * s, axis=1, keepdims=True))
    similarity = s / jnp.maximum(s_norm, 1e-12)
    sim_ref[...] = similarity

    # soft-target cross entropy on (similarity + 1e-8)
    logits = similarity + 1e-8
    m = jnp.max(logits, axis=1, keepdims=True)
    lse = jnp.log(jnp.sum(jnp.exp(logits - m), axis=1, keepdims=True)) + m
    ce_rows = jnp.sum(sim_true_ref[...] * (lse - logits), axis=1, keepdims=True)
    l_p = jnp.mean(ce_rows, keepdims=True)                           # (1, 1)

    # NCE losses (exact normalization / division)
    inv_tau = 1.0 / tau

    def nce(x1, x2):
      x1n = x1 / jnp.maximum(
          jnp.sqrt(jnp.sum(x1 * x1, axis=1, keepdims=True)), 1e-12)
      x2n = x2 / jnp.maximum(
          jnp.sqrt(jnp.sum(x2 * x2, axis=1, keepdims=True)), 1e-12)
      sm = jnp.exp(lax.dot_general(x1n, x2n, (((1,), (1,)), ((), ())),
                                   preferred_element_type=F32) * inv_tau)
      ssum = jnp.sum(sm, axis=1, keepdims=True)
      pos = jnp.exp(jnp.sum(x1n * x2n, axis=1, keepdims=True) * inv_tau)
      return jnp.mean(-jnp.log(pos / ssum + 1e-8), keepdims=True)    # (1, 1)

    l_g = nce(g_h1, g_h2)
    l_d = nce(d_z1, d_z2)
    total = l_p + lam_1 * l_g + lam_2 * l_d                          # (1, 1)
    loss_ref[...] = total + jnp.zeros((1, LOSS_LANES), F32)          # lane-dense


# --------------------------------------------------------------------------
# Wrapper: host-side layout plumbing (bf16 cast, zero-pad to 128 lanes,
# relation stacking, block-diag, pooling denominators), one pallas_call.
# --------------------------------------------------------------------------

def modest_forward(params, g_adj, g_adj_svd, kg_adj, g2o, d2g, d_h2,
                   index, similarity_true, lam_1, lam_2, tau):
  R, num_ents, _ = kg_adj.shape
  h_dim = params["kg_emb"].shape[1]
  z_dim = params["proj1_w"].shape[1]
  dis_in = d_h2.shape[1]
  num_g = g_adj.shape[0]
  num_d = d2g.shape[0]
  num_pairs = index.shape[0]
  Hp = _round_up(h_dim, 128)
  Zp = _round_up(z_dim, 128)

  def pad2(x, rows, cols):
    return jnp.pad(x, ((0, rows - x.shape[0]), (0, cols - x.shape[1])))

  # bf16 in HBM (cast once here); zero-padding is value-preserving.
  kg_adj_b = kg_adj.reshape(R * num_ents, num_ents).astype(BF16)
  kg_emb_b = pad2(params["kg_emb"], num_ents, Hp).astype(BF16)
  kg_wr_b = jnp.pad(params["kg_wr"],
                    ((0, 0), (0, Hp - h_dim), (0, Hp - h_dim))
                    ).reshape(R * Hp, Hp).astype(BF16)
  kg_wself_b = pad2(params["kg_wself"], Hp, Hp).astype(BF16)
  kg_bias = pad2(params["kg_b"], 1, Hp)
  g2o_inv = 1.0 / jnp.maximum(jnp.sum(g2o, axis=1, keepdims=True), 1e-8)
  d2g_inv = 1.0 / jnp.maximum(jnp.sum(d2g, axis=1, keepdims=True), 1e-8)
  g2o_b = g2o.astype(BF16)
  d2g_b = d2g.astype(BF16)
  zng = jnp.zeros((num_g, num_g), F32)
  g_adj_bd = jnp.concatenate(
      [jnp.concatenate([g_adj, zng], axis=1),
       jnp.concatenate([zng, g_adj_svd], axis=1)], axis=0).astype(BF16)
  gcn_w1_b = pad2(params["gcn_w1"], Hp, Hp).astype(BF16)
  gcn_b1 = pad2(params["gcn_b1"], 1, Hp)
  gcn_w2_b = pad2(params["gcn_w2"], Hp, Hp).astype(BF16)
  gcn_b2 = pad2(params["gcn_b2"], 1, Hp)
  proj1_w_b = pad2(params["proj1_w"], Hp, Zp).astype(BF16)
  proj1_bias = pad2(params["proj1_b"], 1, Zp)
  d_h2_b = d_h2.astype(BF16)
  proj2_w_b = pad2(params["proj2_w"], dis_in, Zp).astype(BF16)
  proj2_bias = pad2(params["proj2_b"], 1, Zp)
  idx1 = index[:, 0].astype(jnp.int32)                    # [P]
  idx2 = index[:, 1].astype(jnp.int32)                    # [P]

  def cmap(shape):
    nd = len(shape)
    return pl.BlockSpec(shape, lambda r, i1, i2, _n=nd: (0,) * _n)

  in_specs = [
      pl.BlockSpec((num_ents, num_ents), lambda r, i1, i2: (r, 0)),  # kg_adj tile
      cmap((num_ents, Hp)),                                          # kg_emb
      pl.BlockSpec((Hp, Hp), lambda r, i1, i2: (r, 0)),              # kg_wr tile
      cmap((Hp, Hp)), cmap((1, Hp)),                                 # W_self, b
      cmap((num_g, num_ents)), cmap((num_g, 1)),                     # g2o, inv
      cmap((2 * num_g, 2 * num_g)),                                  # block-diag adj
      cmap((Hp, Hp)), cmap((1, Hp)), cmap((Hp, Hp)), cmap((1, Hp)),  # gcn w/b
      cmap((num_d, num_g)), cmap((num_d, 1)),                        # d2g, inv
      cmap((Hp, Zp)), cmap((1, Zp)),                                 # proj1
      cmap((num_d, dis_in)),                                         # d_h2
      cmap((dis_in, Zp)), cmap((1, Zp)),                             # proj2
      cmap((num_pairs, num_pairs)),                                  # sim_true
  ]
  out_shapes = (
      jax.ShapeDtypeStruct((num_pairs, Zp), F32),        # d_z (padded lanes)
      jax.ShapeDtypeStruct((num_d, Zp), F32),            # d_embedding (padded)
      jax.ShapeDtypeStruct((num_pairs, num_pairs), F32),  # similarity
      jax.ShapeDtypeStruct((1, LOSS_LANES), F32),        # loss slab
  )
  out_specs = (
      cmap((num_pairs, Zp)), cmap((num_d, Zp)),
      cmap((num_pairs, num_pairs)), cmap((1, LOSS_LANES)),
  )
  scratch_shapes = [
      pltpu.VMEM((num_ents, Hp), F32),      # RGCN accumulator
      pltpu.VMEM((num_d, Zp), F32),         # projection2 output
      pltpu.VMEM((num_pairs, Zp), F32),     # gathered rows 1
      pltpu.VMEM((num_pairs, Zp), F32),     # gathered rows 2
  ]

  kernel = functools.partial(
      _modest_kernel, tau=float(tau), lam_1=float(lam_1),
      lam_2=float(lam_2), num_g=int(num_g))

  d_z_p, d_emb_p, similarity, loss_arr = pl.pallas_call(
      kernel,
      out_shape=out_shapes,
      grid_spec=pltpu.PrefetchScalarGridSpec(
          num_scalar_prefetch=2,
          grid=(R,),
          in_specs=in_specs,
          out_specs=out_specs,
          scratch_shapes=scratch_shapes),
      compiler_params=pltpu.CompilerParams(
          dimension_semantics=("arbitrary",),
          vmem_limit_bytes=48 * 1024 * 1024),
  )(idx1, idx2,
    kg_adj_b, kg_emb_b, kg_wr_b, kg_wself_b, kg_bias,
    g2o_b, g2o_inv, g_adj_bd,
    gcn_w1_b, gcn_b1, gcn_w2_b, gcn_b2,
    d2g_b, d2g_inv,
    proj1_w_b, proj1_bias, d_h2_b, proj2_w_b, proj2_bias,
    similarity_true)

  return (d_z_p[:, :z_dim], d_emb_p[:, :z_dim], similarity, loss_arr[0, 0])


# --------------------------------------------------------------------------
# Parameters
# --------------------------------------------------------------------------

def init_params(key, num_ents, h_dim, z_dim, num_rels, dis_num_in_gd):
  ks = jax.random.split(key, 8)

  def glorot(k, shape):
    fan_in, fan_out = shape[-2], shape[-1]
    scale = jnp.sqrt(2.0 / (fan_in + fan_out)).astype(F32)
    return jax.random.normal(k, shape, F32) * scale

  R = num_rels * 2
  return dict(
      kg_emb=glorot(ks[0], (num_ents, h_dim)),
      kg_wr=glorot(ks[1], (R, h_dim, h_dim)),
      kg_wself=glorot(ks[2], (h_dim, h_dim)),
      kg_b=jnp.zeros((1, h_dim), F32),
      gcn_w1=glorot(ks[3], (h_dim, h_dim)),
      gcn_b1=jnp.zeros((1, h_dim), F32),
      gcn_w2=glorot(ks[4], (h_dim, h_dim)),
      gcn_b2=jnp.zeros((1, h_dim), F32),
      proj1_w=glorot(ks[5], (h_dim, z_dim)),
      proj1_b=jnp.zeros((1, z_dim), F32),
      proj2_w=glorot(ks[6], (dis_num_in_gd, z_dim)),
      proj2_b=jnp.zeros((1, z_dim), F32),
      # self.mlp = Projection(z_dim, 1) exists in __init__ but is unused in forward
      mlp_w=glorot(ks[7], (z_dim, 1)),
      mlp_b=jnp.zeros((1, 1), F32),
  )


if __name__ == "__main__":
  key = jax.random.PRNGKey(0)
  num_ents, h_dim, z_dim = 16, 32, 16
  num_rels, num_g, num_d = 3, 16, 8
  dis_num_in_gd = 10
  tau, lam_1, lam_2 = 0.5, 0.6, 0.4

  keys = jax.random.split(key, 10)
  params = init_params(keys[0], num_ents, h_dim, z_dim, num_rels, dis_num_in_gd)

  def norm_adj(k, n):
    a = (jax.random.uniform(k, (n, n)) < 0.3).astype(F32)
    a = jnp.maximum(a, a.T) + jnp.eye(n, dtype=F32)
    dinv = 1.0 / jnp.sqrt(jnp.sum(a, axis=1, keepdims=True))
    return a * dinv * dinv.T

  g_adj = norm_adj(keys[1], num_g)          # "g_data" graph structure
  g_adj_svd = norm_adj(keys[2], num_g)      # "g_data_svd" graph structure
  R = num_rels * 2
  kg_raw = (jax.random.uniform(keys[3], (R, num_ents, num_ents)) < 0.2).astype(F32)
  kg_adj = kg_raw / jnp.maximum(jnp.sum(kg_raw, axis=2, keepdims=True), 1.0)
  g2o = (jax.random.uniform(keys[4], (num_g, num_ents)) < 0.3).astype(F32)
  d2g = (jax.random.uniform(keys[5], (num_d, num_g)) < 0.3).astype(F32)
  d_h2 = jax.random.normal(keys[6], (num_d, dis_num_in_gd), F32)
  index = jnp.stack([jax.random.permutation(keys[7], num_d),
                     jax.random.permutation(keys[8], num_d)],
                    axis=1).astype(jnp.int32)
  similarity_true = jax.nn.softmax(
      jax.random.normal(keys[9], (num_d, num_d), F32), axis=1)

  d_z, d_emb, sim, loss = modest_forward(
      params, g_adj, g_adj_svd, kg_adj, g2o, d2g, d_h2,
      index, similarity_true, lam_1, lam_2, tau)
  jax.block_until_ready((d_z, d_emb, sim, loss))

  assert d_z.shape == (num_d, z_dim)
  assert d_emb.shape == (num_d, z_dim)
  assert sim.shape == (num_d, num_d)
  assert bool(jnp.isfinite(loss))
  print("KERNEL_OK")
</pallas_src>

<mosaic_0001>
module attributes {stable_mosaic.version = 11 : i64} {
  func.func @_modest_kernel(%arg0: i32, %arg1: memref<8xi32, #tpu.memory_space<smem>>, %arg2: memref<8xi32, #tpu.memory_space<smem>>, %arg3: memref<16x16xbf16, #tpu.memory_space<vmem>>, %arg4: memref<16x128xbf16, #tpu.memory_space<vmem>>, %arg5: memref<128x128xbf16, #tpu.memory_space<vmem>>, %arg6: memref<128x128xbf16, #tpu.memory_space<vmem>>, %arg7: memref<1x128xf32, #tpu.memory_space<vmem>>, %arg8: memref<16x16xbf16, #tpu.memory_space<vmem>>, %arg9: memref<16x1xf32, #tpu.memory_space<vmem>>, %arg10: memref<32x32xbf16, #tpu.memory_space<vmem>>, %arg11: memref<128x128xbf16, #tpu.memory_space<vmem>>, %arg12: memref<1x128xf32, #tpu.memory_space<vmem>>, %arg13: memref<128x128xbf16, #tpu.memory_space<vmem>>, %arg14: memref<1x128xf32, #tpu.memory_space<vmem>>, %arg15: memref<8x16xbf16, #tpu.memory_space<vmem>>, %arg16: memref<8x1xf32, #tpu.memory_space<vmem>>, %arg17: memref<128x128xbf16, #tpu.memory_space<vmem>>, %arg18: memref<1x128xf32, #tpu.memory_space<vmem>>, %arg19: memref<8x10xbf16, #tpu.memory_space<vmem>>, %arg20: memref<10x128xbf16, #tpu.memory_space<vmem>>, %arg21: memref<1x128xf32, #tpu.memory_space<vmem>>, %arg22: memref<8x8xf32, #tpu.memory_space<vmem>>, %arg23: memref<8x128xf32, #tpu.memory_space<vmem>>, %arg24: memref<8x128xf32, #tpu.memory_space<vmem>>, %arg25: memref<8x8xf32, #tpu.memory_space<vmem>>, %arg26: memref<1x128xf32, #tpu.memory_space<vmem>>, %arg27: memref<16x128xf32, #tpu.memory_space<vmem>>, %arg28: memref<8x128xf32, #tpu.memory_space<vmem>>, %arg29: memref<8x128xf32, #tpu.memory_space<vmem>>, %arg30: memref<8x128xf32, #tpu.memory_space<vmem>>) attributes {dimension_semantics = [#tpu.dimension_semantics<arbitrary>], iteration_bounds = array<i64: 6>, scalar_prefetch = 2 : i64, scratch_operands = 4 : i64, tpu.core_type = #tpu.core_type<tc>, window_params = [{transform_indices = @transform_0, window_bounds = array<i64: 16, 16>}, {pipeline_mode = #tpu.pipeline_mode<synchronous>, transform_indices = @transform_1, window_bounds = array<i64: 16, 128>}, {transform_indices = @transform_2, window_bounds = array<i64: 128, 128>}, {pipeline_mode = #tpu.pipeline_mode<synchronous>, transform_indices = @transform_3, window_bounds = array<i64: 128, 128>}, {pipeline_mode = #tpu.pipeline_mode<synchronous>, transform_indices = @transform_4, window_bounds = array<i64: 1, 128>}, {pipeline_mode = #tpu.pipeline_mode<synchronous>, transform_indices = @transform_5, window_bounds = array<i64: 16, 16>}, {pipeline_mode = #tpu.pipeline_mode<synchronous>, transform_indices = @transform_6, window_bounds = array<i64: 16, 1>}, {pipeline_mode = #tpu.pipeline_mode<synchronous>, transform_indices = @transform_7, window_bounds = array<i64: 32, 32>}, {pipeline_mode = #tpu.pipeline_mode<synchronous>, transform_indices = @transform_8, window_bounds = array<i64: 128, 128>}, {pipeline_mode = #tpu.pipeline_mode<synchronous>, transform_indices = @transform_9, window_bounds = array<i64: 1, 128>}, {pipeline_mode = #tpu.pipeline_mode<synchronous>, transform_indices = @transform_10, window_bounds = array<i64: 128, 128>}, {pipeline_mode = #tpu.pipeline_mode<synchronous>, transform_indices = @transform_11, window_bounds = array<i64: 1, 128>}, {pipeline_mode = #tpu.pipeline_mode<synchronous>, transform_indices = @transform_12, window_bounds = array<i64: 8, 16>}, {pipeline_mode = #tpu.pipeline_mode<synchronous>, transform_indices = @transform_13, window_bounds = array<i64: 8, 1>}, {pipeline_mode = #tpu.pipeline_mode<synchronous>, transform_indices = @transform_14, window_bounds = array<i64: 128, 128>}, {pipeline_mode = #tpu.pipeline_mode<synchronous>, transform_indices = @transform_15, window_bounds = array<i64: 1, 128>}, {pipeline_mode = #tpu.pipeline_mode<synchronous>, transform_indices = @transform_16, window_bounds = array<i64: 8, 10>}, {pipeline_mode = #tpu.pipeline_mode<synchronous>, transform_indices = @transform_17, window_bounds = array<i64: 10, 128>}, {pipeline_mode = #tpu.pipeline_mode<synchronous>, transform_indices = @transform_18, window_bounds = array<i64: 1, 128>}, {pipeline_mode = #tpu.pipeline_mode<synchronous>, transform_indices = @transform_19, window_bounds = array<i64: 8, 8>}, {pipeline_mode = #tpu.pipeline_mode<synchronous>, transform_indices = @transform_20, window_bounds = array<i64: 8, 128>}, {pipeline_mode = #tpu.pipeline_mode<synchronous>, transform_indices = @transform_21, window_bounds = array<i64: 8, 128>}, {pipeline_mode = #tpu.pipeline_mode<synchronous>, transform_indices = @transform_22, window_bounds = array<i64: 8, 8>}, {pipeline_mode = #tpu.pipeline_mode<synchronous>, transform_indices = @transform_23, window_bounds = array<i64: 1, 128>}]} {
    %c0 = arith.constant 0 : index
    %c0_0 = arith.constant 0 : index
    %0 = vector.load %arg4[%c0, %c0_0] : memref<16x128xbf16, #tpu.memory_space<vmem>>, vector<16x128xbf16>
    %c0_i32 = arith.constant 0 : i32
    %1 = arith.cmpi eq, %arg0, %c0_i32 : i32
    %2 = arith.extui %1 : i1 to i32
    %c0_i32_1 = arith.constant 0 : i32
    %3 = arith.cmpi ne, %2, %c0_i32_1 : i32
    scf.if %3 {
      %c0_12 = arith.constant 0 : index
      %c0_13 = arith.constant 0 : index
      %15 = vector.load %arg6[%c0_12, %c0_13] : memref<128x128xbf16, #tpu.memory_space<vmem>>, vector<128x128xbf16>
      %cst_14 = arith.constant dense<0.000000e+00> : vector<16x128xf32>
      %16 = tpu.matmul %0, %15, %cst_14 {dimension_numbers = #tpu.dot_dimension_numbers<[1], [0], [0], [1], [0, 0, 1, 1], [], []>} : vector<16x128xbf16>, vector<128x128xbf16>, vector<16x128xf32> -> vector<16x128xf32>
      %c0_15 = arith.constant 0 : index
      %c0_16 = arith.constant 0 : index
      %17 = vector.load %arg7[%c0_15, %c0_16] : memref<1x128xf32, #tpu.memory_space<vmem>>, vector<1x128xf32>
      %18 = vector.broadcast %17 : vector<1x128xf32> to vector<16x128xf32>
      %19 = arith.addf %16, %18 : vector<16x128xf32>
      %c0_17 = arith.constant 0 : index
      %c0_18 = arith.constant 0 : index
      %20 = vector.load %arg27[%c0_17, %c0_18] : memref<16x128xf32, #tpu.memory_space<vmem>>, vector<16x128xf32>
      tpu.vector_store %arg27[%c0_17, %c0_18], %19 {strides = array<i32>} : memref<16x128xf32, #tpu.memory_space<vmem>>, vector<16x128xf32>,
    } else {
    }
    %c0_2 = arith.constant 0 : index
    %c0_3 = arith.constant 0 : index
    %4 = vector.load %arg3[%c0_2, %c0_3] : memref<16x16xbf16, #tpu.memory_space<vmem>>, vector<16x16xbf16>
    %cst = arith.constant dense<0.000000e+00> : vector<16x128xf32>
    %5 = tpu.matmul %4, %0, %cst {dimension_numbers = #tpu.dot_dimension_numbers<[1], [0], [0], [1], [0, 0, 1, 1], [], []>} : vector<16x16xbf16>, vector<16x128xbf16>, vector<16x128xf32> -> vector<16x128xf32>
    %c0_4 = arith.constant 0 : index
    %c0_5 = arith.constant 0 : index
    %6 = vector.load %arg27[%c0_4, %c0_5] : memref<16x128xf32, #tpu.memory_space<vmem>>, vector<16x128xf32>
    %7 = arith.truncf %5 : vector<16x128xf32> to vector<16x128xbf16>
    %c0_6 = arith.constant 0 : index
    %c0_7 = arith.constant 0 : index
    %8 = vector.load %arg5[%c0_6, %c0_7] : memref<128x128xbf16, #tpu.memory_space<vmem>>, vector<128x128xbf16>
    %cst_8 = arith.constant dense<0.000000e+00> : vector<16x128xf32>
    %9 = tpu.matmul %7, %8, %cst_8 {dimension_numbers = #tpu.dot_dimension_numbers<[1], [0], [0], [1], [0, 0, 1, 1], [], []>} : vector<16x128xbf16>, vector<128x128xbf16>, vector<16x128xf32> -> vector<16x128xf32>
    %10 = arith.addf %6, %9 : vector<16x128xf32>
    %c0_9 = arith.constant 0 : index
    %c0_10 = arith.constant 0 : index
    %11 = vector.load %arg27[%c0_9, %c0_10] : memref<16x128xf32, #tpu.memory_space<vmem>>, vector<16x128xf32>
    tpu.vector_store %arg27[%c0_9, %c0_10], %10 {strides = array<i32>} : memref<16x128xf32, #tpu.memory_space<vmem>>, vector<16x128xf32>,
    %c5_i32 = arith.constant 5 : i32
    %12 = arith.cmpi eq, %arg0, %c5_i32 : i32
    %13 = arith.extui %12 : i1 to i32
    %c0_i32_11 = arith.constant 0 : i32
    %14 = arith.cmpi ne, %13, %c0_i32_11 : i32
    scf.if %14 {
      %c0_12 = arith.constant 0 : index
      %c0_13 = arith.constant 0 : index
      %15 = vector.load %arg27[%c0_12, %c0_13] : memref<16x128xf32, #tpu.memory_space<vmem>>, vector<16x128xf32>
      %cst_14 = arith.constant 0.000000e+00 : f32
      %16 = vector.broadcast %cst_14 : f32 to vector<16x128xf32>
      %17 = arith.maximumf %15, %16 : vector<16x128xf32>
      %18 = arith.truncf %17 : vector<16x128xf32> to vector<16x128xbf16>
      %c0_15 = arith.constant 0 : index
      %c0_16 = arith.constant 0 : index
      %19 = vector.load %arg8[%c0_15, %c0_16] : memref<16x16xbf16, #tpu.memory_space<vmem>>, vector<16x16xbf16>
      %cst_17 = arith.constant dense<0.000000e+00> : vector<16x128xf32>
      %20 = tpu.matmul %19, %18, %cst_17 {dimension_numbers = #tpu.dot_dimension_numbers<[1], [0], [0], [1], [0, 0, 1, 1], [], []>} : vector<16x16xbf16>, vector<16x128xbf16>, vector<16x128xf32> -> vector<16x128xf32>
      %c0_18 = arith.constant 0 : index
      %c0_19 = arith.constant 0 : index
      %21 = vector.load %arg9[%c0_18, %c0_19] : memref<16x1xf32, #tpu.memory_space<vmem>>, vector<16x1xf32>
      %22 = vector.broadcast %21 : vector<16x1xf32> to vector<16x128xf32>
      %23 = arith.mulf %20, %22 : vector<16x128xf32>
      %24 = arith.truncf %23 : vector<16x128xf32> to vector<16x128xbf16>
      %c0_20 = arith.constant 0 : index
      %c0_21 = arith.constant 0 : index
      %25 = vector.load %arg10[%c0_20, %c0_21] : memref<32x32xbf16, #tpu.memory_space<vmem>>, vector<32x32xbf16>
      %c0_22 = arith.constant 0 : index
      %c0_23 = arith.constant 0 : index
      %26 = vector.load %arg11[%c0_22, %c0_23] : memref<128x128xbf16, #tpu.memory_space<vmem>>, vector<128x128xbf16>
      %c0_24 = arith.constant 0 : index
      %c0_25 = arith.constant 0 : index
      %27 = vector.load %arg12[%c0_24, %c0_25] : memref<1x128xf32, #tpu.memory_space<vmem>>, vector<1x128xf32>
      %c0_26 = arith.constant 0 : index
      %c0_27 = arith.constant 0 : index
      %28 = vector.load %arg13[%c0_26, %c0_27] : memref<128x128xbf16, #tpu.memory_space<vmem>>, vector<128x128xbf16>
      %c0_28 = arith.constant 0 : index
      %c0_29 = arith.constant 0 : index
      %29 = vector.load %arg14[%c0_28, %c0_29] : memref<1x128xf32, #tpu.memory_space<vmem>>, vector<1x128xf32>
      %30 = tpu.concatenate %24, %24 in 0 : vector<16x128xbf16>, vector<16x128xbf16> -> vector<32x128xbf16>
      %cst_30 = arith.constant dense<0.000000e+00> : vector<32x128xf32>
      %31 = tpu.matmul %25, %30, %cst_30 {dimension_numbers = #tpu.dot_dimension_numbers<[1], [0], [0], [1], [0, 0, 1, 1], [], []>} : vector<32x32xbf16>, vector<32x128xbf16>, vector<32x128xf32> -> vector<32x128xf32>
      %32 = arith.truncf %31 : vector<32x128xf32> to vector<32x128xbf16>
      %cst_31 = arith.constant dense<0.000000e+00> : vector<32x128xf32>
      %33 = tpu.matmul %32, %26, %cst_31 {dimension_numbers = #tpu.dot_dimension_numbers<[1], [0], [0], [1], [0, 0, 1, 1], [], []>} : vector<32x128xbf16>, vector<128x128xbf16>, vector<32x128xf32> -> vector<32x128xf32>
      %34 = vector.broadcast %27 : vector<1x128xf32> to vector<32x128xf32>
      %35 = arith.addf %33, %34 : vector<32x128xf32>
      %cst_32 = arith.constant 0.000000e+00 : f32
      %36 = vector.broadcast %cst_32 : f32 to vector<32x128xf32>
      %37 = arith.maximumf %35, %36 : vector<32x128xf32>
      %38 = arith.truncf %37 : vector<32x128xf32> to vector<32x128xbf16>
      %cst_33 = arith.constant dense<0.000000e+00> : vector<32x128xf32>
      %39 = tpu.matmul %25, %38, %cst_33 {dimension_numbers = #tpu.dot_dimension_numbers<[1], [0], [0], [1], [0, 0, 1, 1], [], []>} : vector<32x32xbf16>, vector<32x128xbf16>, vector<32x128xf32> -> vector<32x128xf32>
      %40 = arith.truncf %39 : vector<32x128xf32> to vector<32x128xbf16>
      %cst_34 = arith.constant dense<0.000000e+00> : vector<32x128xf32>
      %41 = tpu.matmul %40, %28, %cst_34 {dimension_numbers = #tpu.dot_dimension_numbers<[1], [0], [0], [1], [0, 0, 1, 1], [], []>} : vector<32x128xbf16>, vector<128x128xbf16>, vector<32x128xf32> -> vector<32x128xf32>
      %42 = vector.broadcast %29 : vector<1x128xf32> to vector<32x128xf32>
      %43 = arith.addf %41, %42 : vector<32x128xf32>
      %44 = vector.extract_strided_slice %43 {offsets = [0, 0], sizes = [16, 128], strides = [1, 1]} : vector<32x128xf32> to vector<16x128xf32>
      %45 = vector.extract_strided_slice %43 {offsets = [16, 0], sizes = [16, 128], strides = [1, 1]} : vector<32x128xf32> to vector<16x128xf32>
      %46 = arith.addf %44, %45 : vector<16x128xf32>
      %cst_35 = arith.constant 5.000000e-01 : f32
      %47 = vector.broadcast %cst_35 : f32 to vector<16x128xf32>
      %48 = arith.mulf %47, %46 : vector<16x128xf32>
      %49 = arith.truncf %48 : vector<16x128xf32> to vector<16x128xbf16>
      %c0_36 = arith.constant 0 : index
      %c0_37 = arith.constant 0 : index
      %50 = vector.load %arg15[%c0_36, %c0_37] : memref<8x16xbf16, #tpu.memory_space<vmem>>, vector<8x16xbf16>
      %cst_38 = arith.constant dense<0.000000e+00> : vector<8x128xf32>
      %51 = tpu.matmul %50, %49, %cst_38 {dimension_numbers = #tpu.dot_dimension_numbers<[1], [0], [0], [1], [0, 0, 1, 1], [], []>} : vector<8x16xbf16>, vector<16x128xbf16>, vector<8x128xf32> -> vector<8x128xf32>
      %c0_39 = arith.constant 0 : index
      %c0_40 = arith.constant 0 : index
      %52 = vector.load %arg16[%c0_39, %c0_40] : memref<8x1xf32, #tpu.memory_space<vmem>>, vector<8x1xf32>
      %53 = vector.broadcast %52 : vector<8x1xf32> to vector<8x128xf32>
      %54 = arith.mulf %51, %53 : vector<8x128xf32>
      %55 = arith.truncf %54 : vector<8x128xf32> to vector<8x128xbf16>
      %c0_41 = arith.constant 0 : index
      %c0_42 = arith.constant 0 : index
      %56 = vector.load %arg17[%c0_41, %c0_42] : memref<128x128xbf16, #tpu.memory_space<vmem>>, vector<128x128xbf16>
      %cst_43 = arith.constant dense<0.000000e+00> : vector<8x128xf32>
      %57 = tpu.matmul %55, %56, %cst_43 {dimension_numbers = #tpu.dot_dimension_numbers<[1], [0], [0], [1], [0, 0, 1, 1], [], []>} : vector<8x128xbf16>, vector<128x128xbf16>, vector<8x128xf32> -> vector<8x128xf32>
      %c0_44 = arith.constant 0 : index
      %c0_45 = arith.constant 0 : index
      %58 = vector.load %arg18[%c0_44, %c0_45] : memref<1x128xf32, #tpu.memory_space<vmem>>, vector<1x128xf32>
      %59 = vector.broadcast %58 : vector<1x128xf32> to vector<8x128xf32>
      %60 = arith.addf %57, %59 : vector<8x128xf32>
      %c0_46 = arith.constant 0 : index
      %c0_47 = arith.constant 0 : index
      %61 = vector.load %arg24[%c0_46, %c0_47] : memref<8x128xf32, #tpu.memory_space<vmem>>, vector<8x128xf32>
      tpu.vector_store %arg24[%c0_46, %c0_47], %60 {strides = array<i32>} : memref<8x128xf32, #tpu.memory_space<vmem>>, vector<8x128xf32>,
      %c0_48 = arith.constant 0 : index
      %c0_49 = arith.constant 0 : index
      %62 = vector.load %arg19[%c0_48, %c0_49] : memref<8x10xbf16, #tpu.memory_space<vmem>>, vector<8x10xbf16>
      %c0_50 = arith.constant 0 : index
      %c0_51 = arith.constant 0 : index
      %63 = vector.load %arg20[%c0_50, %c0_51] : memref<10x128xbf16, #tpu.memory_space<vmem>>, vector<10x128xbf16>
      %cst_52 = arith.constant dense<0.000000e+00> : vector<8x128xf32>
      %64 = tpu.matmul %62, %63, %cst_52 {dimension_numbers = #tpu.dot_dimension_numbers<[1], [0], [0], [1], [0, 0, 1, 1], [], []>} : vector<8x10xbf16>, vector<10x128xbf16>, vector<8x128xf32> -> vector<8x128xf32>
      %c0_53 = arith.constant 0 : index
      %c0_54 = arith.constant 0 : index
      %65 = vector.load %arg21[%c0_53, %c0_54] : memref<1x128xf32, #tpu.memory_space<vmem>>, vector<1x128xf32>
      %66 = vector.broadcast %65 : vector<1x128xf32> to vector<8x128xf32>
      %67 = arith.addf %64, %66 : vector<8x128xf32>
      %c0_55 = arith.constant 0 : index
      %c0_56 = arith.constant 0 : index
      %68 = vector.load %arg28[%c0_55, %c0_56] : memref<8x128xf32, #tpu.memory_space<vmem>>, vector<8x128xf32>
      tpu.vector_store %arg28[%c0_55, %c0_56], %67 {strides = array<i32>} : memref<8x128xf32, #tpu.memory_space<vmem>>, vector<8x128xf32>,
      %c0_i32_57 = arith.constant 0 : i32
      %69 = arith.index_cast %c0_i32_57 : i32 to index
      %70 = memref.load %arg1[%69] : memref<8xi32, #tpu.memory_space<smem>>
      %71 = arith.index_cast %c0_i32_57 : i32 to index
      %72 = memref.load %arg2[%71] : memref<8xi32, #tpu.memory_space<smem>>
      %73 = arith.index_cast %70 : i32 to index
      %c0_58 = arith.constant 0 : index
      %74 = vector.load %arg24[%73, %c0_58] : memref<8x128xf32, #tpu.memory_space<vmem>>, vector<1x128xf32>
      %75 = arith.index_cast %c0_i32_57 : i32 to index
      %c0_59 = arith.constant 0 : index
      %76 = vector.load %arg29[%75, %c0_59] : memref<8x128xf32, #tpu.memory_space<vmem>>, vector<1x128xf32>
      tpu.vector_store %arg29[%75, %c0_59], %74 {strides = array<i32>} : memref<8x128xf32, #tpu.memory_space<vmem>>, vector<1x128xf32>,
      %77 = arith.index_cast %72 : i32 to index
      %c0_60 = arith.constant 0 : index
      %78 = vector.load %arg28[%77, %c0_60] : memref<8x128xf32, #tpu.memory_space<vmem>>, vector<1x128xf32>
      %79 = arith.index_cast %c0_i32_57 : i32 to index
      %c0_61 = arith.constant 0 : index
      %80 = vector.load %arg30[%79, %c0_61] : memref<8x128xf32, #tpu.memory_space<vmem>>, vector<1x128xf32>
      tpu.vector_store %arg30[%79, %c0_61], %78 {strides = array<i32>} : memref<8x128xf32, #tpu.memory_space<vmem>>, vector<1x128xf32>,
      %c1_i32 = arith.constant 1 : i32
      %81 = arith.index_cast %c1_i32 : i32 to index
      %82 = memref.load %arg1[%81] : memref<8xi32, #tpu.memory_space<smem>>
      %83 = arith.index_cast %c1_i32 : i32 to index
      %84 = memref.load %arg2[%83] : memref<8xi32, #tpu.memory_space<smem>>
      %85 = arith.index_cast %82 : i32 to index
      %c0_62 = arith.constant 0 : index
      %86 = vector.load %arg24[%85, %c0_62] : memref<8x128xf32, #tpu.memory_space<vmem>>, vector<1x128xf32>
      %87 = arith.index_cast %c1_i32 : i32 to index
      %c0_63 = arith.constant 0 : index
      %88 = vector.load %arg29[%87, %c0_63] : memref<8x128xf32, #tpu.memory_space<vmem>>, vector<1x128xf32>
      tpu.vector_store %arg29[%87, %c0_63], %86 {strides = array<i32>} : memref<8x128xf32, #tpu.memory_space<vmem>>, vector<1x128xf32>,
      %89 = arith.index_cast %84 : i32 to index
      %c0_64 = arith.constant 0 : index
      %90 = vector.load %arg28[%89, %c0_64] : memref<8x128xf32, #tpu.memory_space<vmem>>, vector<1x128xf32>
      %91 = arith.index_cast %c1_i32 : i32 to index
      %c0_65 = arith.constant 0 : index
      %92 = vector.load %arg30[%91, %c0_65] : memref<8x128xf32, #tpu.memory_space<vmem>>, vector<1x128xf32>
      tpu.vector_store %arg30[%91, %c0_65], %90 {strides = array<i32>} : memref<8x128xf32, #tpu.memory_space<vmem>>, vector<1x128xf32>,
      %c2_i32 = arith.constant 2 : i32
      %93 = arith.index_cast %c2_i32 : i32 to index
      %94 = memref.load %arg1[%93] : memref<8xi32, #tpu.memory_space<smem>>
      %95 = arith.index_cast %c2_i32 : i32 to index
      %96 = memref.load %arg2[%95] : memref<8xi32, #tpu.memory_space<smem>>
      %97 = arith.index_cast %94 : i32 to index
      %c0_66 = arith.constant 0 : index
      %98 = vector.load %arg24[%97, %c0_66] : memref<8x128xf32, #tpu.memory_space<vmem>>, vector<1x128xf32>
      %99 = arith.index_cast %c2_i32 : i32 to index
      %c0_67 = arith.constant 0 : index
      %100 = vector.load %arg29[%99, %c0_67] : memref<8x128xf32, #tpu.memory_space<vmem>>, vector<1x128xf32>
      tpu.vector_store %arg29[%99, %c0_67], %98 {strides = array<i32>} : memref<8x128xf32, #tpu.memory_space<vmem>>, vector<1x128xf32>,
      %101 = arith.index_cast %96 : i32 to index
      %c0_68 = arith.constant 0 : index
      %102 = vector.load %arg28[%101, %c0_68] : memref<8x128xf32, #tpu.memory_space<vmem>>, vector<1x128xf32>
      %103 = arith.index_cast %c2_i32 : i32 to index
      %c0_69 = arith.constant 0 : index
      %104 = vector.load %arg30[%103, %c0_69] : memref<8x128xf32, #tpu.memory_space<vmem>>, vector<1x128xf32>
      tpu.vector_store %arg30[%103, %c0_69], %102 {strides = array<i32>} : memref<8x128xf32, #tpu.memory_space<vmem>>, vector<1x128xf32>,
      %c3_i32 = arith.constant 3 : i32
      %105 = arith.index_cast %c3_i32 : i32 to index
      %106 = memref.load %arg1[%105] : memref<8xi32, #tpu.memory_space<smem>>
      %107 = arith.index_cast %c3_i32 : i32 to index
      %108 = memref.load %arg2[%107] : memref<8xi32, #tpu.memory_space<smem>>
      %109 = arith.index_cast %106 : i32 to index
      %c0_70 = arith.constant 0 : index
      %110 = vector.load %arg24[%109, %c0_70] : memref<8x128xf32, #tpu.memory_space<vmem>>, vector<1x128xf32>
      %111 = arith.index_cast %c3_i32 : i32 to index
      %c0_71 = arith.constant 0 : index
      %112 = vector.load %arg29[%111, %c0_71] : memref<8x128xf32, #tpu.memory_space<vmem>>, vector<1x128xf32>
      tpu.vector_store %arg29[%111, %c0_71], %110 {strides = array<i32>} : memref<8x128xf32, #tpu.memory_space<vmem>>, vector<1x128xf32>,
      %113 = arith.index_cast %108 : i32 to index
      %c0_72 = arith.constant 0 : index
      %114 = vector.load %arg28[%113, %c0_72] : memref<8x128xf32, #tpu.memory_space<vmem>>, vector<1x128xf32>
      %115 = arith.index_cast %c3_i32 : i32 to index
      %c0_73 = arith.constant 0 : index
      %116 = vector.load %arg30[%115, %c0_73] : memref<8x128xf32, #tpu.memory_space<vmem>>, vector<1x128xf32>
      tpu.vector_store %arg30[%115, %c0_73], %114 {strides = array<i32>} : memref<8x128xf32, #tpu.memory_space<vmem>>, vector<1x128xf32>,
      %c4_i32 = arith.constant 4 : i32
      %117 = arith.index_cast %c4_i32 : i32 to index
      %118 = memref.load %arg1[%117] : memref<8xi32, #tpu.memory_space<smem>>
      %119 = arith.index_cast %c4_i32 : i32 to index
      %120 = memref.load %arg2[%119] : memref<8xi32, #tpu.memory_space<smem>>
      %121 = arith.index_cast %118 : i32 to index
      %c0_74 = arith.constant 0 : index
      %122 = vector.load %arg24[%121, %c0_74] : memref<8x128xf32, #tpu.memory_space<vmem>>, vector<1x128xf32>
      %123 = arith.index_cast %c4_i32 : i32 to index
      %c0_75 = arith.constant 0 : index
      %124 = vector.load %arg29[%123, %c0_75] : memref<8x128xf32, #tpu.memory_space<vmem>>, vector<1x128xf32>
      tpu.vector_store %arg29[%123, %c0_75], %122 {strides = array<i32>} : memref<8x128xf32, #tpu.memory_space<vmem>>, vector<1x128xf32>,
      %125 = arith.index_cast %120 : i32 to index
      %c0_76 = arith.constant 0 : index
      %126 = vector.load %arg28[%125, %c0_76] : memref<8x128xf32, #tpu.memory_space<vmem>>, vector<1x128xf32>
      %127 = arith.index_cast %c4_i32 : i32 to index
      %c0_77 = arith.constant 0 : index
      %128 = vector.load %arg30[%127, %c0_77] : memref<8x128xf32, #tpu.memory_space<vmem>>, vector<1x128xf32>
      tpu.vector_store %arg30[%127, %c0_77], %126 {strides = array<i32>} : memref<8x128xf32, #tpu.memory_space<vmem>>, vector<1x128xf32>,
      %c5_i32_78 = arith.constant 5 : i32
      %129 = arith.index_cast %c5_i32_78 : i32 to index
      %130 = memref.load %arg1[%129] : memref<8xi32, #tpu.memory_space<smem>>
      %131 = arith.index_cast %c5_i32_78 : i32 to index
      %132 = memref.load %arg2[%131] : memref<8xi32, #tpu.memory_space<smem>>
      %133 = arith.index_cast %130 : i32 to index
      %c0_79 = arith.constant 0 : index
      %134 = vector.load %arg24[%133, %c0_79] : memref<8x128xf32, #tpu.memory_space<vmem>>, vector<1x128xf32>
      %135 = arith.index_cast %c5_i32_78 : i32 to index
      %c0_80 = arith.constant 0 : index
      %136 = vector.load %arg29[%135, %c0_80] : memref<8x128xf32, #tpu.memory_space<vmem>>, vector<1x128xf32>
      tpu.vector_store %arg29[%135, %c0_80], %134 {strides = array<i32>} : memref<8x128xf32, #tpu.memory_space<vmem>>, vector<1x128xf32>,
      %137 = arith.index_cast %132 : i32 to index
      %c0_81 = arith.constant 0 : index
      %138 = vector.load %arg28[%137, %c0_81] : memref<8x128xf32, #tpu.memory_space<vmem>>, vector<1x128xf32>
      %139 = arith.index_cast %c5_i32_78 : i32 to index
      %c0_82 = arith.constant 0 : index
      %140 = vector.load %arg30[%139, %c0_82] : memref<8x128xf32, #tpu.memory_space<vmem>>, vector<1x128xf32>
      tpu.vector_store %arg30[%139, %c0_82], %138 {strides = array<i32>} : memref<8x128xf32, #tpu.memory_space<vmem>>, vector<1x128xf32>,
      %c6_i32 = arith.constant 6 : i32
      %141 = arith.index_cast %c6_i32 : i32 to index
      %142 = memref.load %arg1[%141] : memref<8xi32, #tpu.memory_space<smem>>
      %143 = arith.index_cast %c6_i32 : i32 to index
      %144 = memref.load %arg2[%143] : memref<8xi32, #tpu.memory_space<smem>>
      %145 = arith.index_cast %142 : i32 to index
      %c0_83 = arith.constant 0 : index
      %146 = vector.load %arg24[%145, %c0_83] : memref<8x128xf32, #tpu.memory_space<vmem>>, vector<1x128xf32>
      %147 = arith.index_cast %c6_i32 : i32 to index
      %c0_84 = arith.constant 0 : index
      %148 = vector.load %arg29[%147, %c0_84] : memref<8x128xf32, #tpu.memory_space<vmem>>, vector<1x128xf32>
      tpu.vector_store %arg29[%147, %c0_84], %146 {strides = array<i32>} : memref<8x128xf32, #tpu.memory_space<vmem>>, vector<1x128xf32>,
      %149 = arith.index_cast %144 : i32 to index
      %c0_85 = arith.constant 0 : index
      %150 = vector.load %arg28[%149, %c0_85] : memref<8x128xf32, #tpu.memory_space<vmem>>, vector<1x128xf32>
      %151 = arith.index_cast %c6_i32 : i32 to index
      %c0_86 = arith.constant 0 : index
      %152 = vector.load %arg30[%151, %c0_86] : memref<8x128xf32, #tpu.memory_space<vmem>>, vector<1x128xf32>
      tpu.vector_store %arg30[%151, %c0_86], %150 {strides = array<i32>} : memref<8x128xf32, #tpu.memory_space<vmem>>, vector<1x128xf32>,
      %c7_i32 = arith.constant 7 : i32
      %153 = arith.index_cast %c7_i32 : i32 to index
      %154 = memref.load %arg1[%153] : memref<8xi32, #tpu.memory_space<smem>>
      %155 = arith.index_cast %c7_i32 : i32 to index
      %156 = memref.load %arg2[%155] : memref<8xi32, #tpu.memory_space<smem>>
      %157 = arith.index_cast %154 : i32 to index
      %c0_87 = arith.constant 0 : index
      %158 = vector.load %arg24[%157, %c0_87] : memref<8x128xf32, #tpu.memory_space<vmem>>, vector<1x128xf32>
      %159 = arith.index_cast %c7_i32 : i32 to index
      %c0_88 = arith.constant 0 : index
      %160 = vector.load %arg29[%159, %c0_88] : memref<8x128xf32, #tpu.memory_space<vmem>>, vector<1x128xf32>
      tpu.vector_store %arg29[%159, %c0_88], %158 {strides = array<i32>} : memref<8x128xf32, #tpu.memory_space<vmem>>, vector<1x128xf32>,
      %161 = arith.index_cast %156 : i32 to index
      %c0_89 = arith.constant 0 : index
      %162 = vector.load %arg28[%161, %c0_89] : memref<8x128xf32, #tpu.memory_space<vmem>>, vector<1x128xf32>
      %163 = arith.index_cast %c7_i32 : i32 to index
      %c0_90 = arith.constant 0 : index
      %164 = vector.load %arg30[%163, %c0_90] : memref<8x128xf32, #tpu.memory_space<vmem>>, vector<1x128xf32>
      tpu.vector_store %arg30[%163, %c0_90], %162 {strides = array<i32>} : memref<8x128xf32, #tpu.memory_space<vmem>>, vector<1x128xf32>,
      %c8_i32 = arith.constant 8 : i32
      %c0_91 = arith.constant 0 : index
      %c0_92 = arith.constant 0 : index
      %165 = vector.load %arg29[%c0_91, %c0_92] : memref<8x128xf32, #tpu.memory_space<vmem>>, vector<8x128xf32>
      %c0_93 = arith.constant 0 : index
      %c0_94 = arith.constant 0 : index
      %166 = vector.load %arg30[%c0_93, %c0_94] : memref<8x128xf32, #tpu.memory_space<vmem>>, vector<8x128xf32>
      %cst_95 = arith.constant 0.000000e+00 : f32
      %167 = vector.broadcast %cst_95 : f32 to vector<8x128xf32>
      %168 = arith.cmpf ogt, %165, %167 : vector<8x128xf32>
      %cst_96 = arith.constant 0.00999999977 : f32
      %169 = vector.broadcast %cst_96 : f32 to vector<8x128xf32>
      %170 = arith.mulf %169, %165 : vector<8x128xf32>
      %171 = arith.select %168, %165, %170 : vector<8x128xi1>, vector<8x128xf32>
      %cst_97 = arith.constant 0.000000e+00 : f32
      %172 = vector.broadcast %cst_97 : f32 to vector<8x128xf32>
      %173 = arith.cmpf ogt, %166, %172 : vector<8x128xf32>
      %cst_98 = arith.constant 0.00999999977 : f32
      %174 = vector.broadcast %cst_98 : f32 to vector<8x128xf32>
      %175 = arith.mulf %174, %166 : vector<8x128xf32>
      %176 = arith.select %173, %166, %175 : vector<8x128xi1>, vector<8x128xf32>
      %177 = arith.addf %171, %176 : vector<8x128xf32>
      %cst_99 = arith.constant 5.000000e-01 : f32
      %178 = vector.broadcast %cst_99 : f32 to vector<8x128xf32>
      %179 = arith.mulf %178, %177 : vector<8x128xf32>
      %c0_100 = arith.constant 0 : index
      %c0_101 = arith.constant 0 : index
      %180 = vector.load %arg23[%c0_100, %c0_101] : memref<8x128xf32, #tpu.memory_space<vmem>>, vector<8x128xf32>
      tpu.vector_store %arg23[%c0_100, %c0_101], %179 {strides = array<i32>} : memref<8x128xf32, #tpu.memory_space<vmem>>, vector<8x128xf32>,
      %cst_102 = arith.constant dense<0.000000e+00> : vector<8x8xf32>
      %181 = tpu.matmul %179, %179, %cst_102 {dimension_numbers = #tpu.dot_dimension_numbers<[1], [1], [0], [0], [0, 0, 1, 0], [], []>} : vector<8x128xf32>, vector<8x128xf32>, vector<8x8xf32> -> vector<8x8xf32>
      %182 = arith.mulf %181, %181 : vector<8x8xf32>
      %cst_103 = arith.constant dense<0.000000e+00> : vector<8xf32>
      %183 = vector.multi_reduction <add>, %182, %cst_103 [1] : vector<8x8xf32> to vector<8xf32>
      %184 = vector.shape_cast %183 : vector<8xf32> to vector<8x1xf32>
      %185 = math.sqrt %184 : vector<8x1xf32>
      %cst_104 = arith.constant 9.99999996E-13 : f32
      %186 = vector.broadcast %cst_104 : f32 to vector<8x1xf32>
      %187 = arith.maximumf %185, %186 : vector<8x1xf32>
      %188 = vector.broadcast %187 : vector<8x1xf32> to vector<8x8xf32>
      %189 = arith.divf %181, %188 : vector<8x8xf32>
      %c0_105 = arith.constant 0 : index
      %c0_106 = arith.constant 0 : index
      %190 = vector.load %arg25[%c0_105, %c0_106] : memref<8x8xf32, #tpu.memory_space<vmem>>, vector<8x8xf32>
      tpu.vector_store %arg25[%c0_105, %c0_106], %189 {strides = array<i32>} : memref<8x8xf32, #tpu.memory_space<vmem>>, vector<8x8xf32>,
      %cst_107 = arith.constant 9.99999993E-9 : f32
      %191 = vector.broadcast %cst_107 : f32 to vector<8x8xf32>
      %192 = arith.addf %189, %191 : vector<8x8xf32>
      %cst_108 = arith.constant dense<0xFF800000> : vector<8xf32>
      %193 = vector.multi_reduction <maximumf>, %192, %cst_108 [1] : vector<8x8xf32> to vector<8xf32>
      %194 = vector.shape_cast %193 : vector<8xf32> to vector<8x1xf32>
      %195 = vector.broadcast %194 : vector<8x1xf32> to vector<8x8xf32>
      %196 = arith.subf %192, %195 : vector<8x8xf32>
      %197 = math.exp %196 : vector<8x8xf32>
      %cst_109 = arith.constant dense<0.000000e+00> : vector<8xf32>
      %198 = vector.multi_reduction <add>, %197, %cst_109 [1] : vector<8x8xf32> to vector<8xf32>
      %199 = vector.shape_cast %198 : vector<8xf32> to vector<8x1xf32>
      %200 = math.log %199 : vector<8x1xf32>
      %201 = arith.addf %200, %194 : vector<8x1xf32>
      %c0_110 = arith.constant 0 : index
      %c0_111 = arith.constant 0 : index
      %202 = vector.load %arg22[%c0_110, %c0_111] : memref<8x8xf32, #tpu.memory_space<vmem>>, vector<8x8xf32>
      %203 = vector.broadcast %201 : vector<8x1xf32> to vector<8x8xf32>
      %204 = arith.subf %203, %192 : vector<8x8xf32>
      %205 = arith.mulf %202, %204 : vector<8x8xf32>
      %cst_112 = arith.constant dense<0.000000e+00> : vector<8xf32>
      %206 = vector.multi_reduction <add>, %205, %cst_112 [1] : vector<8x8xf32> to vector<8xf32>
      %207 = vector.shape_cast %206 : vector<8xf32> to vector<8x1xf32>
      %208 = vector.shape_cast %207 : vector<8x1xf32> to vector<1x8x1xf32>
      %cst_113 = arith.constant dense<0.000000e+00> : vector<1xf32>
      %209 = vector.multi_reduction <add>, %208, %cst_113 [1, 2] : vector<1x8x1xf32> to vector<1xf32>
      %210 = vector.shape_cast %209 : vector<1xf32> to vector<1x1x1xf32>
      %211 = vector.extract %210[0, 0, 0] : f32 from vector<1x1x1xf32>
      %212 = vector.broadcast %211 : f32 to vector<1x1xf32>
      %cst_114 = arith.constant 8.000000e+00 : f32
      %213 = vector.broadcast %cst_114 : f32 to vector<1x1xf32>
      %214 = arith.divf %212, %213 : vector<1x1xf32>
      %215 = arith.mulf %44, %44 : vector<16x128xf32>
      %cst_115 = arith.constant dense<0.000000e+00> : vector<16xf32>
      %216 = vector.multi_reduction <add>, %215, %cst_115 [1] : vector<16x128xf32> to vector<16xf32>
      %217 = vector.shape_cast %216 : vector<16xf32> to vector<16x1xf32>
      %218 = math.sqrt %217 : vector<16x1xf32>
      %cst_116 = arith.constant 9.99999996E-13 : f32
      %219 = vector.broadcast %cst_116 : f32 to vector<16x1xf32>
      %220 = arith.maximumf %218, %219 : vector<16x1xf32>
      %221 = vector.broadcast %220 : vector<16x1xf32> to vector<16x128xf32>
      %222 = arith.divf %44, %221 : vector<16x128xf32>
      %223 = arith.mulf %45, %45 : vector<16x128xf32>
      %cst_117 = arith.constant dense<0.000000e+00> : vector<16xf32>
      %224 = vector.multi_reduction <add>, %223, %cst_117 [1] : vector<16x128xf32> to vector<16xf32>
      %225 = vector.shape_cast %224 : vector<16xf32> to vector<16x1xf32>
      %226 = math.sqrt %225 : vector<16x1xf32>
      %cst_118 = arith.constant 9.99999996E-13 : f32
      %227 = vector.broadcast %cst_118 : f32 to vector<16x1xf32>
      %228 = arith.maximumf %226, %227 : vector<16x1xf32>
      %229 = vector.broadcast %228 : vector<16x1xf32> to vector<16x128xf32>
      %230 = arith.divf %45, %229 : vector<16x128xf32>
      %cst_119 = arith.constant dense<0.000000e+00> : vector<16x16xf32>
      %231 = tpu.matmul %222, %230, %cst_119 {dimension_numbers = #tpu.dot_dimension_numbers<[1], [1], [0], [0], [0, 0, 1, 0], [], []>} : vector<16x128xf32>, vector<16x128xf32>, vector<16x16xf32> -> vector<16x16xf32>
      %cst_120 = arith.constant 2.000000e+00 : f32
      %232 = vector.broadcast %cst_120 : f32 to vector<16x16xf32>
      %233 = arith.mulf %231, %232 : vector<16x16xf32>
      %234 = math.exp %233 : vector<16x16xf32>
      %cst_121 = arith.constant dense<0.000000e+00> : vector<16xf32>
      %235 = vector.multi_reduction <add>, %234, %cst_121 [1] : vector<16x16xf32> to vector<16xf32>
      %236 = vector.shape_cast %235 : vector<16xf32> to vector<16x1xf32>
      %237 = arith.mulf %222, %230 : vector<16x128xf32>
      %cst_122 = arith.constant dense<0.000000e+00> : vector<16xf32>
      %238 = vector.multi_reduction <add>, %237, %cst_122 [1] : vector<16x128xf32> to vector<16xf32>
      %239 = vector.shape_cast %238 : vector<16xf32> to vector<16x1xf32>
      %cst_123 = arith.constant 2.000000e+00 : f32
      %240 = vector.broadcast %cst_123 : f32 to vector<16x1xf32>
      %241 = arith.mulf %239, %240 : vector<16x1xf32>
      %242 = math.exp %241 : vector<16x1xf32>
      %243 = arith.divf %242, %236 : vector<16x1xf32>
      %cst_124 = arith.constant 9.99999993E-9 : f32
      %244 = vector.broadcast %cst_124 : f32 to vector<16x1xf32>
      %245 = arith.addf %243, %244 : vector<16x1xf32>
      %246 = math.log %245 : vector<16x1xf32>
      %cst_125 = arith.constant 0.000000e+00 : f32
      %247 = vector.broadcast %cst_125 : f32 to vector<16x1xf32>
      %248 = arith.subf %247, %246 : vector<16x1xf32>
      %249 = vector.shape_cast %248 : vector<16x1xf32> to vector<1x16x1xf32>
      %cst_126 = arith.constant dense<0.000000e+00> : vector<1xf32>
      %250 = vector.multi_reduction <add>, %249, %cst_126 [1, 2] : vector<1x16x1xf32> to vector<1xf32>
      %251 = vector.shape_cast %250 : vector<1xf32> to vector<1x1x1xf32>
      %252 = vector.extract %251[0, 0, 0] : f32 from vector<1x1x1xf32>
      %253 = vector.broadcast %252 : f32 to vector<1x1xf32>
      %cst_127 = arith.constant 1.600000e+01 : f32
      %254 = vector.broadcast %cst_127 : f32 to vector<1x1xf32>
      %255 = arith.divf %253, %254 : vector<1x1xf32>
      %256 = arith.mulf %171, %171 : vector<8x128xf32>
      %cst_128 = arith.constant dense<0.000000e+00> : vector<8xf32>
      %257 = vector.multi_reduction <add>, %256, %cst_128 [1] : vector<8x128xf32> to vector<8xf32>
      %258 = vector.shape_cast %257 : vector<8xf32> to vector<8x1xf32>
      %259 = math.sqrt %258 : vector<8x1xf32>
      %cst_129 = arith.constant 9.99999996E-13 : f32
      %260 = vector.broadcast %cst_129 : f32 to vector<8x1xf32>
      %261 = arith.maximumf %259, %260 : vector<8x1xf32>
      %262 = vector.broadcast %261 : vector<8x1xf32> to vector<8x128xf32>
      %263 = arith.divf %171, %262 : vector<8x128xf32>
      %264 = arith.mulf %176, %176 : vector<8x128xf32>
      %cst_130 = arith.constant dense<0.000000e+00> : vector<8xf32>
      %265 = vector.multi_reduction <add>, %264, %cst_130 [1] : vector<8x128xf32> to vector<8xf32>
      %266 = vector.shape_cast %265 : vector<8xf32> to vector<8x1xf32>
      %267 = math.sqrt %266 : vector<8x1xf32>
      %cst_131 = arith.constant 9.99999996E-13 : f32
      %268 = vector.broadcast %cst_131 : f32 to vector<8x1xf32>
      %269 = arith.maximumf %267, %268 : vector<8x1xf32>
      %270 = vector.broadcast %269 : vector<8x1xf32> to vector<8x128xf32>
      %271 = arith.divf %176, %270 : vector<8x128xf32>
      %cst_132 = arith.constant dense<0.000000e+00> : vector<8x8xf32>
      %272 = tpu.matmul %263, %271, %cst_132 {dimension_numbers = #tpu.dot_dimension_numbers<[1], [1], [0], [0], [0, 0, 1, 0], [], []>} : vector<8x128xf32>, vector<8x128xf32>, vector<8x8xf32> -> vector<8x8xf32>
      %cst_133 = arith.constant 2.000000e+00 : f32
      %273 = vector.broadcast %cst_133 : f32 to vector<8x8xf32>
      %274 = arith.mulf %272, %273 : vector<8x8xf32>
      %275 = math.exp %274 : vector<8x8xf32>
      %cst_134 = arith.constant dense<0.000000e+00> : vector<8xf32>
      %276 = vector.multi_reduction <add>, %275, %cst_134 [1] : vector<8x8xf32> to vector<8xf32>
      %277 = vector.shape_cast %276 : vector<8xf32> to vector<8x1xf32>
      %278 = arith.mulf %263, %271 : vector<8x128xf32>
      %cst_135 = arith.constant dense<0.000000e+00> : vector<8xf32>
      %279 = vector.multi_reduction <add>, %278, %cst_135 [1] : vector<8x128xf32> to vector<8xf32>
      %280 = vector.shape_cast %279 : vector<8xf32> to vector<8x1xf32>
      %cst_136 = arith.constant 2.000000e+00 : f32
      %281 = vector.broadcast %cst_136 : f32 to vector<8x1xf32>
      %282 = arith.mulf %280, %281 : vector<8x1xf32>
      %283 = math.exp %282 : vector<8x1xf32>
      %284 = arith.divf %283, %277 : vector<8x1xf32>
      %cst_137 = arith.constant 9.99999993E-9 : f32
      %285 = vector.broadcast %cst_137 : f32 to vector<8x1xf32>
      %286 = arith.addf %284, %285 : vector<8x1xf32>
      %287 = math.log %286 : vector<8x1xf32>
      %cst_138 = arith.constant 0.000000e+00 : f32
      %288 = vector.broadcast %cst_138 : f32 to vector<8x1xf32>
      %289 = arith.subf %288, %287 : vector<8x1xf32>
      %290 = vector.shape_cast %289 : vector<8x1xf32> to vector<1x8x1xf32>
      %cst_139 = arith.constant dense<0.000000e+00> : vector<1xf32>
      %291 = vector.multi_reduction <add>, %290, %cst_139 [1, 2] : vector<1x8x1xf32> to vector<1xf32>
      %292 = vector.shape_cast %291 : vector<1xf32> to vector<1x1x1xf32>
      %293 = vector.extract %292[0, 0, 0] : f32 from vector<1x1x1xf32>
      %294 = vector.broadcast %293 : f32 to vector<1x1xf32>
      %cst_140 = arith.constant 8.000000e+00 : f32
      %295 = vector.broadcast %cst_140 : f32 to vector<1x1xf32>
      %296 = arith.divf %294, %295 : vector<1x1xf32>
      %cst_141 = arith.constant 6.000000e-01 : f32
      %297 = vector.broadcast %cst_141 : f32 to vector<1x1xf32>
      %298 = arith.mulf %297, %255 : vector<1x1xf32>
      %299 = arith.addf %214, %298 : vector<1x1xf32>
      %cst_142 = arith.constant 4.000000e-01 : f32
      %300 = vector.broadcast %cst_142 : f32 to vector<1x1xf32>
      %301 = arith.mulf %300, %296 : vector<1x1xf32>
      %302 = arith.addf %299, %301 : vector<1x1xf32>
      %cst_143 = arith.constant 0.000000e+00 : f32
      %303 = vector.broadcast %cst_143 : f32 to vector<1x128xf32>
      %304 = vector.broadcast %302 : vector<1x1xf32> to vector<1x128xf32>
      %305 = arith.addf %304, %303 : vector<1x128xf32>
      %c0_144 = arith.constant 0 : index
      %c0_145 = arith.constant 0 : index
      %306 = vector.load %arg26[%c0_144, %c0_145] : memref<1x128xf32, #tpu.memory_space<vmem>>, vector<1x128xf32>
      tpu.vector_store %arg26[%c0_144, %c0_145], %305 {strides = array<i32>} : memref<1x128xf32, #tpu.memory_space<vmem>>, vector<1x128xf32>,
    } else {
    }
    return
  }
  func.func @transform_0(%arg0: i32, %arg1: memref<8xi32, #tpu.memory_space<smem>>, %arg2: memref<8xi32, #tpu.memory_space<smem>>) -> (i32, i32) {
    %c0_i32 = arith.constant 0 : i32
    %c0_i32_0 = arith.constant 0 : i32
    return %arg0, %c0_i32 : i32, i32
  }
  func.func @transform_1(%arg0: i32, %arg1: memref<8xi32, #tpu.memory_space<smem>>, %arg2: memref<8xi32, #tpu.memory_space<smem>>) -> (i32, i32) {
    %c0_i32 = arith.constant 0 : i32
    %c0_i32_0 = arith.constant 0 : i32
    %c0_i32_1 = arith.constant 0 : i32
    return %c0_i32, %c0_i32_0 : i32, i32
  }
  func.func @transform_2(%arg0: i32, %arg1: memref<8xi32, #tpu.memory_space<smem>>, %arg2: memref<8xi32, #tpu.memory_space<smem>>) -> (i32, i32) {
    %c0_i32 = arith.constant 0 : i32
    %c0_i32_0 = arith.constant 0 : i32
    return %arg0, %c0_i32 : i32, i32
  }
  func.func @transform_3(%arg0: i32, %arg1: memref<8xi32, #tpu.memory_space<smem>>, %arg2: memref<8xi32, #tpu.memory_space<smem>>) -> (i32, i32) {
    %c0_i32 = arith.constant 0 : i32
    %c0_i32_0 = arith.constant 0 : i32
    %c0_i32_1 = arith.constant 0 : i32
    return %c0_i32, %c0_i32_0 : i32, i32
  }
  func.func @transform_4(%arg0: i32, %arg1: memref<8xi32, #tpu.memory_space<smem>>, %arg2: memref<8xi32, #tpu.memory_space<smem>>) -> (i32, i32) {
    %c0_i32 = arith.constant 0 : i32
    %c0_i32_0 = arith.constant 0 : i32
    %c0_i32_1 = arith.constant 0 : i32
    return %c0_i32, %c0_i32_0 : i32, i32
  }
  func.func @transform_5(%arg0: i32, %arg1: memref<8xi32, #tpu.memory_space<smem>>, %arg2: memref<8xi32, #tpu.memory_space<smem>>) -> (i32, i32) {
    %c0_i32 = arith.constant 0 : i32
    %c0_i32_0 = arith.constant 0 : i32
    %c0_i32_1 = arith.constant 0 : i32
    return %c0_i32, %c0_i32_0 : i32, i32
  }
  func.func @transform_6(%arg0: i32, %arg1: memref<8xi32, #tpu.memory_space<smem>>, %arg2: memref<8xi32, #tpu.memory_space<smem>>) -> (i32, i32) {
    %c0_i32 = arith.constant 0 : i32
    %c0_i32_0 = arith.constant 0 : i32
    %c0_i32_1 = arith.constant 0 : i32
    return %c0_i32, %c0_i32_0 : i32, i32
  }
  func.func @transform_7(%arg0: i32, %arg1: memref<8xi32, #tpu.memory_space<smem>>, %arg2: memref<8xi32, #tpu.memory_space<smem>>) -> (i32, i32) {
    %c0_i32 = arith.constant 0 : i32
    %c0_i32_0 = arith.constant 0 : i32
    %c0_i32_1 = arith.constant 0 : i32
    return %c0_i32, %c0_i32_0 : i32, i32
  }
  func.func @transform_8(%arg0: i32, %arg1: memref<8xi32, #tpu.memory_space<smem>>, %arg2: memref<8xi32, #tpu.memory_space<smem>>) -> (i32, i32) {
    %c0_i32 = arith.constant 0 : i32
    %c0_i32_0 = arith.constant 0 : i32
    %c0_i32_1 = arith.constant 0 : i32
    return %c0_i32, %c0_i32_0 : i32, i32
  }
  func.func @transform_9(%arg0: i32, %arg1: memref<8xi32, #tpu.memory_space<smem>>, %arg2: memref<8xi32, #tpu.memory_space<smem>>) -> (i32, i32) {
    %c0_i32 = arith.constant 0 : i32
    %c0_i32_0 = arith.constant 0 : i32
    %c0_i32_1 = arith.constant 0 : i32
    return %c0_i32, %c0_i32_0 : i32, i32
  }
  func.func @transform_10(%arg0: i32, %arg1: memref<8xi32, #tpu.memory_space<smem>>, %arg2: memref<8xi32, #tpu.memory_space<smem>>) -> (i32, i32) {
    %c0_i32 = arith.constant 0 : i32
    %c0_i32_0 = arith.constant 0 : i32
    %c0_i32_1 = arith.constant 0 : i32
    return %c0_i32, %c0_i32_0 : i32, i32
  }
  func.func @transform_11(%arg0: i32, %arg1: memref<8xi32, #tpu.memory_space<smem>>, %arg2: memref<8xi32, #tpu.memory_space<smem>>) -> (i32, i32) {
    %c0_i32 = arith.constant 0 : i32
    %c0_i32_0 = arith.constant 0 : i32
    %c0_i32_1 = arith.constant 0 : i32
    return %c0_i32, %c0_i32_0 : i32, i32
  }
  func.func @transform_12(%arg0: i32, %arg1: memref<8xi32, #tpu.memory_space<smem>>, %arg2: memref<8xi32, #tpu.memory_space<smem>>) -> (i32, i32) {
    %c0_i32 = arith.constant 0 : i32
    %c0_i32_0 = arith.constant 0 : i32
    %c0_i32_1 = arith.constant 0 : i32
    return %c0_i32, %c0_i32_0 : i32, i32
  }
  func.func @transform_13(%arg0: i32, %arg1: memref<8xi32, #tpu.memory_space<smem>>, %arg2: memref<8xi32, #tpu.memory_space<smem>>) -> (i32, i32) {
    %c0_i32 = arith.constant 0 : i32
    %c0_i32_0 = arith.constant 0 : i32
    %c0_i32_1 = arith.constant 0 : i32
    return %c0_i32, %c0_i32_0 : i32, i32
  }
  func.func @transform_14(%arg0: i32, %arg1: memref<8xi32, #tpu.memory_space<smem>>, %arg2: memref<8xi32, #tpu.memory_space<smem>>) -> (i32, i32) {
    %c0_i32 = arith.constant 0 : i32
    %c0_i32_0 = arith.constant 0 : i32
    %c0_i32_1 = arith.constant 0 : i32
    return %c0_i32, %c0_i32_0 : i32, i32
  }
  func.func @transform_15(%arg0: i32, %arg1: memref<8xi32, #tpu.memory_space<smem>>, %arg2: memref<8xi32, #tpu.memory_space<smem>>) -> (i32, i32) {
    %c0_i32 = arith.constant 0 : i32
    %c0_i32_0 = arith.constant 0 : i32
    %c0_i32_1 = arith.constant 0 : i32
    return %c0_i32, %c0_i32_0 : i32, i32
  }
  func.func @transform_16(%arg0: i32, %arg1: memref<8xi32, #tpu.memory_space<smem>>, %arg2: memref<8xi32, #tpu.memory_space<smem>>) -> (i32, i32) {
    %c0_i32 = arith.constant 0 : i32
    %c0_i32_0 = arith.constant 0 : i32
    %c0_i32_1 = arith.constant 0 : i32
    return %c0_i32, %c0_i32_0 : i32, i32
  }
  func.func @transform_17(%arg0: i32, %arg1: memref<8xi32, #tpu.memory_space<smem>>, %arg2: memref<8xi32, #tpu.memory_space<smem>>) -> (i32, i32) {
    %c0_i32 = arith.constant 0 : i32
    %c0_i32_0 = arith.constant 0 : i32
    %c0_i32_1 = arith.constant 0 : i32
    return %c0_i32, %c0_i32_0 : i32, i32
  }
  func.func @transform_18(%arg0: i32, %arg1: memref<8xi32, #tpu.memory_space<smem>>, %arg2: memref<8xi32, #tpu.memory_space<smem>>) -> (i32, i32) {
    %c0_i32 = arith.constant 0 : i32
    %c0_i32_0 = arith.constant 0 : i32
    %c0_i32_1 = arith.constant 0 : i32
    return %c0_i32, %c0_i32_0 : i32, i32
  }
  func.func @transform_19(%arg0: i32, %arg1: memref<8xi32, #tpu.memory_space<smem>>, %arg2: memref<8xi32, #tpu.memory_space<smem>>) -> (i32, i32) {
    %c0_i32 = arith.constant 0 : i32
    %c0_i32_0 = arith.constant 0 : i32
    %c0_i32_1 = arith.constant 0 : i32
    return %c0_i32, %c0_i32_0 : i32, i32
  }
  func.func @transform_20(%arg0: i32, %arg1: memref<8xi32, #tpu.memory_space<smem>>, %arg2: memref<8xi32, #tpu.memory_space<smem>>) -> (i32, i32) {
    %c0_i32 = arith.constant 0 : i32
    %c0_i32_0 = arith.constant 0 : i32
    %c0_i32_1 = arith.constant 0 : i32
    return %c0_i32, %c0_i32_0 : i32, i32
  }
  func.func @transform_21(%arg0: i32, %arg1: memref<8xi32, #tpu.memory_space<smem>>, %arg2: memref<8xi32, #tpu.memory_space<smem>>) -> (i32, i32) {
    %c0_i32 = arith.constant 0 : i32
    %c0_i32_0 = arith.constant 0 : i32
    %c0_i32_1 = arith.constant 0 : i32
    return %c0_i32, %c0_i32_0 : i32, i32
  }
  func.func @transform_22(%arg0: i32, %arg1: memref<8xi32, #tpu.memory_space<smem>>, %arg2: memref<8xi32, #tpu.memory_space<smem>>) -> (i32, i32) {
    %c0_i32 = arith.constant 0 : i32
    %c0_i32_0 = arith.constant 0 : i32
    %c0_i32_1 = arith.constant 0 : i32
    return %c0_i32, %c0_i32_0 : i32, i32
  }
  func.func @transform_23(%arg0: i32, %arg1: memref<8xi32, #tpu.memory_space<smem>>, %arg2: memref<8xi32, #tpu.memory_space<smem>>) -> (i32, i32) {
    %c0_i32 = arith.constant 0 : i32
    %c0_i32_0 = arith.constant 0 : i32
    %c0_i32_1 = arith.constant 0 : i32
    return %c0_i32, %c0_i32_0 : i32, i32
  }
}

</mosaic_0001>

<llo_original>
// kernel: tpu_custom_call.1
$region0: #{tpu_custom_call.1}
  #allocation0 [shape = 'u32[]', space=smem, size = 0x4, offset = 0x4, fixed_abs, tag = 'smem constant byte address 0x4 - core index']
  #allocation1 [shape = 'u32[144,128]{1,0:T(1,128)}', space=vmem, size = 0x12000, scoped, tag = 'internal scratch']
  #allocation2 [shape = 'f32[16,128]{1,0:T(8,128)}', space=vmem, size = 0x2000, scoped, tag = 'scratch operand']
  #allocation3 [shape = 'f32[8,128]{1,0:T(8,128)}', space=vmem, size = 0x1000, scoped, tag = 'scratch operand']
  #allocation4 [shape = 'f32[8,128]{1,0:T(8,128)}', space=vmem, size = 0x1000, scoped, tag = 'scratch operand']
  #allocation5 [shape = 'f32[8,128]{1,0:T(8,128)}', space=vmem, size = 0x1000, scoped, tag = 'scratch operand']
  #allocation6 [shape = 's32[1]{0}', space=sflag, size = 0x4, scoped, tag = 'scoped memory for tpu_custom_call.1']
  #allocation7 [shape = 'u8[512]{0}', space=smem, size = 0x200, scoped, tag = 'prefetched SMEM operand 0']
  #allocation8 [shape = 'u8[512]{0}', space=smem, size = 0x200, scoped, tag = 'prefetched SMEM operand 1']
  %s0 = inlined_call_operand.hbm [shape: s32[8], index: 0, kind: input, shape index: {}]
  %s1 = inlined_call_operand.hbm [shape: s32[8], index: 1, kind: input, shape index: {}]
  %s2 = inlined_call_operand.vmem [shape: bf16[96,16], index: 2, kind: input, shape index: {}]
  %s3 = inlined_call_operand.vmem [shape: bf16[16,128], index: 3, kind: input, shape index: {}]
  %s4 = inlined_call_operand.hbm [shape: bf16[768,128], index: 4, kind: input, shape index: {}]
  %s5 = inlined_call_operand.vmem [shape: bf16[128,128], index: 5, kind: input, shape index: {}]
  %s6 = inlined_call_operand.hbm [shape: f32[1,128], index: 6, kind: input, shape index: {}]
  %s7 = inlined_call_operand.hbm [shape: bf16[16,16], index: 7, kind: input, shape index: {}]
  %s8 = inlined_call_operand.vmem [shape: f32[16,1], index: 8, kind: input, shape index: {}]
  %s9 = inlined_call_operand.vmem [shape: bf16[32,32], index: 9, kind: input, shape index: {}]
  %s10 = inlined_call_operand.hbm [shape: bf16[128,128], index: 10, kind: input, shape index: {}]
  %s11 = inlined_call_operand.vmem [shape: f32[1,128], index: 11, kind: input, shape index: {}]
  %s12 = inlined_call_operand.hbm [shape: bf16[128,128], index: 12, kind: input, shape index: {}]
  %s13 = inlined_call_operand.hbm [shape: f32[1,128], index: 13, kind: input, shape index: {}]
  %s14 = inlined_call_operand.hbm [shape: bf16[8,16], index: 14, kind: input, shape index: {}]
  %s15 = inlined_call_operand.vmem [shape: f32[8,1], index: 15, kind: input, shape index: {}]
  %s16 = inlined_call_operand.hbm [shape: bf16[128,128], index: 16, kind: input, shape index: {}]
  %s17 = inlined_call_operand.vmem [shape: f32[1,128], index: 17, kind: input, shape index: {}]
  %s18 = inlined_call_operand.vmem [shape: bf16[8,10], index: 18, kind: input, shape index: {}]
  %s19 = inlined_call_operand.vmem [shape: bf16[10,128], index: 19, kind: input, shape index: {}]
  %s20 = inlined_call_operand.vmem [shape: f32[1,128], index: 20, kind: input, shape index: {}]
  %s21 = inlined_call_operand.vmem [shape: f32[8,8], index: 21, kind: input, shape index: {}]
  %s22 = inlined_call_operand.hbm [shape: f32[8,128], index: 22, kind: output, shape index: {0}]
  %s23 = inlined_call_operand.hbm [shape: f32[8,128], index: 23, kind: output, shape index: {1}]
  %s24 = inlined_call_operand.hbm [shape: f32[8,8], index: 24, kind: output, shape index: {2}]
  %s25 = inlined_call_operand.hbm [shape: f32[1,128], index: 25, kind: output, shape index: {3}]
  %26 = xla_tuple %s22, %s23, %s24, %s25
  %s27 = sld [smem:[#allocation0]]
  $region177: #{tpu_custom_call.1} parent=0
    _
  %s29 = ssub.s32 1, %s27
  %s30 = scalar_select 0, %s29, %s27
  %32 = dma.hbm_to_smem %s0, 16, [#allocation7], [#allocation6]
  %34 = dma.hbm_to_smem %s1, 16, [#allocation8], [#allocation6]
  %35 = dma.done [#allocation6], 32
  %36 = sfence
  $region1: #{tpu_custom_call.1} parent=0
    #allocation9 [shape = 'u8[65536]{0}', space=vmem, size = 0x10000, scoped, tag = 'input window, operand 4']
    #allocation10 [shape = 's32[2]{0}', space=sflag, size = 0x8, scoped, tag = 'scoped memory for tpu_custom_call.1']
    #allocation11 [shape = 's32[2]{0}', space=sflag, size = 0x8, scoped, tag = 'scoped memory for tpu_custom_call.1']
    #allocation12 [shape = 'u8[512]{0}', space=vmem, size = 0x400, scoped, tag = 'input window, operand 6, single buffered']
    #allocation13 [shape = 's32[1]{0}', space=sflag, size = 0x4, scoped, tag = 'scoped memory for tpu_custom_call.1']
    #allocation14 [shape = 'u8[4096]{0}', space=vmem, size = 0x1000, scoped, tag = 'input window, operand 7, single buffered']
    #allocation15 [shape = 'u8[32768]{0}', space=vmem, size = 0x8000, scoped, tag = 'input window, operand 10, single buffered']
    #allocation16 [shape = 's32[1]{0}', space=sflag, size = 0x4, scoped, tag = 'scoped memory for tpu_custom_call.1']
    #allocation17 [shape = 'u8[32768]{0}', space=vmem, size = 0x8000, scoped, tag = 'input window, operand 12, single buffered']
    #allocation18 [shape = 'u8[512]{0}', space=vmem, size = 0x400, scoped, tag = 'input window, operand 13, single buffered']
    #allocation19 [shape = 's32[1]{0}', space=sflag, size = 0x4, scoped, tag = 'scoped memory for tpu_custom_call.1']
    #allocation20 [shape = 'u8[2048]{0}', space=vmem, size = 0x800, scoped, tag = 'input window, operand 14, single buffered']
    #allocation21 [shape = 'u8[32768]{0}', space=vmem, size = 0x8000, scoped, tag = 'input window, operand 16, single buffered']
    #allocation22 [shape = 's32[1]{0}', space=sflag, size = 0x4, scoped, tag = 'scoped memory for tpu_custom_call.1']
    #allocation23 [shape = 'u8[4096]{0}', space=vmem, size = 0x1000, scoped, tag = 'output window, operand 0, single buffered']
    #allocation24 [shape = 'u8[4096]{0}', space=vmem, size = 0x1000, scoped, tag = 'output window, operand 1, single buffered']
    #allocation25 [shape = 's32[1]{0}', space=sflag, size = 0x4, scoped, tag = 'scoped memory for tpu_custom_call.1']
    #allocation26 [shape = 'u8[4096]{0}', space=vmem, size = 0x1000, scoped, tag = 'output window, operand 2, single buffered']
    #allocation27 [shape = 'u8[512]{0}', space=vmem, size = 0x400, scoped, tag = 'output window, operand 3, single buffered']
    #allocation28 [shape = 's32[1]{0}', space=sflag, size = 0x4, scoped, tag = 'scoped memory for tpu_custom_call.1']
    %37 = vsyncpa [#allocation10], 0
    %s38 = scalar_lea.sflag [#allocation10], 1
    %39 = vsyncpa %s38, 0
    %40 = vsyncpa [#allocation13], 0
    %41 = vsyncpa [#allocation16], 0
    %42 = vsyncpa [#allocation19], 0
    %43 = vsyncpa [#allocation22], 0
    %44 = vsyncpa [#allocation11], 0
    %45 = vsyncpa [#allocation25], 0
    %46 = vsyncpa [#allocation28], 0
    loop: start=0, step=1, limit=8
    $region2: #{tpu_custom_call.1} parent=1 // loop_pre_header
      _
    $region3: #{tpu_custom_call.1} parent=1 // loop_header
      %s48 = sphi 0, %s52
      %p49 = scmp.ge.s32.totalorder %s48, 8
      %s58 = sphi 0, %s60
      %s61 = sphi 0, %s58
      %s62 = sphi 0, %s61
      %s78 = sphi 0, %s62
      %s82 = sphi 0, %s82
      %s84 = sphi 0, %s82
      %s85 = sphi 0, %s84
      %s99 = sphi 0, %s85
      %s105 = sphi 0, %s107
      %s108 = sphi 0, %s105
      %s109 = sphi 0, %s108
      %s125 = sphi 0, %s109
      %s129 = sphi 0, %s129
      %s131 = sphi 0, %s129
      %s132 = sphi 0, %s131
      %s146 = sphi 0, %s132
      %s150 = sphi 0, %s150
      %s152 = sphi 0, %s150
      %s153 = sphi 0, %s152
      %s167 = sphi 0, %s153
      %s171 = sphi 0, %s171
      %s173 = sphi 0, %s171
      %s174 = sphi 0, %s173
      %s188 = sphi 0, %s174
      %s192 = sphi 0, %s192
      %s194 = sphi 0, %s192
      %s195 = sphi 0, %s194
      %s209 = sphi 0, %s195
      %s213 = sphi 0, %s213
      %s215 = sphi 0, %s213
      %s216 = sphi 0, %s215
      %s230 = sphi 0, %s216
      %s234 = sphi 0, %s234
      %s236 = sphi 0, %s234
      %s237 = sphi 0, %s236
      %s251 = sphi 0, %s237
      %s255 = sphi 0, %s255
      %s257 = sphi 0, %s255
      %s258 = sphi 0, %s257
      %s272 = sphi 0, %s258
      %s276 = sphi 0, %s276
      %s278 = sphi 0, %s276
      %s279 = sphi 0, %s278
      %s293 = sphi 0, %s279
      %s297 = sphi 0, %s297
      %s299 = sphi 0, %s297
      %s300 = sphi 0, %s299
      %s314 = sphi 0, %s300
      %s318 = sphi 0, %s318
      %s320 = sphi 0, %s318
      %s321 = sphi 0, %s320
      %s335 = sphi 0, %s321
      %s339 = sphi 0, %s339
      %s341 = sphi 0, %s339
      %s342 = sphi 0, %s341
      %s356 = sphi 0, %s342
      %s360 = sphi 0, %s360
      %s362 = sphi 0, %s360
      %s363 = sphi 0, %s362
      %s377 = sphi 0, %s363
      %s381 = sphi 0, %s381
      %s383 = sphi 0, %s381
      %s384 = sphi 0, %s383
      %s398 = sphi 0, %s384
      %s402 = sphi 0, %s402
      %s404 = sphi 0, %s402
      %s405 = sphi 0, %s404
      %s419 = sphi 0, %s405
      %s423 = sphi 0, %s423
      %s425 = sphi 0, %s423
      %s426 = sphi 0, %s425
      %s440 = sphi 0, %s426
      %s444 = sphi 0, %s444
      %s446 = sphi 0, %s444
      %s447 = sphi 0, %s446
      %s461 = sphi 0, %s447
      %s465 = sphi 0, %s465
      %s467 = sphi 0, %s465
      %s468 = sphi 0, %s467
      %s482 = sphi 0, %s468
      %s486 = sphi 0, %s486
      %s488 = sphi 0, %s486
      %s489 = sphi 0, %s488
      %s503 = sphi 0, %s489
      %s507 = sphi 0, %s507
      %s509 = sphi 0, %s507
      %s510 = sphi 0, %s509
      %s524 = sphi 0, %s510
      %s528 = sphi 0, %s528
      %s530 = sphi 0, %s528
      %s531 = sphi 0, %s530
      %s545 = sphi 0, %s531
      %s549 = sphi 0, %s549
      %s551 = sphi 0, %s549
      %s552 = sphi 0, %s551
      %s566 = sphi 0, %s552
    $region4: #{tpu_custom_call.1} parent=1 // loop_header_branch
      %51 = sbr.rel (%p49) target = $region8
    $region5: #{tpu_custom_call.1} parent=1 // loop_body
      %s53 = ssub.s32 %s48, 1
      %s54 = ssub.s32 %s48, 2
      %s55 = sadd.s32 %s48, 1
      %s56 = ssub.s32 %s48, %s55
      %p57 = scmp.eq.s32.totalorder %s56, 0
      %s59 = sadd.s32 %s58, 1
      %s60 = scalar_select %p57, %s58, %s59
      %p63 = pneg %p57
      %p64 = scmp.eq.s32.totalorder %s48, 5
      %p65 = por %p63, %p64
      %p66 = scmp.ne.s32.totalorder %s58, %s61
      %p67 = scmp.eq.s32.totalorder %s48, 0
      %p68 = por %p66, %p67
      %p69 = scmp.ne.s32.totalorder %s58, %s61
      %p70 = scmp.eq.s32.totalorder %s53, 5
      %p71 = por %p69, %p70
      %p72 = scmp.ne.s32.totalorder %s61, %s62
      %p73 = scmp.eq.s32.totalorder %s53, 0
      %p74 = por %p72, %p73
      %p75 = scmp.ne.s32.totalorder %s61, %s62
      %p76 = scmp.eq.s32.totalorder %s54, 5
      %p77 = por %p75, %p76
      %p79 = scmp.ne.s32.totalorder %s62, %s78
      %p80 = scmp.eq.s32.totalorder %s54, 0
      %p81 = por %p79, %p80
      %s83 = sadd.s32 %s82, 1
      %p86 = scmp.eq.s32.totalorder %s48, 5
      %p87 = scmp.ne.s32.totalorder %s82, %s84
      %p88 = scmp.eq.s32.totalorder %s48, 0
      %p89 = por %p87, %p88
      %p90 = scmp.ne.s32.totalorder %s82, %s84
      %p91 = scmp.eq.s32.totalorder %s53, 5
      %p92 = por %p90, %p91
      %p93 = scmp.ne.s32.totalorder %s84, %s85
      %p94 = scmp.eq.s32.totalorder %s53, 0
      %p95 = por %p93, %p94
      %p96 = scmp.ne.s32.totalorder %s84, %s85
      %p97 = scmp.eq.s32.totalorder %s54, 5
      %p98 = por %p96, %p97
      %p100 = scmp.ne.s32.totalorder %s85, %s99
      %p101 = scmp.eq.s32.totalorder %s54, 0
      %p102 = por %p100, %p101
      %s103 = ssub.s32 %s48, %s55
      %p104 = scmp.eq.s32.totalorder %s103, 0
      %s106 = sadd.s32 %s105, 1
      %s107 = scalar_select %p104, %s105, %s106
      %p110 = pneg %p104
      %p111 = scmp.eq.s32.totalorder %s48, 5
      %p112 = por %p110, %p111
      %p113 = scmp.ne.s32.totalorder %s105, %s108
      %p114 = scmp.eq.s32.totalorder %s48, 0
      %p115 = por %p113, %p114
      %p116 = scmp.ne.s32.totalorder %s105, %s108
      %p117 = scmp.eq.s32.totalorder %s53, 5
      %p118 = por %p116, %p117
      %p119 = scmp.ne.s32.totalorder %s108, %s109
      %p120 = scmp.eq.s32.totalorder %s53, 0
      %p121 = por %p119, %p120
      %p122 = scmp.ne.s32.totalorder %s108, %s109
      %p123 = scmp.eq.s32.totalorder %s54, 5
      %p124 = por %p122, %p123
      %p126 = scmp.ne.s32.totalorder %s109, %s125
      %p127 = scmp.eq.s32.totalorder %s54, 0
      %p128 = por %p126, %p127
      %s130 = sadd.s32 %s129, 1
      %p133 = scmp.eq.s32.totalorder %s48, 5
      %p134 = scmp.ne.s32.totalorder %s129, %s131
      %p135 = scmp.eq.s32.totalorder %s48, 0
      %p136 = por %p134, %p135
      %p137 = scmp.ne.s32.totalorder %s129, %s131
      %p138 = scmp.eq.s32.totalorder %s53, 5
      %p139 = por %p137, %p138
      %p140 = scmp.ne.s32.totalorder %s131, %s132
      %p141 = scmp.eq.s32.totalorder %s53, 0
      %p142 = por %p140, %p141
      %p143 = scmp.ne.s32.totalorder %s131, %s132
      %p144 = scmp.eq.s32.totalorder %s54, 5
      %p145 = por %p143, %p144
      %p147 = scmp.ne.s32.totalorder %s132, %s146
      %p148 = scmp.eq.s32.totalorder %s54, 0
      %p149 = por %p147, %p148
      %s151 = sadd.s32 %s150, 1
      %p154 = scmp.eq.s32.totalorder %s48, 5
      %p155 = scmp.ne.s32.totalorder %s150, %s152
      %p156 = scmp.eq.s32.totalorder %s48, 0
      %p157 = por %p155, %p156
      %p158 = scmp.ne.s32.totalorder %s150, %s152
      %p159 = scmp.eq.s32.totalorder %s53, 5
      %p160 = por %p158, %p159
      %p161 = scmp.ne.s32.totalorder %s152, %s153
      %p162 = scmp.eq.s32.totalorder %s53, 0
      %p163 = por %p161, %p162
      %p164 = scmp.ne.s32.totalorder %s152, %s153
      %p165 = scmp.eq.s32.totalorder %s54, 5
      %p166 = por %p164, %p165
      %p168 = scmp.ne.s32.totalorder %s153, %s167
      %p169 = scmp.eq.s32.totalorder %s54, 0
      %p170 = por %p168, %p169
      %s172 = sadd.s32 %s171, 1
      %p175 = scmp.eq.s32.totalorder %s48, 5
      %p176 = scmp.ne.s32.totalorder %s171, %s173
      %p177 = scmp.eq.s32.totalorder %s48, 0
      %p178 = por %p176, %p177
      %p179 = scmp.ne.s32.totalorder %s171, %s173
      %p180 = scmp.eq.s32.totalorder %s53, 5
      %p181 = por %p179, %p180
      %p182 = scmp.ne.s32.totalorder %s173, %s174
      %p183 = scmp.eq.s32.totalorder %s53, 0
      %p184 = por %p182, %p183
      %p185 = scmp.ne.s32.totalorder %s173, %s174
      %p186 = scmp.eq.s32.totalorder %s54, 5
      %p187 = por %p185, %p186
      %p189 = scmp.ne.s32.totalorder %s174, %s188
      %p190 = scmp.eq.s32.totalorder %s54, 0
      %p191 = por %p189, %p190
      %s193 = sadd.s32 %s192, 1
      %p196 = scmp.eq.s32.totalorder %s48, 5
      %p197 = scmp.ne.s32.totalorder %s192, %s194
      %p198 = scmp.eq.s32.totalorder %s48, 0
      %p199 = por %p197, %p198
      %p200 = scmp.ne.s32.totalorder %s192, %s194
      %p201 = scmp.eq.s32.totalorder %s53, 5
      %p202 = por %p200, %p201
      %p203 = scmp.ne.s32.totalorder %s194, %s195
      %p204 = scmp.eq.s32.totalorder %s53, 0
      %p205 = por %p203, %p204
      %p206 = scmp.ne.s32.totalorder %s194, %s195
      %p207 = scmp.eq.s32.totalorder %s54, 5
      %p208 = por %p206, %p207
      %p210 = scmp.ne.s32.totalorder %s195, %s209
      %p211 = scmp.eq.s32.totalorder %s54, 0
      %p212 = por %p210, %p211
      %s214 = sadd.s32 %s213, 1
      %p217 = scmp.eq.s32.totalorder %s48, 5
      %p218 = scmp.ne.s32.totalorder %s213, %s215
      %p219 = scmp.eq.s32.totalorder %s48, 0
      %p220 = por %p218, %p219
      %p221 = scmp.ne.s32.totalorder %s213, %s215
      %p222 = scmp.eq.s32.totalorder %s53, 5
      %p223 = por %p221, %p222
      %p224 = scmp.ne.s32.totalorder %s215, %s216
      %p225 = scmp.eq.s32.totalorder %s53, 0
      %p226 = por %p224, %p225
      %p227 = scmp.ne.s32.totalorder %s215, %s216
      %p228 = scmp.eq.s32.totalorder %s54, 5
      %p229 = por %p227, %p228
      %p231 = scmp.ne.s32.totalorder %s216, %s230
      %p232 = scmp.eq.s32.totalorder %s54, 0
      %p233 = por %p231, %p232
      %s235 = sadd.s32 %s234, 1
      %p238 = scmp.eq.s32.totalorder %s48, 5
      %p239 = scmp.ne.s32.totalorder %s234, %s236
      %p240 = scmp.eq.s32.totalorder %s48, 0
      %p241 = por %p239, %p240
      %p242 = scmp.ne.s32.totalorder %s234, %s236
      %p243 = scmp.eq.s32.totalorder %s53, 5
      %p244 = por %p242, %p243
      %p245 = scmp.ne.s32.totalorder %s236, %s237
      %p246 = scmp.eq.s32.totalorder %s53, 0
      %p247 = por %p245, %p246
      %p248 = scmp.ne.s32.totalorder %s236, %s237
      %p249 = scmp.eq.s32.totalorder %s54, 5
      %p250 = por %p248, %p249
      %p252 = scmp.ne.s32.totalorder %s237, %s251
      %p253 = scmp.eq.s32.totalorder %s54, 0
      %p254 = por %p252, %p253
      %s256 = sadd.s32 %s255, 1
      %p259 = scmp.eq.s32.totalorder %s48, 5
      %p260 = scmp.ne.s32.totalorder %s255, %s257
      %p261 = scmp.eq.s32.totalorder %s48, 0
      %p262 = por %p260, %p261
      %p263 = scmp.ne.s32.totalorder %s255, %s257
      %p264 = scmp.eq.s32.totalorder %s53, 5
      %p265 = por %p263, %p264
      %p266 = scmp.ne.s32.totalorder %s257, %s258
      %p267 = scmp.eq.s32.totalorder %s53, 0
      %p268 = por %p266, %p267
      %p269 = scmp.ne.s32.totalorder %s257, %s258
      %p270 = scmp.eq.s32.totalorder %s54, 5
      %p271 = por %p269, %p270
      %p273 = scmp.ne.s32.totalorder %s258, %s272
      %p274 = scmp.eq.s32.totalorder %s54, 0
      %p275 = por %p273, %p274
      %s277 = sadd.s32 %s276, 1
      %p280 = scmp.eq.s32.totalorder %s48, 5
      %p281 = scmp.ne.s32.totalorder %s276, %s278
      %p282 = scmp.eq.s32.totalorder %s48, 0
      %p283 = por %p281, %p282
      %p284 = scmp.ne.s32.totalorder %s276, %s278
      %p285 = scmp.eq.s32.totalorder %s53, 5
      %p286 = por %p284, %p285
      %p287 = scmp.ne.s32.totalorder %s278, %s279
      %p288 = scmp.eq.s32.totalorder %s53, 0
      %p289 = por %p287, %p288
      %p290 = scmp.ne.s32.totalorder %s278, %s279
      %p291 = scmp.eq.s32.totalorder %s54, 5
      %p292 = por %p290, %p291
      %p294 = scmp.ne.s32.totalorder %s279, %s293
      %p295 = scmp.eq.s32.totalorder %s54, 0
      %p296 = por %p294, %p295
      %s298 = sadd.s32 %s297, 1
      %p301 = scmp.eq.s32.totalorder %s48, 5
      %p302 = scmp.ne.s32.totalorder %s297, %s299
      %p303 = scmp.eq.s32.totalorder %s48, 0
      %p304 = por %p302, %p303
      %p305 = scmp.ne.s32.totalorder %s297, %s299
      %p306 = scmp.eq.s32.totalorder %s53, 5
      %p307 = por %p305, %p306
      %p308 = scmp.ne.s32.totalorder %s299, %s300
      %p309 = scmp.eq.s32.totalorder %s53, 0
      %p310 = por %p308, %p309
      %p311 = scmp.ne.s32.totalorder %s299, %s300
      %p312 = scmp.eq.s32.totalorder %s54, 5
      %p313 = por %p311, %p312
      %p315 = scmp.ne.s32.totalorder %s300, %s314
      %p316 = scmp.eq.s32.totalorder %s54, 0
      %p317 = por %p315, %p316
      %s319 = sadd.s32 %s318, 1
      %p322 = scmp.eq.s32.totalorder %s48, 5
      %p323 = scmp.ne.s32.totalorder %s318, %s320
      %p324 = scmp.eq.s32.totalorder %s48, 0
      %p325 = por %p323, %p324
      %p326 = scmp.ne.s32.totalorder %s318, %s320
      %p327 = scmp.eq.s32.totalorder %s53, 5
      %p328 = por %p326, %p327
      %p329 = scmp.ne.s32.totalorder %s320, %s321
      %p330 = scmp.eq.s32.totalorder %s53, 0
      %p331 = por %p329, %p330
      %p332 = scmp.ne.s32.totalorder %s320, %s321
      %p333 = scmp.eq.s32.totalorder %s54, 5
      %p334 = por %p332, %p333
      %p336 = scmp.ne.s32.totalorder %s321, %s335
      %p337 = scmp.eq.s32.totalorder %s54, 0
      %p338 = por %p336, %p337
      %s340 = sadd.s32 %s339, 1
      %p343 = scmp.eq.s32.totalorder %s48, 5
      %p344 = scmp.ne.s32.totalorder %s339, %s341
      %p345 = scmp.eq.s32.totalorder %s48, 0
      %p346 = por %p344, %p345
      %p347 = scmp.ne.s32.totalorder %s339, %s341
      %p348 = scmp.eq.s32.totalorder %s53, 5
      %p349 = por %p347, %p348
      %p350 = scmp.ne.s32.totalorder %s341, %s342
      %p351 = scmp.eq.s32.totalorder %s53, 0
      %p352 = por %p350, %p351
      %p353 = scmp.ne.s32.totalorder %s341, %s342
      %p354 = scmp.eq.s32.totalorder %s54, 5
      %p355 = por %p353, %p354
      %p357 = scmp.ne.s32.totalorder %s342, %s356
      %p358 = scmp.eq.s32.totalorder %s54, 0
      %p359 = por %p357, %p358
      %s361 = sadd.s32 %s360, 1
      %p364 = scmp.eq.s32.totalorder %s48, 5
      %p365 = scmp.ne.s32.totalorder %s360, %s362
      %p366 = scmp.eq.s32.totalorder %s48, 0
      %p367 = por %p365, %p366
      %p368 = scmp.ne.s32.totalorder %s360, %s362
      %p369 = scmp.eq.s32.totalorder %s53, 5
      %p370 = por %p368, %p369
      %p371 = scmp.ne.s32.totalorder %s362, %s363
      %p372 = scmp.eq.s32.totalorder %s53, 0
      %p373 = por %p371, %p372
      %p374 = scmp.ne.s32.totalorder %s362, %s363
      %p375 = scmp.eq.s32.totalorder %s54, 5
      %p376 = por %p374, %p375
      %p378 = scmp.ne.s32.totalorder %s363, %s377
      %p379 = scmp.eq.s32.totalorder %s54, 0
      %p380 = por %p378, %p379
      %s382 = sadd.s32 %s381, 1
      %p385 = scmp.eq.s32.totalorder %s48, 5
      %p386 = scmp.ne.s32.totalorder %s381, %s383
      %p387 = scmp.eq.s32.totalorder %s48, 0
      %p388 = por %p386, %p387
      %p389 = scmp.ne.s32.totalorder %s381, %s383
      %p390 = scmp.eq.s32.totalorder %s53, 5
      %p391 = por %p389, %p390
      %p392 = scmp.ne.s32.totalorder %s383, %s384
      %p393 = scmp.eq.s32.totalorder %s53, 0
      %p394 = por %p392, %p393
      %p395 = scmp.ne.s32.totalorder %s383, %s384
      %p396 = scmp.eq.s32.totalorder %s54, 5
      %p397 = por %p395, %p396
      %p399 = scmp.ne.s32.totalorder %s384, %s398
      %p400 = scmp.eq.s32.totalorder %s54, 0
      %p401 = por %p399, %p400
      %s403 = sadd.s32 %s402, 1
      %p406 = scmp.eq.s32.totalorder %s48, 5
      %p407 = scmp.ne.s32.totalorder %s402, %s404
      %p408 = scmp.eq.s32.totalorder %s48, 0
      %p409 = por %p407, %p408
      %p410 = scmp.ne.s32.totalorder %s402, %s404
      %p411 = scmp.eq.s32.totalorder %s53, 5
      %p412 = por %p410, %p411
      %p413 = scmp.ne.s32.totalorder %s404, %s405
      %p414 = scmp.eq.s32.totalorder %s53, 0
      %p415 = por %p413, %p414
      %p416 = scmp.ne.s32.totalorder %s404, %s405
      %p417 = scmp.eq.s32.totalorder %s54, 5
      %p418 = por %p416, %p417
      %p420 = scmp.ne.s32.totalorder %s405, %s419
      %p421 = scmp.eq.s32.totalorder %s54, 0
      %p422 = por %p420, %p421
      %s424 = sadd.s32 %s423, 1
      %p427 = scmp.eq.s32.totalorder %s48, 5
      %p428 = scmp.ne.s32.totalorder %s423, %s425
      %p429 = scmp.eq.s32.totalorder %s48, 0
      %p430 = por %p428, %p429
      %p431 = scmp.ne.s32.totalorder %s423, %s425
      %p432 = scmp.eq.s32.totalorder %s53, 5
      %p433 = por %p431, %p432
      %p434 = scmp.ne.s32.totalorder %s425, %s426
      %p435 = scmp.eq.s32.totalorder %s53, 0
      %p436 = por %p434, %p435
      %p437 = scmp.ne.s32.totalorder %s425, %s426
      %p438 = scmp.eq.s32.totalorder %s54, 5
      %p439 = por %p437, %p438
      %p441 = scmp.ne.s32.totalorder %s426, %s440
      %p442 = scmp.eq.s32.totalorder %s54, 0
      %p443 = por %p441, %p442
      %s445 = sadd.s32 %s444, 1
      %p448 = scmp.eq.s32.totalorder %s48, 5
      %p449 = scmp.ne.s32.totalorder %s444, %s446
      %p450 = scmp.eq.s32.totalorder %s48, 0
      %p451 = por %p449, %p450
      %p452 = scmp.ne.s32.totalorder %s444, %s446
      %p453 = scmp.eq.s32.totalorder %s53, 5
      %p454 = por %p452, %p453
      %p455 = scmp.ne.s32.totalorder %s446, %s447
      %p456 = scmp.eq.s32.totalorder %s53, 0
      %p457 = por %p455, %p456
      %p458 = scmp.ne.s32.totalorder %s446, %s447
      %p459 = scmp.eq.s32.totalorder %s54, 5
      %p460 = por %p458, %p459
      %p462 = scmp.ne.s32.totalorder %s447, %s461
      %p463 = scmp.eq.s32.totalorder %s54, 0
      %p464 = por %p462, %p463
      %s466 = sadd.s32 %s465, 1
      %p469 = scmp.eq.s32.totalorder %s48, 5
      %p470 = scmp.ne.s32.totalorder %s465, %s467
      %p471 = scmp.eq.s32.totalorder %s48, 0
      %p472 = por %p470, %p471
      %p473 = scmp.ne.s32.totalorder %s465, %s467
      %p474 = scmp.eq.s32.totalorder %s53, 5
      %p475 = por %p473, %p474
      %p476 = scmp.ne.s32.totalorder %s467, %s468
      %p477 = scmp.eq.s32.totalorder %s53, 0
      %p478 = por %p476, %p477
      %p479 = scmp.ne.s32.totalorder %s467, %s468
      %p480 = scmp.eq.s32.totalorder %s54, 5
      %p481 = por %p479, %p480
      %p483 = scmp.ne.s32.totalorder %s468, %s482
      %p484 = scmp.eq.s32.totalorder %s54, 0
      %p485 = por %p483, %p484
      %s487 = sadd.s32 %s486, 1
      %p490 = scmp.eq.s32.totalorder %s48, 5
      %p491 = scmp.ne.s32.totalorder %s486, %s488
      %p492 = scmp.eq.s32.totalorder %s48, 0
      %p493 = por %p491, %p492
      %p494 = scmp.ne.s32.totalorder %s486, %s488
      %p495 = scmp.eq.s32.totalorder %s53, 5
      %p496 = por %p494, %p495
      %p497 = scmp.ne.s32.totalorder %s488, %s489
      %p498 = scmp.eq.s32.totalorder %s53, 0
      %p499 = por %p497, %p498
      %p500 = scmp.ne.s32.totalorder %s488, %s489
      %p501 = scmp.eq.s32.totalorder %s54, 5
      %p502 = por %p500, %p501
      %p504 = scmp.ne.s32.totalorder %s489, %s503
      %p505 = scmp.eq.s32.totalorder %s54, 0
      %p506 = por %p504, %p505
      %s508 = sadd.s32 %s507, 1
      %p511 = scmp.eq.s32.totalorder %s48, 5
      %p512 = scmp.ne.s32.totalorder %s507, %s509
      %p513 = scmp.eq.s32.totalorder %s48, 0
      %p514 = por %p512, %p513
      %p515 = scmp.ne.s32.totalorder %s507, %s509
      %p516 = scmp.eq.s32.totalorder %s53, 5
      %p517 = por %p515, %p516
      %p518 = scmp.ne.s32.totalorder %s509, %s510
      %p519 = scmp.eq.s32.totalorder %s53, 0
      %p520 = por %p518, %p519
      %p521 = scmp.ne.s32.totalorder %s509, %s510
      %p522 = scmp.eq.s32.totalorder %s54, 5
      %p523 = por %p521, %p522
      %p525 = scmp.ne.s32.totalorder %s510, %s524
      %p526 = scmp.eq.s32.totalorder %s54, 0
      %p527 = por %p525, %p526
      %s529 = sadd.s32 %s528, 1
      %p532 = scmp.eq.s32.totalorder %s48, 5
      %p533 = scmp.ne.s32.totalorder %s528, %s530
      %p534 = scmp.eq.s32.totalorder %s48, 0
      %p535 = por %p533, %p534
      %p536 = scmp.ne.s32.totalorder %s528, %s530
      %p537 = scmp.eq.s32.totalorder %s53, 5
      %p538 = por %p536, %p537
      %p539 = scmp.ne.s32.totalorder %s530, %s531
      %p540 = scmp.eq.s32.totalorder %s53, 0
      %p541 = por %p539, %p540
      %p542 = scmp.ne.s32.totalorder %s530, %s531
      %p543 = scmp.eq.s32.totalorder %s54, 5
      %p544 = por %p542, %p543
      %p546 = scmp.ne.s32.totalorder %s531, %s545
      %p547 = scmp.eq.s32.totalorder %s54, 0
      %p548 = por %p546, %p547
      %s550 = sadd.s32 %s549, 1
      %p553 = scmp.eq.s32.totalorder %s48, 5
      %p554 = scmp.ne.s32.totalorder %s549, %s551
      %p555 = scmp.eq.s32.totalorder %s48, 0
      %p556 = por %p554, %p555
      %p557 = scmp.ne.s32.totalorder %s549, %s551
      %p558 = scmp.eq.s32.totalorder %s53, 5
      %p559 = por %p557, %p558
      %p560 = scmp.ne.s32.totalorder %s551, %s552
      %p561 = scmp.eq.s32.totalorder %s53, 0
      %p562 = por %p560, %p561
      %p563 = scmp.ne.s32.totalorder %s551, %s552
      %p564 = scmp.eq.s32.totalorder %s54, 5
      %p565 = por %p563, %p564
      %p567 = scmp.ne.s32.totalorder %s552, %s566
      %p568 = scmp.eq.s32.totalorder %s54, 0
      %p569 = por %p567, %p568
      %p570 = scmp.le.s32.totalorder 1, %s48
      %p571 = scmp.lt.s32.totalorder %s48, 7
      %p572 = pnand %p570, %p571
      %p573 = pneg %p572
      // Predicated region
      $region9: #{tpu_custom_call.1} parent=5 // pred_check
        _
      $region10: #{tpu_custom_call.1} parent=5 // pred_check_branch
        %575 = sbr.rel (%p572) target = $region12
      $region11: #{tpu_custom_call.1} parent=5 // pred_region
        %s576 = ssub.s32 %s48, 1
        // Predicated region
        $region13: #{tpu_custom_call.1} parent=11 // pred_check
          %p577 = pneg %p95
        $region14: #{tpu_custom_call.1} parent=11 // pred_check_branch
          %579 = sbr.rel (%p577) target = $region16
        $region15: #{tpu_custom_call.1} parent=11 // pred_region
          _
        $region16: #{tpu_custom_call.1} parent=11 // pred_fallthru
          _
        // Predicated region
        $region17: #{tpu_custom_call.1} parent=11 // pred_check
          %p580 = pneg %p142
        $region18: #{tpu_custom_call.1} parent=11 // pred_check_branch
          %582 = sbr.rel (%p580) target = $region20
        $region19: #{tpu_custom_call.1} parent=11 // pred_region
          _
        $region20: #{tpu_custom_call.1} parent=11 // pred_fallthru
          _
        // Predicated region
        $region21: #{tpu_custom_call.1} parent=11 // pred_check
          %p583 = pneg %p163
        $region22: #{tpu_custom_call.1} parent=11 // pred_check_branch
          %585 = sbr.rel (%p583) target = $region24
        $region23: #{tpu_custom_call.1} parent=11 // pred_region
          %s587 = ssub.s32 16, 16
          %588 = vsyncadd [#allocation13], %s587
          %s590 = sshll.u32 [#allocation12], 4
          %s591 = int_to_ptr.vmem [resolvable:$true] %s590
          %593 = dma.hbm_to_vmem [thread:$0]  %s6, 16, %s591, [#allocation13]
        $region24: #{tpu_custom_call.1} parent=11 // pred_fallthru
          _
        // Predicated region
        $region25: #{tpu_custom_call.1} parent=11 // pred_check
          %p594 = pneg %p184
        $region26: #{tpu_custom_call.1} parent=11 // pred_check_branch
          %596 = sbr.rel (%p594) target = $region28
        $region27: #{tpu_custom_call.1} parent=11 // pred_region
          %s598 = ssub.s32 128, 128
          %599 = vsyncadd [#allocation13], %s598
          %s600 = sshll.u32 [#allocation14], 4
          %s601 = int_to_ptr.vmem [resolvable:$true] %s600
          %606 = dma.hbm_to_vmem [thread:$0]  %s7, 128, %s601, [#allocation13], 64, 64, 4
        $region28: #{tpu_custom_call.1} parent=11 // pred_fallthru
          _
        // Predicated region
        $region29: #{tpu_custom_call.1} parent=11 // pred_check
          %p607 = pneg %p205
        $region30: #{tpu_custom_call.1} parent=11 // pred_check_branch
          %609 = sbr.rel (%p607) target = $region32
        $region31: #{tpu_custom_call.1} parent=11 // pred_region
          _
        $region32: #{tpu_custom_call.1} parent=11 // pred_fallthru
          _
        // Predicated region
        $region33: #{tpu_custom_call.1} parent=11 // pred_check
          %p610 = pneg %p226
        $region34: #{tpu_custom_call.1} parent=11 // pred_check_branch
          %612 = sbr.rel (%p610) target = $region36
        $region35: #{tpu_custom_call.1} parent=11 // pred_region
          _
        $region36: #{tpu_custom_call.1} parent=11 // pred_fallthru
          _
        // Predicated region
        $region37: #{tpu_custom_call.1} parent=11 // pred_check
          %p613 = pneg %p247
        $region38: #{tpu_custom_call.1} parent=11 // pred_check_branch
          %615 = sbr.rel (%p613) target = $region40
        $region39: #{tpu_custom_call.1} parent=11 // pred_region
          %s617 = ssub.s32 1024, 1024
          %618 = vsyncadd [#allocation16], %s617
          %s619 = sshll.u32 [#allocation15], 4
          %s620 = int_to_ptr.vmem [resolvable:$true] %s619
          %625 = dma.hbm_to_vmem [thread:$0]  %s10, 1024, %s620, [#allocation16], 64, 64, 4
        $region40: #{tpu_custom_call.1} parent=11 // pred_fallthru
          _
        // Predicated region
        $region41: #{tpu_custom_call.1} parent=11 // pred_check
          %p626 = pneg %p268
        $region42: #{tpu_custom_call.1} parent=11 // pred_check_branch
          %628 = sbr.rel (%p626) target = $region44
        $region43: #{tpu_custom_call.1} parent=11 // pred_region
          _
        $region44: #{tpu_custom_call.1} parent=11 // pred_fallthru
          _
        // Predicated region
        $region45: #{tpu_custom_call.1} parent=11 // pred_check
          %p629 = pneg %p289
        $region46: #{tpu_custom_call.1} parent=11 // pred_check_branch
          %631 = sbr.rel (%p629) target = $region48
        $region47: #{tpu_custom_call.1} parent=11 // pred_region
          %s633 = ssub.s32 1024, 1024
          %634 = vsyncadd [#allocation16], %s633
          %s635 = sshll.u32 [#allocation17], 4
          %s636 = int_to_ptr.vmem [resolvable:$true] %s635
          %641 = dma.hbm_to_vmem [thread:$0]  %s12, 1024, %s636, [#allocation16], 64, 64, 4
        $region48: #{tpu_custom_call.1} parent=11 // pred_fallthru
          _
        // Predicated region
        $region49: #{tpu_custom_call.1} parent=11 // pred_check
          %p642 = pneg %p310
        $region50: #{tpu_custom_call.1} parent=11 // pred_check_branch
          %644 = sbr.rel (%p642) target = $region52
        $region51: #{tpu_custom_call.1} parent=11 // pred_region
          %s646 = ssub.s32 16, 16
          %647 = vsyncadd [#allocation19], %s646
          %s649 = sshll.u32 [#allocation18], 4
          %s650 = int_to_ptr.vmem [resolvable:$true] %s649
          %652 = dma.hbm_to_vmem [thread:$0]  %s13, 16, %s650, [#allocation19]
        $region52: #{tpu_custom_call.1} parent=11 // pred_fallthru
          _
        // Predicated region
        $region53: #{tpu_custom_call.1} parent=11 // pred_check
          %p653 = pneg %p331
        $region54: #{tpu_custom_call.1} parent=11 // pred_check_branch
          %655 = sbr.rel (%p653) target = $region56
        $region55: #{tpu_custom_call.1} parent=11 // pred_region
          %s657 = ssub.s32 64, 64
          %658 = vsyncadd [#allocation19], %s657
          %s660 = sshll.u32 [#allocation20], 4
          %s661 = int_to_ptr.vmem [resolvable:$true] %s660
          %663 = dma.hbm_to_vmem [thread:$0]  %s14, 64, %s661, [#allocation19]
        $region56: #{tpu_custom_call.1} parent=11 // pred_fallthru
          _
        // Predicated region
        $region57: #{tpu_custom_call.1} parent=11 // pred_check
          %p664 = pneg %p352
        $region58: #{tpu_custom_call.1} parent=11 // pred_check_branch
          %666 = sbr.rel (%p664) target = $region60
        $region59: #{tpu_custom_call.1} parent=11 // pred_region
          _
        $region60: #{tpu_custom_call.1} parent=11 // pred_fallthru
          _
        // Predicated region
        $region61: #{tpu_custom_call.1} parent=11 // pred_check
          %p667 = pneg %p373
        $region62: #{tpu_custom_call.1} parent=11 // pred_check_branch
          %669 = sbr.rel (%p667) target = $region64
        $region63: #{tpu_custom_call.1} parent=11 // pred_region
          %s671 = ssub.s32 1024, 1024
          %672 = vsyncadd [#allocation22], %s671
          %s673 = sshll.u32 [#allocation21], 4
          %s674 = int_to_ptr.vmem [resolvable:$true] %s673
          %679 = dma.hbm_to_vmem [thread:$0]  %s16, 1024, %s674, [#allocation22], 64, 64, 4
        $region64: #{tpu_custom_call.1} parent=11 // pred_fallthru
          _
        // Predicated region
        $region65: #{tpu_custom_call.1} parent=11 // pred_check
          %p680 = pneg %p394
        $region66: #{tpu_custom_call.1} parent=11 // pred_check_branch
          %682 = sbr.rel (%p680) target = $region68
        $region67: #{tpu_custom_call.1} parent=11 // pred_region
          _
        $region68: #{tpu_custom_call.1} parent=11 // pred_fallthru
          _
        // Predicated region
        $region69: #{tpu_custom_call.1} parent=11 // pred_check
          %p683 = pneg %p415
        $region70: #{tpu_custom_call.1} parent=11 // pred_check_branch
          %685 = sbr.rel (%p683) target = $region72
        $region71: #{tpu_custom_call.1} parent=11 // pred_region
          _
        $region72: #{tpu_custom_call.1} parent=11 // pred_fallthru
          _
        // Predicated region
        $region73: #{tpu_custom_call.1} parent=11 // pred_check
          %p686 = pneg %p436
        $region74: #{tpu_custom_call.1} parent=11 // pred_check_branch
          %688 = sbr.rel (%p686) target = $region76
        $region75: #{tpu_custom_call.1} parent=11 // pred_region
          _
        $region76: #{tpu_custom_call.1} parent=11 // pred_fallthru
          _
        // Predicated region
        $region77: #{tpu_custom_call.1} parent=11 // pred_check
          %p689 = pneg %p457
        $region78: #{tpu_custom_call.1} parent=11 // pred_check_branch
          %691 = sbr.rel (%p689) target = $region80
        $region79: #{tpu_custom_call.1} parent=11 // pred_region
          _
        $region80: #{tpu_custom_call.1} parent=11 // pred_fallthru
          _
        // Predicated region
        $region81: #{tpu_custom_call.1} parent=11 // pred_check
          %p692 = pneg %p478
        $region82: #{tpu_custom_call.1} parent=11 // pred_check_branch
          %694 = sbr.rel (%p692) target = $region84
        $region83: #{tpu_custom_call.1} parent=11 // pred_region
          _
        $region84: #{tpu_custom_call.1} parent=11 // pred_fallthru
          _
      $region12: #{tpu_custom_call.1} parent=5 // pred_fallthru
        _
      %p695 = scmp.lt.s32.totalorder %s48, 6
      // Predicated region
      $region85: #{tpu_custom_call.1} parent=5 // pred_check
        %p696 = pneg %p695
      $region86: #{tpu_custom_call.1} parent=5 // pred_check_branch
        %698 = sbr.rel (%p696) target = $region88
      $region87: #{tpu_custom_call.1} parent=5 // pred_region
        // Predicated region
        $region89: #{tpu_custom_call.1} parent=87 // pred_check
          %p699 = pneg %p68
        $region90: #{tpu_custom_call.1} parent=87 // pred_check_branch
          %701 = sbr.rel (%p699) target = $region92
        $region91: #{tpu_custom_call.1} parent=87 // pred_region
          %s702 = smul.u32 2, %s48
          %p703 = scmp.lt.s32.totalorder %s702, 11
          %s704 = scalar_select %p703, %s702, 11
          %s705 = smul.addr %s704, 4
          %s706 = scalar_lea.vmem %s2, %s705
          %s707 = smul.u32 2, %s48
        $region92: #{tpu_custom_call.1} parent=87 // pred_fallthru
          _
        // Predicated region
        $region93: #{tpu_custom_call.1} parent=87 // pred_check
          %p708 = pneg %p115
        $region94: #{tpu_custom_call.1} parent=87 // pred_check_branch
          %710 = sbr.rel (%p708) target = $region96
        $region95: #{tpu_custom_call.1} parent=87 // pred_region
          %s711 = sand.u32 %s105, 1
          %s712 = scalar_lea.sflag [#allocation10], %s711
          %s713 = sand.u32 %s105, 1
          %s714 = smul.addr %s713, 64
          %s715 = scalar_lea.vmem [#allocation9], %s714
          %s716 = smul.u32 16, %s48
          %s718 = ssub.s32 1024, 1024
          %719 = vsyncadd %s712, %s718
          %s720 = smul.addr %s716, 64
          %s721 = scalar_lea.hbm %s4, %s720
          %s722 = sshll.u32 %s715, 4
          %s723 = int_to_ptr.vmem [resolvable:$true] %s722
          %728 = dma.hbm_to_vmem [thread:$0]  %s721, 1024, %s723, %s712, 64, 64, 4
        $region96: #{tpu_custom_call.1} parent=87 // pred_fallthru
          _
      $region88: #{tpu_custom_call.1} parent=5 // pred_fallthru
        _
      %p729 = scmp.le.s32.totalorder 1, %s48
      %p730 = scmp.lt.s32.totalorder %s48, 7
      %p731 = pnand %p729, %p730
      %p732 = pneg %p731
      // Predicated region
      $region97: #{tpu_custom_call.1} parent=5 // pred_check
        _
      $region98: #{tpu_custom_call.1} parent=5 // pred_check_branch
        %734 = sbr.rel (%p731) target = $region100
      $region99: #{tpu_custom_call.1} parent=5 // pred_region
        %s735 = ssub.s32 %s48, 1
        %s736 = sand.u32 %s108, 1
        %s737 = scalar_lea.sflag [#allocation10], %s736
        %s738 = sand.u32 %s108, 1
        %s739 = smul.addr %s738, 64
        %s740 = scalar_lea.vmem [#allocation9], %s739
        // Predicated region
        $region101: #{tpu_custom_call.1} parent=99 // pred_check
          %p741 = pneg %p121
        $region102: #{tpu_custom_call.1} parent=99 // pred_check_branch
          %743 = sbr.rel (%p741) target = $region104
        $region103: #{tpu_custom_call.1} parent=99 // pred_region
          %744 = dma.done %s737, 1024
        $region104: #{tpu_custom_call.1} parent=99 // pred_fallthru
          _
        // Predicated region
        $region105: #{tpu_custom_call.1} parent=99 // pred_check
          %p745 = pneg %p163
        $region106: #{tpu_custom_call.1} parent=99 // pred_check_branch
          %747 = sbr.rel (%p745) target = $region108
        $region107: #{tpu_custom_call.1} parent=99 // pred_region
          %748 = dma.done [#allocation13], 16
        $region108: #{tpu_custom_call.1} parent=99 // pred_fallthru
          _
        // Predicated region
        $region109: #{tpu_custom_call.1} parent=99 // pred_check
          %p749 = pneg %p184
        $region110: #{tpu_custom_call.1} parent=99 // pred_check_branch
          %751 = sbr.rel (%p749) target = $region112
        $region111: #{tpu_custom_call.1} parent=99 // pred_region
          %752 = dma.done [#allocation13], 128
        $region112: #{tpu_custom_call.1} parent=99 // pred_fallthru
          _
        // Predicated region
        $region113: #{tpu_custom_call.1} parent=99 // pred_check
          %p753 = pneg %p247
        $region114: #{tpu_custom_call.1} parent=99 // pred_check_branch
          %755 = sbr.rel (%p753) target = $region116
        $region115: #{tpu_custom_call.1} parent=99 // pred_region
          %756 = dma.done [#allocation16], 1024
        $region116: #{tpu_custom_call.1} parent=99 // pred_fallthru
          _
        // Predicated region
        $region117: #{tpu_custom_call.1} parent=99 // pred_check
          %p757 = pneg %p289
        $region118: #{tpu_custom_call.1} parent=99 // pred_check_branch
          %759 = sbr.rel (%p757) target = $region120
        $region119: #{tpu_custom_call.1} parent=99 // pred_region
          %760 = dma.done [#allocation16], 1024
        $region120: #{tpu_custom_call.1} parent=99 // pred_fallthru
          _
        // Predicated region
        $region121: #{tpu_custom_call.1} parent=99 // pred_check
          %p761 = pneg %p310
        $region122: #{tpu_custom_call.1} parent=99 // pred_check_branch
          %763 = sbr.rel (%p761) target = $region124
        $region123: #{tpu_custom_call.1} parent=99 // pred_region
          %764 = dma.done [#allocation19], 16
        $region124: #{tpu_custom_call.1} parent=99 // pred_fallthru
          _
        // Predicated region
        $region125: #{tpu_custom_call.1} parent=99 // pred_check
          %p765 = pneg %p331
        $region126: #{tpu_custom_call.1} parent=99 // pred_check_branch
          %767 = sbr.rel (%p765) target = $region128
        $region127: #{tpu_custom_call.1} parent=99 // pred_region
          %768 = dma.done [#allocation19], 64
        $region128: #{tpu_custom_call.1} parent=99 // pred_fallthru
          _
        // Predicated region
        $region129: #{tpu_custom_call.1} parent=99 // pred_check
          %p769 = pneg %p373
        $region130: #{tpu_custom_call.1} parent=99 // pred_check_branch
          %771 = sbr.rel (%p769) target = $region132
        $region131: #{tpu_custom_call.1} parent=99 // pred_region
          %772 = dma.done [#allocation22], 1024
        $region132: #{tpu_custom_call.1} parent=99 // pred_fallthru
          _
        %s773 = smul.u32 2, %s53
        %p774 = scmp.lt.s32.totalorder %s773, 11
        %s775 = scalar_select %p774, %s773, 11
        %s776 = smul.addr %s775, 4
        %s777 = scalar_lea.vmem %s2, %s776
        %p778 = pneg %p74
        %p779 = pneg %p71
        %p780 = pneg %p95
        %p781 = pneg %p92
        %s782 = sand.u32 %s108, 1
        %s783 = scalar_lea.sflag [#allocation10], %s782
        %s784 = sand.u32 %s108, 1
        %s785 = smul.addr %s784, 64
        %s786 = scalar_lea.vmem [#allocation9], %s785
        %p787 = pneg %p121
        %p788 = pneg %p118
        %p789 = pneg %p142
        %p790 = pneg %p139
        %p791 = pneg %p163
        %p792 = pneg %p160
        %p793 = pneg %p184
        %p794 = pneg %p181
        %p795 = pneg %p205
        %p796 = pneg %p202
        %p797 = pneg %p226
        %p798 = pneg %p223
        %p799 = pneg %p247
        %p800 = pneg %p244
        %p801 = pneg %p268
        %p802 = pneg %p265
        %p803 = pneg %p289
        %p804 = pneg %p286
        %p805 = pneg %p310
        %p806 = pneg %p307
        %p807 = pneg %p331
        %p808 = pneg %p328
        %p809 = pneg %p352
        %p810 = pneg %p349
        %p811 = pneg %p373
        %p812 = pneg %p370
        %p813 = pneg %p394
        %p814 = pneg %p391
        %p815 = pneg %p415
        %p816 = pneg %p412
        %p817 = pneg %p436
        %p818 = pneg %p433
        %p819 = pneg %p457
        %p820 = pneg %p454
        %p821 = pneg %p478
        %p822 = pneg %p475
        %p823 = pneg %p499
        %p824 = pneg %p496
        %p825 = pneg %p520
        %p826 = pneg %p517
        %p827 = pneg %p541
        %p828 = pneg %p538
        %p829 = pneg %p562
        %p830 = pneg %p559
        %s831 = smul.u32 2, %s53
        %p832 = scmp.lt.s32.totalorder %s831, 11
        %s833 = scalar_select %p832, %s831, 11
        %s834 = smul.addr %s833, 4
        %s835 = scalar_lea.vmem %s2, %s834
        %s836 = smul.u32 2, %s53
        %s837 = smul.u32 16, %s53
        %v839 = vld [vmem:[%s3] sm:$0xf]
        %v840 = vld [vmem:[%s3 + $0x4] sm:$0xf]
        %p841 = scmp.eq.s32.totalorder %s53, 0
        // Predicated region
        $region133: #{tpu_custom_call.1} parent=99 // pred_check
          %p842 = pneg %p841
        $region134: #{tpu_custom_call.1} parent=99 // pred_check_branch
          %844 = sbr.rel (%p842) target = $region136
        $region135: #{tpu_custom_call.1} parent=99 // pred_region
          %v845 = vld [vmem:[%s5] sm:$0xf]
          %v846 = vld [vmem:[%s5 + $0x4] sm:$0xf]
          %v847 = vld [vmem:[%s5 + $0x8] sm:$0xf]
          %v848 = vld [vmem:[%s5 + $0xc] sm:$0xf]
          %v849 = vld [vmem:[%s5 + $0x10] sm:$0xf]
          %v850 = vld [vmem:[%s5 + $0x14] sm:$0xf]
          %v851 = vld [vmem:[%s5 + $0x18] sm:$0xf]
          %v852 = vld [vmem:[%s5 + $0x1c] sm:$0xf]
          %v853 = vld [vmem:[%s5 + $0x20] sm:$0xf]
          %v854 = vld [vmem:[%s5 + $0x24] sm:$0xf]
          %v855 = vld [vmem:[%s5 + $0x28] sm:$0xf]
          %v856 = vld [vmem:[%s5 + $0x2c] sm:$0xf]
          %v857 = vld [vmem:[%s5 + $0x30] sm:$0xf]
          %v858 = vld [vmem:[%s5 + $0x34] sm:$0xf]
          %v859 = vld [vmem:[%s5 + $0x38] sm:$0xf]
          %v860 = vld [vmem:[%s5 + $0x3c] sm:$0xf]
          %v861 = vld [vmem:[#allocation12] sm:$0x1]
          %v863 = vlaneseq
          %v864 = vshrl.u32 %v863, 7
          %v865 = vsub.s32 0, %v864
          %v866 = vrot.slane %v861, %v865
          %v870 = vunpack.c.l.b16 %v839
          %v871 = vunpack.c.l.b16 %v840
          %v872 = vpack.c.b16 %v871, %v870
          %v890 = vunpack.c.l.b16 %v845
          %v891 = vunpack.c.l.b16 %v846
          %v892 = vunpack.c.l.b16 %v847
          %v893 = vunpack.c.l.b16 %v848
          %v894 = vunpack.c.l.b16 %v849
          %v895 = vunpack.c.l.b16 %v850
          %v896 = vunpack.c.l.b16 %v851
          %v897 = vunpack.c.l.b16 %v852
          %v898 = vunpack.c.l.b16 %v853
          %v899 = vunpack.c.l.b16 %v854
          %v900 = vunpack.c.l.b16 %v855
          %v901 = vunpack.c.l.b16 %v856
          %v902 = vunpack.c.l.b16 %v857
          %v903 = vunpack.c.l.b16 %v858
          %v904 = vunpack.c.l.b16 %v859
          %v905 = vunpack.c.l.b16 %v860
          %v906 = vpack.c.b16 %v891, %v890
          %v907 = vpack.c.b16 %v893, %v892
          %v908 = vpack.c.b16 %v895, %v894
          %v909 = vpack.c.b16 %v897, %v896
          %v910 = vpack.c.b16 %v899, %v898
          %v911 = vpack.c.b16 %v901, %v900
          %v912 = vpack.c.b16 %v903, %v902
          %v913 = vpack.c.b16 %v905, %v904
          %922 = vmatprep.subr.bf16.mxu0 0
          %923 = vmatpush1.bf16.msra.mxu0 %v913
          %924 = vmatprep.subr.bf16.mxu0 0
          %925 = vmatpush1.bf16.msra.mxu0 %v912
          %926 = vmatprep.subr.bf16.mxu0 0
          %927 = vmatpush1.bf16.msra.mxu0 %v911
          %928 = vmatprep.subr.bf16.mxu0 0
          %929 = vmatpush1.bf16.msra.mxu0 %v910
          %930 = vmatprep.subr.bf16.mxu0 0
          %931 = vmatpush1.bf16.msra.mxu0 %v909
          %932 = vmatprep.subr.bf16.mxu0 0
          %933 = vmatpush1.bf16.msra.mxu0 %v908
          %934 = vmatprep.subr.bf16.mxu0 0
          %935 = vmatpush1.bf16.msra.mxu0 %v907
          %936 = vmatprep.subr.bf16.mxu0 0
          %937 = vmatpush1.bf16.msra.mxu0 %v906
          %938 = vmatprep.subr.bf16.mxu0 0
          %939 = vmatpush2.bf16.msra.mxu0 0
          %940 = vmatprep.subr.bf16.mxu0 0
          %941 = vmatpush2.bf16.msra.mxu0 0
          %942 = vmatprep.subr.bf16.mxu0 0
          %943 = vmatpush2.bf16.msra.mxu0 0
          %944 = vmatprep.subr.bf16.mxu0 0
          %945 = vmatpush2.bf16.msra.mxu0 0
          %946 = vmatprep.subr.bf16.mxu0 0
          %947 = vmatpush2.bf16.msra.mxu0 0
          %948 = vmatprep.subr.bf16.mxu0 0
          %949 = vmatpush2.bf16.msra.mxu0 0
          %950 = vmatprep.subr.bf16.mxu0 0
          %951 = vmatpush2.bf16.msra.mxu0 0
          %952 = vmatprep.subr.bf16.mxu0 0
          %953 = vmatpush2.bf16.msra.mxu0 0
          %954 = vmatprep.mubr.bf16.mxu0 0
          %955 = vmatmul.mubr.bf16.gmra.mxu0 %v872
          %v956 = vpop.f32.mrf.mxu0
          %v957 = vadd.f32 %v866, %v956
          %v958 = vpop.f32.mrf.mxu0
          %v959 = vpop.f32.mrf.mxu0
          %v960 = vadd.f32 %v866, %v959
          %v961 = vpop.f32.mrf.mxu0
          %962 = vdwg.mxu0
          %963 = vst [vmem:[#allocation2] sm:$0xff] %v957
          %964 = vst [vmem:[#allocation2 + $0x8] sm:$0xff] %v960
        $region136: #{tpu_custom_call.1} parent=99 // pred_fallthru
          _
        %v965 = vld [vmem:[%s835] sm:$0xf]
        %v966 = vld [vmem:[%s835 + $0x4] sm:$0xf]
        %v969 = vunpack.c.l.b16 %v965
        %v970 = vunpack.c.l.b16 %v966
        %v971 = vpack.c.b16 %v970, %v969
        %v974 = vunpack.c.l.b16 %v839
        %v975 = vunpack.c.l.b16 %v840
        %v976 = vpack.c.b16 %v975, %v974
        %vm978 = vcmask 130048
        %v980 = vsel %vm978, %v971, 0
        %982 = vmatprep.subr.bf16.mxu0 0
        %983 = vmatpush1.bf16.msra.mxu0 0
        %984 = vmatprep.subr.bf16.mxu0 0
        %985 = vmatpush1.bf16.msra.mxu0 0
        %986 = vmatprep.subr.bf16.mxu0 0
        %987 = vmatpush1.bf16.msra.mxu0 0
        %988 = vmatprep.subr.bf16.mxu0 0
        %989 = vmatpush1.bf16.msra.mxu0 0
        %990 = vmatprep.subr.bf16.mxu0 0
        %991 = vmatpush1.bf16.msra.mxu0 0
        %992 = vmatprep.subr.bf16.mxu0 0
        %993 = vmatpush1.bf16.msra.mxu0 0
        %994 = vmatprep.subr.bf16.mxu0 0
        %995 = vmatpush1.bf16.msra.mxu0 0
        %996 = vmatprep.subr.bf16.mxu0 0
        %997 = vmatpush1.bf16.msra.mxu0 %v976
        %998 = vmatprep.subr.bf16.mxu0 0
        %999 = vmatpush2.bf16.msra.mxu0 0
        %1000 = vmatprep.subr.bf16.mxu0 0
        %1001 = vmatpush2.bf16.msra.mxu0 0
        %1002 = vmatprep.subr.bf16.mxu0 0
        %1003 = vmatpush2.bf16.msra.mxu0 0
        %1004 = vmatprep.subr.bf16.mxu0 0
        %1005 = vmatpush2.bf16.msra.mxu0 0
        %1006 = vmatprep.subr.bf16.mxu0 0
        %1007 = vmatpush2.bf16.msra.mxu0 0
        %1008 = vmatprep.subr.bf16.mxu0 0
        %1009 = vmatpush2.bf16.msra.mxu0 0
        %1010 = vmatprep.subr.bf16.mxu0 0
        %1011 = vmatpush2.bf16.msra.mxu0 0
        %1012 = vmatprep.subr.bf16.mxu0 0
        %1013 = vmatpush2.bf16.msra.mxu0 0
        %1014 = vmatprep.mubr.bf16.mxu0 0
        %1015 = vmatmul.mubr.bf16.gmra.mxu0 %v980
        %v1016 = vpop.f32.mrf.mxu0
        %v1017 = vadd.f32 0.0, %v1016
        %v1018 = vpop.f32.mrf.mxu0
        %v1019 = vpop.f32.mrf.mxu0
        %v1020 = vadd.f32 0.0, %v1019
        %v1021 = vpop.f32.mrf.mxu0
        %1022 = vdwg.mxu0
        %v1023 = vld [vmem:[#allocation2] sm:$0xff]
        %v1024 = vld [vmem:[#allocation2 + $0x8] sm:$0xff]
        %v1025 = vpack.c.bf16 %v1020, %v1017
        %v1026 = vld [vmem:[%s740] sm:$0xf]
        %v1027 = vld [vmem:[%s740 + $0x4] sm:$0xf]
        %v1028 = vld [vmem:[%s740 + $0x8] sm:$0xf]
        %v1029 = vld [vmem:[%s740 + $0xc] sm:$0xf]
        %v1030 = vld [vmem:[%s740 + $0x10] sm:$0xf]
        %v1031 = vld [vmem:[%s740 + $0x14] sm:$0xf]
        %v1032 = vld [vmem:[%s740 + $0x18] sm:$0xf]
        %v1033 = vld [vmem:[%s740 + $0x1c] sm:$0xf]
        %v1034 = vld [vmem:[%s740 + $0x20] sm:$0xf]
        %v1035 = vld [vmem:[%s740 + $0x24] sm:$0xf]
        %v1036 = vld [vmem:[%s740 + $0x28] sm:$0xf]
        %v1037 = vld [vmem:[%s740 + $0x2c] sm:$0xf]
        %v1038 = vld [vmem:[%s740 + $0x30] sm:$0xf]
        %v1039 = vld [vmem:[%s740 + $0x34] sm:$0xf]
        %v1040 = vld [vmem:[%s740 + $0x38] sm:$0xf]
        %v1041 = vld [vmem:[%s740 + $0x3c] sm:$0xf]
        %v1058 = vunpack.c.l.b16 %v1026
        %v1059 = vunpack.c.l.b16 %v1027
        %v1060 = vunpack.c.l.b16 %v1028
        %v1061 = vunpack.c.l.b16 %v1029
        %v1062 = vunpack.c.l.b16 %v1030
        %v1063 = vunpack.c.l.b16 %v1031
        %v1064 = vunpack.c.l.b16 %v1032
        %v1065 = vunpack.c.l.b16 %v1033
        %v1066 = vunpack.c.l.b16 %v1034
        %v1067 = vunpack.c.l.b16 %v1035
        %v1068 = vunpack.c.l.b16 %v1036
        %v1069 = vunpack.c.l.b16 %v1037
        %v1070 = vunpack.c.l.b16 %v1038
        %v1071 = vunpack.c.l.b16 %v1039
        %v1072 = vunpack.c.l.b16 %v1040
        %v1073 = vunpack.c.l.b16 %v1041
        %v1074 = vpack.c.b16 %v1059, %v1058
        %v1075 = vpack.c.b16 %v1061, %v1060
        %v1076 = vpack.c.b16 %v1063, %v1062
        %v1077 = vpack.c.b16 %v1065, %v1064
        %v1078 = vpack.c.b16 %v1067, %v1066
        %v1079 = vpack.c.b16 %v1069, %v1068
        %v1080 = vpack.c.b16 %v1071, %v1070
        %v1081 = vpack.c.b16 %v1073, %v1072
        %1090 = vmatprep.subr.bf16.mxu0 0
        %1091 = vmatpush1.bf16.msra.mxu0 %v1081
        %1092 = vmatprep.subr.bf16.mxu0 0
        %1093 = vmatpush1.bf16.msra.mxu0 %v1080
        %1094 = vmatprep.subr.bf16.mxu0 0
        %1095 = vmatpush1.bf16.msra.mxu0 %v1079
        %1096 = vmatprep.subr.bf16.mxu0 0
        %1097 = vmatpush1.bf16.msra.mxu0 %v1078
        %1098 = vmatprep.subr.bf16.mxu0 0
        %1099 = vmatpush1.bf16.msra.mxu0 %v1077
        %1100 = vmatprep.subr.bf16.mxu0 0
        %1101 = vmatpush1.bf16.msra.mxu0 %v1076
        %1102 = vmatprep.subr.bf16.mxu0 0
        %1103 = vmatpush1.bf16.msra.mxu0 %v1075
        %1104 = vmatprep.subr.bf16.mxu0 0
        %1105 = vmatpush1.bf16.msra.mxu0 %v1074
        %1106 = vmatprep.subr.bf16.mxu0 0
        %1107 = vmatpush2.bf16.msra.mxu0 0
        %1108 = vmatprep.subr.bf16.mxu0 0
        %1109 = vmatpush2.bf16.msra.mxu0 0
        %1110 = vmatprep.subr.bf16.mxu0 0
        %1111 = vmatpush2.bf16.msra.mxu0 0
        %1112 = vmatprep.subr.bf16.mxu0 0
        %1113 = vmatpush2.bf16.msra.mxu0 0
        %1114 = vmatprep.subr.bf16.mxu0 0
        %1115 = vmatpush2.bf16.msra.mxu0 0
        %1116 = vmatprep.subr.bf16.mxu0 0
        %1117 = vmatpush2.bf16.msra.mxu0 0
        %1118 = vmatprep.subr.bf16.mxu0 0
        %1119 = vmatpush2.bf16.msra.mxu0 0
        %1120 = vmatprep.subr.bf16.mxu0 0
        %1121 = vmatpush2.bf16.msra.mxu0 0
        %1122 = vmatprep.mubr.bf16.mxu0 0
        %1123 = vmatmul.mubr.bf16.gmra.mxu0 %v1025
        %v1124 = vpop.f32.mrf.mxu0
        %v1125 = vadd.f32 0.0, %v1124
        %v1126 = vpop.f32.mrf.mxu0
        %v1127 = vpop.f32.mrf.mxu0
        %v1128 = vadd.f32 0.0, %v1127
        %v1129 = vpop.f32.mrf.mxu0
        %1130 = vdwg.mxu0
        %v1131 = vadd.f32 %v1023, %v1125
        %v1132 = vadd.f32 %v1024, %v1128
        %1133 = vst [vmem:[#allocation2] sm:$0xff] %v1131
        %1134 = vst [vmem:[#allocation2 + $0x8] sm:$0xff] %v1132
        %p1135 = scmp.eq.s32.totalorder %s53, 5
        // Predicated region
        $region137: #{tpu_custom_call.1} parent=99 // pred_check
          %p1136 = pneg %p1135
        $region138: #{tpu_custom_call.1} parent=99 // pred_check_branch
          %1138 = sbr.rel (%p1136) target = $region140
        $region139: #{tpu_custom_call.1} parent=99 // pred_region
          %v1139 = vld [vmem:[#allocation2] sm:$0xff]
          %v1140 = vld [vmem:[#allocation2 + $0x8] sm:$0xff]
          %v1141 = vmax.f32 %v1139, 0.0
          %v1142 = vmax.f32 %v1140, 0.0
          %v1143 = vpack.c.bf16 %v1142, %v1141
          %v1144 = vld [vmem:[#allocation14] sm:$0xf]
          %v1145 = vld [vmem:[#allocation14 + $0x4] sm:$0xf]
          %v1148 = vunpack.c.l.b16 %v1144
          %v1149 = vunpack.c.l.b16 %v1145
          %v1150 = vpack.c.b16 %v1149, %v1148
          %v1152 = vsel %vm978, %v1150, 0
          %1154 = vmatprep.subr.bf16.mxu0 0
          %1155 = vmatpush1.bf16.msra.mxu0 0
          %1156 = vmatprep.subr.bf16.mxu0 0
          %1157 = vmatpush1.bf16.msra.mxu0 0
          %1158 = vmatprep.subr.bf16.mxu0 0
          %1159 = vmatpush1.bf16.msra.mxu0 0
          %1160 = vmatprep.subr.bf16.mxu0 0
          %1161 = vmatpush1.bf16.msra.mxu0 0
          %1162 = vmatprep.subr.bf16.mxu0 0
          %1163 = vmatpush1.bf16.msra.mxu0 0
          %1164 = vmatprep.subr.bf16.mxu0 0
          %1165 = vmatpush1.bf16.msra.mxu0 0
          %1166 = vmatprep.subr.bf16.mxu0 0
          %1167 = vmatpush1.bf16.msra.mxu0 0
          %1168 = vmatprep.subr.bf16.mxu0 0
          %1169 = vmatpush1.bf16.msra.mxu0 %v1143
          %1170 = vmatprep.subr.bf16.mxu0 0
          %1171 = vmatpush2.bf16.msra.mxu0 0
          %1172 = vmatprep.subr.bf16.mxu0 0
          %1173 = vmatpush2.bf16.msra.mxu0 0
          %1174 = vmatprep.subr.bf16.mxu0 0
          %1175 = vmatpush2.bf16.msra.mxu0 0
          %1176 = vmatprep.subr.bf16.mxu0 0
          %1177 = vmatpush2.bf16.msra.mxu0 0
          %1178 = vmatprep.subr.bf16.mxu0 0
          %1179 = vmatpush2.bf16.msra.mxu0 0
          %1180 = vmatprep.subr.bf16.mxu0 0
          %1181 = vmatpush2.bf16.msra.mxu0 0
          %1182 = vmatprep.subr.bf16.mxu0 0
          %1183 = vmatpush2.bf16.msra.mxu0 0
          %1184 = vmatprep.subr.bf16.mxu0 0
          %1185 = vmatpush2.bf16.msra.mxu0 0
          %1186 = vmatprep.mubr.bf16.mxu0 0
          %1187 = vmatmul.mubr.bf16.gmra.mxu0 %v1152
          %v1188 = vpop.f32.mrf.mxu0
          %v1189 = vadd.f32 0.0, %v1188
          %v1190 = vpop.f32.mrf.mxu0
          %v1191 = vpop.f32.mrf.mxu0
          %v1192 = vadd.f32 0.0, %v1191
          %v1193 = vpop.f32.mrf.mxu0
          %1194 = vdwg.mxu0
          %v1195 = vld [vmem:[%s8] sm:$0xff]
          %v1196 = vld [vmem:[%s8 + $0x8] sm:$0xff]
          %1198 = vset.pattern.permute.xlu0 0
          %1199 = vperm.xlu0 %1198, %v1195
          %v1200 = vpop.permute.xlu0 %1199
          %1203 = vset.pattern.permute.xlu0 0
          %1204 = vperm.xlu0 %1203, %v1196
          %v1205 = vpop.permute.xlu0 %1204
          %v1207 = vmul.f32 %v1189, %v1200
          %v1208 = vmul.f32 %v1192, %v1205
          %v1209 = vpack.c.bf16 %v1208, %v1207
          %v1210 = vld [vmem:[%s9] sm:$0xf]
          %v1211 = vld [vmem:[%s9 + $0x4] sm:$0xf]
          %v1212 = vld [vmem:[%s9 + $0x8] sm:$0xf]
          %v1213 = vld [vmem:[%s9 + $0xc] sm:$0xf]
          %v1214 = vld [vmem:[#allocation15] sm:$0xf]
          %v1215 = vld [vmem:[#allocation15 + $0x4] sm:$0xf]
          %v1216 = vld [vmem:[#allocation15 + $0x8] sm:$0xf]
          %v1217 = vld [vmem:[#allocation15 + $0xc] sm:$0xf]
          %v1218 = vld [vmem:[#allocation15 + $0x10] sm:$0xf]
          %v1219 = vld [vmem:[#allocation15 + $0x14] sm:$0xf]
          %v1220 = vld [vmem:[#allocation15 + $0x18] sm:$0xf]
          %v1221 = vld [vmem:[#allocation15 + $0x1c] sm:$0xf]
          %v1222 = vld [vmem:[#allocation15 + $0x20] sm:$0xf]
          %v1223 = vld [vmem:[#allocation15 + $0x24] sm:$0xf]
          %v1224 = vld [vmem:[#allocation15 + $0x28] sm:$0xf]
          %v1225 = vld [vmem:[#allocation15 + $0x2c] sm:$0xf]
          %v1226 = vld [vmem:[#allocation15 + $0x30] sm:$0xf]
          %v1227 = vld [vmem:[#allocation15 + $0x34] sm:$0xf]
          %v1228 = vld [vmem:[#allocation15 + $0x38] sm:$0xf]
          %v1229 = vld [vmem:[#allocation15 + $0x3c] sm:$0xf]
          %v1230 = vld [vmem:[%s11] sm:$0x1]
          %v1231 = vld [vmem:[#allocation17] sm:$0xf]
          %v1232 = vld [vmem:[#allocation17 + $0x4] sm:$0xf]
          %v1233 = vld [vmem:[#allocation17 + $0x8] sm:$0xf]
          %v1234 = vld [vmem:[#allocation17 + $0xc] sm:$0xf]
          %v1235 = vld [vmem:[#allocation17 + $0x10] sm:$0xf]
          %v1236 = vld [vmem:[#allocation17 + $0x14] sm:$0xf]
          %v1237 = vld [vmem:[#allocation17 + $0x18] sm:$0xf]
          %v1238 = vld [vmem:[#allocation17 + $0x1c] sm:$0xf]
          %v1239 = vld [vmem:[#allocation17 + $0x20] sm:$0xf]
          %v1240 = vld [vmem:[#allocation17 + $0x24] sm:$0xf]
          %v1241 = vld [vmem:[#allocation17 + $0x28] sm:$0xf]
          %v1242 = vld [vmem:[#allocation17 + $0x2c] sm:$0xf]
          %v1243 = vld [vmem:[#allocation17 + $0x30] sm:$0xf]
          %v1244 = vld [vmem:[#allocation17 + $0x34] sm:$0xf]
          %v1245 = vld [vmem:[#allocation17 + $0x38] sm:$0xf]
          %v1246 = vld [vmem:[#allocation17 + $0x3c] sm:$0xf]
          %v1247 = vld [vmem:[#allocation18] sm:$0x1]
          %v1252 = vunpack.c.l.b16 %v1210
          %v1253 = vunpack.c.l.b16 %v1211
          %v1254 = vunpack.c.l.b16 %v1212
          %v1255 = vunpack.c.l.b16 %v1213
          %v1256 = vpack.c.b16 %v1253, %v1252
          %v1257 = vpack.c.b16 %v1255, %v1254
          %vm1258 = vcmask 261120
          %v1260 = vsel %vm1258, %v1256, 0
          %v1263 = vsel %vm1258, %v1257, 0
          %1265 = vmatprep.subr.bf16.mxu0 0
          %1266 = vmatpush1.bf16.msra.mxu0 0
          %1267 = vmatprep.subr.bf16.mxu0 0
          %1268 = vmatpush1.bf16.msra.mxu0 0
          %1269 = vmatprep.subr.bf16.mxu0 0
          %1270 = vmatpush1.bf16.msra.mxu0 0
          %1271 = vmatprep.subr.bf16.mxu0 0
          %1272 = vmatpush1.bf16.msra.mxu0 0
          %1273 = vmatprep.subr.bf16.mxu0 0
          %1274 = vmatpush1.bf16.msra.mxu0 0
          %1275 = vmatprep.subr.bf16.mxu0 0
          %1276 = vmatpush1.bf16.msra.mxu0 0
          %1277 = vmatprep.subr.bf16.mxu0 0
          %1278 = vmatpush1.bf16.msra.mxu0 %v1209
          %1279 = vmatprep.subr.bf16.mxu0 0
          %1280 = vmatpush1.bf16.msra.mxu0 %v1209
          %1281 = vmatprep.subr.bf16.mxu0 0
          %1282 = vmatpush2.bf16.msra.mxu0 0
          %1283 = vmatprep.subr.bf16.mxu0 0
          %1284 = vmatpush2.bf16.msra.mxu0 0
          %1285 = vmatprep.subr.bf16.mxu0 0
          %1286 = vmatpush2.bf16.msra.mxu0 0
          %1287 = vmatprep.subr.bf16.mxu0 0
          %1288 = vmatpush2.bf16.msra.mxu0 0
          %1289 = vmatprep.subr.bf16.mxu0 0
          %1290 = vmatpush2.bf16.msra.mxu0 0
          %1291 = vmatprep.subr.bf16.mxu0 0
          %1292 = vmatpush2.bf16.msra.mxu0 0
          %1293 = vmatprep.subr.bf16.mxu0 0
          %1294 = vmatpush2.bf16.msra.mxu0 0
          %1295 = vmatprep.subr.bf16.mxu0 0
          %1296 = vmatpush2.bf16.msra.mxu0 0
          %1297 = vmatprep.mubr.bf16.mxu0 0
          %1298 = vmatmul.mubr.bf16.gmra.mxu0 %v1260
          %v1299 = vpop.f32.mrf.mxu0
          %v1300 = vadd.f32 0.0, %v1299
          %v1301 = vpop.f32.mrf.mxu0
          %v1302 = vpop.f32.mrf.mxu0
          %v1303 = vadd.f32 0.0, %v1302
          %v1304 = vpop.f32.mrf.mxu0
          %1305 = vmatprep.mubr.bf16.mxu0 0
          %1306 = vmatmul.mubr.bf16.gmra.mxu0 %v1263
          %v1307 = vpop.f32.mrf.mxu0
          %v1308 = vadd.f32 0.0, %v1307
          %v1309 = vpop.f32.mrf.mxu0
          %v1310 = vpop.f32.mrf.mxu0
          %v1311 = vadd.f32 0.0, %v1310
          %v1312 = vpop.f32.mrf.mxu0
          %1313 = vdwg.mxu0
          %v1314 = vpack.c.bf16 %v1303, %v1300
          %v1315 = vpack.c.bf16 %v1311, %v1308
          %v1317 = vlaneseq
          %v1318 = vshrl.u32 %v1317, 7
          %v1319 = vsub.s32 0, %v1318
          %v1320 = vrot.slane %v1230, %v1319
          %v1338 = vunpack.c.l.b16 %v1214
          %v1339 = vunpack.c.l.b16 %v1215
          %v1340 = vunpack.c.l.b16 %v1216
          %v1341 = vunpack.c.l.b16 %v1217
          %v1342 = vunpack.c.l.b16 %v1218
          %v1343 = vunpack.c.l.b16 %v1219
          %v1344 = vunpack.c.l.b16 %v1220
          %v1345 = vunpack.c.l.b16 %v1221
          %v1346 = vunpack.c.l.b16 %v1222
          %v1347 = vunpack.c.l.b16 %v1223
          %v1348 = vunpack.c.l.b16 %v1224
          %v1349 = vunpack.c.l.b16 %v1225
          %v1350 = vunpack.c.l.b16 %v1226
          %v1351 = vunpack.c.l.b16 %v1227
          %v1352 = vunpack.c.l.b16 %v1228
          %v1353 = vunpack.c.l.b16 %v1229
          %v1354 = vpack.c.b16 %v1339, %v1338
          %v1355 = vpack.c.b16 %v1341, %v1340
          %v1356 = vpack.c.b16 %v1343, %v1342
          %v1357 = vpack.c.b16 %v1345, %v1344
          %v1358 = vpack.c.b16 %v1347, %v1346
          %v1359 = vpack.c.b16 %v1349, %v1348
          %v1360 = vpack.c.b16 %v1351, %v1350
          %v1361 = vpack.c.b16 %v1353, %v1352
          %1370 = vmatprep.subr.bf16.mxu0 0
          %1371 = vmatpush1.bf16.msra.mxu0 %v1361
          %1372 = vmatprep.subr.bf16.mxu0 0
          %1373 = vmatpush1.bf16.msra.mxu0 %v1360
          %1374 = vmatprep.subr.bf16.mxu0 0
          %1375 = vmatpush1.bf16.msra.mxu0 %v1359
          %1376 = vmatprep.subr.bf16.mxu0 0
          %1377 = vmatpush1.bf16.msra.mxu0 %v1358
          %1378 = vmatprep.subr.bf16.mxu0 0
          %1379 = vmatpush1.bf16.msra.mxu0 %v1357
          %1380 = vmatprep.subr.bf16.mxu0 0
          %1381 = vmatpush1.bf16.msra.mxu0 %v1356
          %1382 = vmatprep.subr.bf16.mxu0 0
          %1383 = vmatpush1.bf16.msra.mxu0 %v1355
          %1384 = vmatprep.subr.bf16.mxu0 0
          %1385 = vmatpush1.bf16.msra.mxu0 %v1354
          %1386 = vmatprep.subr.bf16.mxu0 0
          %1387 = vmatpush2.bf16.msra.mxu0 0
          %1388 = vmatprep.subr.bf16.mxu0 0
          %1389 = vmatpush2.bf16.msra.mxu0 0
          %1390 = vmatprep.subr.bf16.mxu0 0
          %1391 = vmatpush2.bf16.msra.mxu0 0
          %1392 = vmatprep.subr.bf16.mxu0 0
          %1393 = vmatpush2.bf16.msra.mxu0 0
          %1394 = vmatprep.subr.bf16.mxu0 0
          %1395 = vmatpush2.bf16.msra.mxu0 0
          %1396 = vmatprep.subr.bf16.mxu0 0
          %1397 = vmatpush2.bf16.msra.mxu0 0
          %1398 = vmatprep.subr.bf16.mxu0 0
          %1399 = vmatpush2.bf16.msra.mxu0 0
          %1400 = vmatprep.subr.bf16.mxu0 0
          %1401 = vmatpush2.bf16.msra.mxu0 0
          %1402 = vmatprep.mubr.bf16.mxu0 0
          %1403 = vmatmul.mubr.bf16.gmra.mxu0 %v1314
          %v1404 = vpop.f32.mrf.mxu0
          %v1405 = vadd.f32 %v1320, %v1404
          %v1406 = vpop.f32.mrf.mxu0
          %v1407 = vpop.f32.mrf.mxu0
          %v1408 = vadd.f32 %v1320, %v1407
          %v1409 = vpop.f32.mrf.mxu0
          %1410 = vmatprep.mubr.bf16.mxu0 0
          %1411 = vmatmul.mubr.bf16.gmra.mxu0 %v1315
          %v1412 = vpop.f32.mrf.mxu0
          %v1413 = vadd.f32 %v1320, %v1412
          %v1414 = vpop.f32.mrf.mxu0
          %v1415 = vpop.f32.mrf.mxu0
          %v1416 = vadd.f32 %v1320, %v1415
          %v1417 = vpop.f32.mrf.mxu0
          %1418 = vdwg.mxu0
          %v1419 = vmax.f32 %v1405, 0.0
          %v1420 = vmax.f32 %v1408, 0.0
          %v1421 = vmax.f32 %v1413, 0.0
          %v1422 = vmax.f32 %v1416, 0.0
          %v1423 = vpack.c.bf16 %v1420, %v1419
          %v1424 = vpack.c.bf16 %v1422, %v1421
          %1425 = vmatprep.subr.bf16.mxu0 0
          %1426 = vmatpush1.bf16.msra.mxu0 0
          %1427 = vmatprep.subr.bf16.mxu0 0
          %1428 = vmatpush1.bf16.msra.mxu0 0
          %1429 = vmatprep.subr.bf16.mxu0 0
          %1430 = vmatpush1.bf16.msra.mxu0 0
          %1431 = vmatprep.subr.bf16.mxu0 0
          %1432 = vmatpush1.bf16.msra.mxu0 0
          %1433 = vmatprep.subr.bf16.mxu0 0
          %1434 = vmatpush1.bf16.msra.mxu0 0
          %1435 = vmatprep.subr.bf16.mxu0 0
          %1436 = vmatpush1.bf16.msra.mxu0 0
          %1437 = vmatprep.subr.bf16.mxu0 0
          %1438 = vmatpush1.bf16.msra.mxu0 %v1424
          %1439 = vmatprep.subr.bf16.mxu0 0
          %1440 = vmatpush1.bf16.msra.mxu0 %v1423
          %1441 = vmatprep.subr.bf16.mxu0 0
          %1442 = vmatpush2.bf16.msra.mxu0 0
          %1443 = vmatprep.subr.bf16.mxu0 0
          %1444 = vmatpush2.bf16.msra.mxu0 0
          %1445 = vmatprep.subr.bf16.mxu0 0
          %1446 = vmatpush2.bf16.msra.mxu0 0
          %1447 = vmatprep.subr.bf16.mxu0 0
          %1448 = vmatpush2.bf16.msra.mxu0 0
          %1449 = vmatprep.subr.bf16.mxu0 0
          %1450 = vmatpush2.bf16.msra.mxu0 0
          %1451 = vmatprep.subr.bf16.mxu0 0
          %1452 = vmatpush2.bf16.msra.mxu0 0
          %1453 = vmatprep.subr.bf16.mxu0 0
          %1454 = vmatpush2.bf16.msra.mxu0 0
          %1455 = vmatprep.subr.bf16.mxu0 0
          %1456 = vmatpush2.bf16.msra.mxu0 0
          %1457 = vmatprep.mubr.bf16.mxu0 0
          %1458 = vmatmul.mubr.bf16.gmra.mxu0 %v1260
          %v1459 = vpop.f32.mrf.mxu0
          %v1460 = vadd.f32 0.0, %v1459
          %v1461 = vpop.f32.mrf.mxu0
          %v1462 = vpop.f32.mrf.mxu0
          %v1463 = vadd.f32 0.0, %v1462
          %v1464 = vpop.f32.mrf.mxu0
          %1465 = vmatprep.mubr.bf16.mxu0 0
          %1466 = vmatmul.mubr.bf16.gmra.mxu0 %v1263
          %v1467 = vpop.f32.mrf.mxu0
          %v1468 = vadd.f32 0.0, %v1467
          %v1469 = vpop.f32.mrf.mxu0
          %v1470 = vpop.f32.mrf.mxu0
          %v1471 = vadd.f32 0.0, %v1470
          %v1472 = vpop.f32.mrf.mxu0
          %1473 = vdwg.mxu0
          %v1474 = vpack.c.bf16 %v1463, %v1460
          %v1475 = vpack.c.bf16 %v1471, %v1468
          %v1477 = vlaneseq
          %v1478 = vshrl.u32 %v1477, 7
          %v1479 = vsub.s32 0, %v1478
          %v1480 = vrot.slane %v1247, %v1479
          %v1498 = vunpack.c.l.b16 %v1231
          %v1499 = vunpack.c.l.b16 %v1232
          %v1500 = vunpack.c.l.b16 %v1233
          %v1501 = vunpack.c.l.b16 %v1234
          %v1502 = vunpack.c.l.b16 %v1235
          %v1503 = vunpack.c.l.b16 %v1236
          %v1504 = vunpack.c.l.b16 %v1237
          %v1505 = vunpack.c.l.b16 %v1238
          %v1506 = vunpack.c.l.b16 %v1239
          %v1507 = vunpack.c.l.b16 %v1240
          %v1508 = vunpack.c.l.b16 %v1241
          %v1509 = vunpack.c.l.b16 %v1242
          %v1510 = vunpack.c.l.b16 %v1243
          %v1511 = vunpack.c.l.b16 %v1244
          %v1512 = vunpack.c.l.b16 %v1245
          %v1513 = vunpack.c.l.b16 %v1246
          %v1514 = vpack.c.b16 %v1499, %v1498
          %v1515 = vpack.c.b16 %v1501, %v1500
          %v1516 = vpack.c.b16 %v1503, %v1502
          %v1517 = vpack.c.b16 %v1505, %v1504
          %v1518 = vpack.c.b16 %v1507, %v1506
          %v1519 = vpack.c.b16 %v1509, %v1508
          %v1520 = vpack.c.b16 %v1511, %v1510
          %v1521 = vpack.c.b16 %v1513, %v1512
          %1530 = vmatprep.subr.bf16.mxu0 0
          %1531 = vmatpush1.bf16.msra.mxu0 %v1521
          %1532 = vmatprep.subr.bf16.mxu0 0
          %1533 = vmatpush1.bf16.msra.mxu0 %v1520
          %1534 = vmatprep.subr.bf16.mxu0 0
          %1535 = vmatpush1.bf16.msra.mxu0 %v1519
          %1536 = vmatprep.subr.bf16.mxu0 0
          %1537 = vmatpush1.bf16.msra.mxu0 %v1518
          %1538 = vmatprep.subr.bf16.mxu0 0
          %1539 = vmatpush1.bf16.msra.mxu0 %v1517
          %1540 = vmatprep.subr.bf16.mxu0 0
          %1541 = vmatpush1.bf16.msra.mxu0 %v1516
          %1542 = vmatprep.subr.bf16.mxu0 0
          %1543 = vmatpush1.bf16.msra.mxu0 %v1515
          %1544 = vmatprep.subr.bf16.mxu0 0
          %1545 = vmatpush1.bf16.msra.mxu0 %v1514
          %1546 = vmatprep.subr.bf16.mxu0 0
          %1547 = vmatpush2.bf16.msra.mxu0 0
          %1548 = vmatprep.subr.bf16.mxu0 0
          %1549 = vmatpush2.bf16.msra.mxu0 0
          %1550 = vmatprep.subr.bf16.mxu0 0
          %1551 = vmatpush2.bf16.msra.mxu0 0
          %1552 = vmatprep.subr.bf16.mxu0 0
          %1553 = vmatpush2.bf16.msra.mxu0 0
          %1554 = vmatprep.subr.bf16.mxu0 0
          %1555 = vmatpush2.bf16.msra.mxu0 0
          %1556 = vmatprep.subr.bf16.mxu0 0
          %1557 = vmatpush2.bf16.msra.mxu0 0
          %1558 = vmatprep.subr.bf16.mxu0 0
          %1559 = vmatpush2.bf16.msra.mxu0 0
          %1560 = vmatprep.subr.bf16.mxu0 0
          %1561 = vmatpush2.bf16.msra.mxu0 0
          %1562 = vmatprep.mubr.bf16.mxu0 0
          %1563 = vmatmul.mubr.bf16.gmra.mxu0 %v1474
          %v1564 = vpop.f32.mrf.mxu0
          %v1565 = vadd.f32 %v1480, %v1564
          %v1566 = vpop.f32.mrf.mxu0
          %v1567 = vpop.f32.mrf.mxu0
          %v1568 = vadd.f32 %v1480, %v1567
          %v1569 = vpop.f32.mrf.mxu0
          %1570 = vmatprep.mubr.bf16.mxu0 0
          %1571 = vmatmul.mubr.bf16.gmra.mxu0 %v1475
          %v1572 = vpop.f32.mrf.mxu0
          %v1573 = vadd.f32 %v1480, %v1572
          %v1574 = vpop.f32.mrf.mxu0
          %v1575 = vpop.f32.mrf.mxu0
          %v1576 = vadd.f32 %v1480, %v1575
          %v1577 = vpop.f32.mrf.mxu0
          %1578 = vdwg.mxu0
          %v1579 = vadd.f32 %v1565, %v1573
          %v1580 = vadd.f32 %v1568, %v1576
          %v1581 = vmul.f32 %v1579, 0.5
          %v1582 = vmul.f32 %v1580, 0.5
          %v1583 = vpack.c.bf16 %v1582, %v1581
          %v1584 = vld [vmem:[#allocation20] sm:$0xf]
          %v1586 = vsel %vm978, %v1584, 0
          %1588 = vmatprep.subr.bf16.mxu0 0
          %1589 = vmatpush1.bf16.msra.mxu0 0
          %1590 = vmatprep.subr.bf16.mxu0 0
          %1591 = vmatpush1.bf16.msra.mxu0 0
          %1592 = vmatprep.subr.bf16.mxu0 0
          %1593 = vmatpush1.bf16.msra.mxu0 0
          %1594 = vmatprep.subr.bf16.mxu0 0
          %1595 = vmatpush1.bf16.msra.mxu0 0
          %1596 = vmatprep.subr.bf16.mxu0 0
          %1597 = vmatpush1.bf16.msra.mxu0 0
          %1598 = vmatprep.subr.bf16.mxu0 0
          %1599 = vmatpush1.bf16.msra.mxu0 0
          %1600 = vmatprep.subr.bf16.mxu0 0
          %1601 = vmatpush1.bf16.msra.mxu0 0
          %1602 = vmatprep.subr.bf16.mxu0 0
          %1603 = vmatpush1.bf16.msra.mxu0 %v1583
          %1604 = vmatprep.subr.bf16.mxu0 0
          %1605 = vmatpush2.bf16.msra.mxu0 0
          %1606 = vmatprep.subr.bf16.mxu0 0
          %1607 = vmatpush2.bf16.msra.mxu0 0
          %1608 = vmatprep.subr.bf16.mxu0 0
          %1609 = vmatpush2.bf16.msra.mxu0 0
          %1610 = vmatprep.subr.bf16.mxu0 0
          %1611 = vmatpush2.bf16.msra.mxu0 0
          %1612 = vmatprep.subr.bf16.mxu0 0
          %1613 = vmatpush2.bf16.msra.mxu0 0
          %1614 = vmatprep.subr.bf16.mxu0 0
          %1615 = vmatpush2.bf16.msra.mxu0 0
          %1616 = vmatprep.subr.bf16.mxu0 0
          %1617 = vmatpush2.bf16.msra.mxu0 0
          %1618 = vmatprep.subr.bf16.mxu0 0
          %1619 = vmatpush2.bf16.msra.mxu0 0
          %1620 = vmatprep.mubr.bf16.mxu0 0
          %1621 = vmatmul.mubr.bf16.gmra.mxu0 %v1586
          %v1622 = vpop.f32.mrf.mxu0
          %v1623 = vadd.f32 0.0, %v1622
          %v1624 = vpop.f32.mrf.mxu0
          %v1625 = vpop.f32.mrf.mxu0
          %v1626 = vpop.f32.mrf.mxu0
          %1627 = vdwg.mxu0
          %v1628 = vld [vmem:[%s15] sm:$0xff]
          %1630 = vset.pattern.permute.xlu0 0
          %1631 = vperm.xlu0 %1630, %v1628
          %v1632 = vpop.permute.xlu0 %1631
          %v1634 = vmul.f32 %v1623, %v1632
          %v1635 = vpack.c.bf16 %v1634, %v1634
          %v1636 = vld [vmem:[#allocation21] sm:$0xf]
          %v1637 = vld [vmem:[#allocation21 + $0x4] sm:$0xf]
          %v1638 = vld [vmem:[#allocation21 + $0x8] sm:$0xf]
          %v1639 = vld [vmem:[#allocation21 + $0xc] sm:$0xf]
          %v1640 = vld [vmem:[#allocation21 + $0x10] sm:$0xf]
          %v1641 = vld [vmem:[#allocation21 + $0x14] sm:$0xf]
          %v1642 = vld [vmem:[#allocation21 + $0x18] sm:$0xf]
          %v1643 = vld [vmem:[#allocation21 + $0x1c] sm:$0xf]
          %v1644 = vld [vmem:[#allocation21 + $0x20] sm:$0xf]
          %v1645 = vld [vmem:[#allocation21 + $0x24] sm:$0xf]
          %v1646 = vld [vmem:[#allocation21 + $0x28] sm:$0xf]
          %v1647 = vld [vmem:[#allocation21 + $0x2c] sm:$0xf]
          %v1648 = vld [vmem:[#allocation21 + $0x30] sm:$0xf]
          %v1649 = vld [vmem:[#allocation21 + $0x34] sm:$0xf]
          %v1650 = vld [vmem:[#allocation21 + $0x38] sm:$0xf]
          %v1651 = vld [vmem:[#allocation21 + $0x3c] sm:$0xf]
          %v1652 = vld [vmem:[%s17] sm:$0x1]
          %v1654 = vlaneseq
          %v1655 = vshrl.u32 %v1654, 7
          %v1656 = vsub.s32 0, %v1655
          %v1657 = vrot.slane %v1652, %v1656
          %v1675 = vunpack.c.l.b16 %v1636
          %v1676 = vunpack.c.l.b16 %v1637
          %v1677 = vunpack.c.l.b16 %v1638
          %v1678 = vunpack.c.l.b16 %v1639
          %v1679 = vunpack.c.l.b16 %v1640
          %v1680 = vunpack.c.l.b16 %v1641
          %v1681 = vunpack.c.l.b16 %v1642
          %v1682 = vunpack.c.l.b16 %v1643
          %v1683 = vunpack.c.l.b16 %v1644
          %v1684 = vunpack.c.l.b16 %v1645
          %v1685 = vunpack.c.l.b16 %v1646
          %v1686 = vunpack.c.l.b16 %v1647
          %v1687 = vunpack.c.l.b16 %v1648
          %v1688 = vunpack.c.l.b16 %v1649
          %v1689 = vunpack.c.l.b16 %v1650
          %v1690 = vunpack.c.l.b16 %v1651
          %v1691 = vpack.c.b16 %v1676, %v1675
          %v1692 = vpack.c.b16 %v1678, %v1677
          %v1693 = vpack.c.b16 %v1680, %v1679
          %v1694 = vpack.c.b16 %v1682, %v1681
          %v1695 = vpack.c.b16 %v1684, %v1683
          %v1696 = vpack.c.b16 %v1686, %v1685
          %v1697 = vpack.c.b16 %v1688, %v1687
          %v1698 = vpack.c.b16 %v1690, %v1689
          %1707 = vmatprep.subr.bf16.mxu0 0
          %1708 = vmatpush1.bf16.msra.mxu0 %v1698
          %1709 = vmatprep.subr.bf16.mxu0 0
          %1710 = vmatpush1.bf16.msra.mxu0 %v1697
          %1711 = vmatprep.subr.bf16.mxu0 0
          %1712 = vmatpush1.bf16.msra.mxu0 %v1696
          %1713 = vmatprep.subr.bf16.mxu0 0
          %1714 = vmatpush1.bf16.msra.mxu0 %v1695
          %1715 = vmatprep.subr.bf16.mxu0 0
          %1716 = vmatpush1.bf16.msra.mxu0 %v1694
          %1717 = vmatprep.subr.bf16.mxu0 0
          %1718 = vmatpush1.bf16.msra.mxu0 %v1693
          %1719 = vmatprep.subr.bf16.mxu0 0
          %1720 = vmatpush1.bf16.msra.mxu0 %v1692
          %1721 = vmatprep.subr.bf16.mxu0 0
          %1722 = vmatpush1.bf16.msra.mxu0 %v1691
          %1723 = vmatprep.subr.bf16.mxu0 0
          %1724 = vmatpush2.bf16.msra.mxu0 0
          %1725 = vmatprep.subr.bf16.mxu0 0
          %1726 = vmatpush2.bf16.msra.mxu0 0
          %1727 = vmatprep.subr.bf16.mxu0 0
          %1728 = vmatpush2.bf16.msra.mxu0 0
          %1729 = vmatprep.subr.bf16.mxu0 0
          %1730 = vmatpush2.bf16.msra.mxu0 0
          %1731 = vmatprep.subr.bf16.mxu0 0
          %1732 = vmatpush2.bf16.msra.mxu0 0
          %1733 = vmatprep.subr.bf16.mxu0 0
          %1734 = vmatpush2.bf16.msra.mxu0 0
          %1735 = vmatprep.subr.bf16.mxu0 0
          %1736 = vmatpush2.bf16.msra.mxu0 0
          %1737 = vmatprep.subr.bf16.mxu0 0
          %1738 = vmatpush2.bf16.msra.mxu0 0
          %1739 = vmatprep.mubr.bf16.mxu0 0
          %1740 = vmatmul.mubr.bf16.gmra.mxu0 %v1635
          %v1741 = vpop.f32.mrf.mxu0
          %v1742 = vadd.f32 %v1657, %v1741
          %v1743 = vpop.f32.mrf.mxu0
          %v1744 = vpop.f32.mrf.mxu0
          %v1745 = vpop.f32.mrf.mxu0
          %1746 = vdwg.mxu0
          %1747 = vst [vmem:[#allocation24] sm:$0xff] %v1742
          %v1748 = vld [vmem:[%s18] sm:$0xf]
          %v1749 = vld [vmem:[%s19] sm:$0xf]
          %v1750 = vld [vmem:[%s19 + $0x4] sm:$0x1]
          %v1751 = vld [vmem:[%s20] sm:$0x1]
          %v1753 = vlaneseq
          %v1754 = vshrl.u32 %v1753, 7
          %v1755 = vsub.s32 0, %v1754
          %v1756 = vrot.slane %v1751, %v1755
          %v1760 = vunpack.c.l.b16 %v1749
          %v1761 = vunpack.c.l.b16 %v1750
          %v1762 = vpack.c.b16 %v1761, %v1760
          %vm1763 = vcmask 80896
          %v1765 = vsel %vm1763, %v1748, 0
          %vm1767 = vcmask 1044480
          %v1769 = vsel %vm1767, %v1762, 0
          %1771 = vmatprep.subr.bf16.mxu0 0
          %1772 = vmatpush1.bf16.msra.mxu0 0
          %1773 = vmatprep.subr.bf16.mxu0 0
          %1774 = vmatpush1.bf16.msra.mxu0 0
          %1775 = vmatprep.subr.bf16.mxu0 0
          %1776 = vmatpush1.bf16.msra.mxu0 0
          %1777 = vmatprep.subr.bf16.mxu0 0
          %1778 = vmatpush1.bf16.msra.mxu0 0
          %1779 = vmatprep.subr.bf16.mxu0 0
          %1780 = vmatpush1.bf16.msra.mxu0 0
          %1781 = vmatprep.subr.bf16.mxu0 0
          %1782 = vmatpush1.bf16.msra.mxu0 0
          %1783 = vmatprep.subr.bf16.mxu0 0
          %1784 = vmatpush1.bf16.msra.mxu0 0
          %1785 = vmatprep.subr.bf16.mxu0 0
          %1786 = vmatpush1.bf16.msra.mxu0 %v1769
          %1787 = vmatprep.subr.bf16.mxu0 0
          %1788 = vmatpush2.bf16.msra.mxu0 0
          %1789 = vmatprep.subr.bf16.mxu0 0
          %1790 = vmatpush2.bf16.msra.mxu0 0
          %1791 = vmatprep.subr.bf16.mxu0 0
          %1792 = vmatpush2.bf16.msra.mxu0 0
          %1793 = vmatprep.subr.bf16.mxu0 0
          %1794 = vmatpush2.bf16.msra.mxu0 0
          %1795 = vmatprep.subr.bf16.mxu0 0
          %1796 = vmatpush2.bf16.msra.mxu0 0
          %1797 = vmatprep.subr.bf16.mxu0 0
          %1798 = vmatpush2.bf16.msra.mxu0 0
          %1799 = vmatprep.subr.bf16.mxu0 0
          %1800 = vmatpush2.bf16.msra.mxu0 0
          %1801 = vmatprep.subr.bf16.mxu0 0
          %1802 = vmatpush2.bf16.msra.mxu0 0
          %1803 = vmatprep.mubr.bf16.mxu0 0
          %1804 = vmatmul.mubr.bf16.gmra.mxu0 %v1765
          %v1805 = vpop.f32.mrf.mxu0
          %v1806 = vadd.f32 %v1756, %v1805
          %v1807 = vpop.f32.mrf.mxu0
          %v1808 = vpop.f32.mrf.mxu0
          %v1809 = vpop.f32.mrf.mxu0
          %1810 = vdwg.mxu0
          %1811 = vst [vmem:[#allocation3] sm:$0xff] %v1806
          %s1812 = sld [smem:[#allocation7]]
          %s1813 = sld [smem:[#allocation8]]
          %s1814 = scalar_lea.vmem [#allocation24], %s1812
          %v1815 = vld [vmem:[%s1814] sm:$0x1]
          %1816 = vst [vmem:[#allocation4] sm:$0x1] %v1815
          %s1817 = scalar_lea.vmem [#allocation3], %s1813
          %v1818 = vld [vmem:[%s1817] sm:$0x1]
          %1819 = vst [vmem:[#allocation5] sm:$0x1] %v1818
          %s1820 = sld [smem:[#allocation7 + $0x1]]
          %s1821 = sld [smem:[#allocation8 + $0x1]]
          %s1822 = scalar_lea.vmem [#allocation24], %s1820
          %v1823 = vld [vmem:[%s1822] sm:$0x1]
          %1824 = vst [vmem:[#allocation4 + $0x1] sm:$0x1] %v1823
          %s1825 = scalar_lea.vmem [#allocation3], %s1821
          %v1826 = vld [vmem:[%s1825] sm:$0x1]
          %1827 = vst [vmem:[#allocation5 + $0x1] sm:$0x1] %v1826
          %s1828 = sld [smem:[#allocation7 + $0x2]]
          %s1829 = sld [smem:[#allocation8 + $0x2]]
          %s1830 = scalar_lea.vmem [#allocation24], %s1828
          %v1831 = vld [vmem:[%s1830] sm:$0x1]
          %1832 = vst [vmem:[#allocation4 + $0x2] sm:$0x1] %v1831
          %s1833 = scalar_lea.vmem [#allocation3], %s1829
          %v1834 = vld [vmem:[%s1833] sm:$0x1]
          %1835 = vst [vmem:[#allocation5 + $0x2] sm:$0x1] %v1834
          %s1836 = sld [smem:[#allocation7 + $0x3]]
          %s1837 = sld [smem:[#allocation8 + $0x3]]
          %s1838 = scalar_lea.vmem [#allocation24], %s1836
          %v1839 = vld [vmem:[%s1838] sm:$0x1]
          %1840 = vst [vmem:[#allocation4 + $0x3] sm:$0x1] %v1839
          %s1841 = scalar_lea.vmem [#allocation3], %s1837
          %v1842 = vld [vmem:[%s1841] sm:$0x1]
          %1843 = vst [vmem:[#allocation5 + $0x3] sm:$0x1] %v1842
          %s1844 = sld [smem:[#allocation7 + $0x4]]
          %s1845 = sld [smem:[#allocation8 + $0x4]]
          %s1846 = scalar_lea.vmem [#allocation24], %s1844
          %v1847 = vld [vmem:[%s1846] sm:$0x1]
          %1848 = vst [vmem:[#allocation4 + $0x4] sm:$0x1] %v1847
          %s1849 = scalar_lea.vmem [#allocation3], %s1845
          %v1850 = vld [vmem:[%s1849] sm:$0x1]
          %1851 = vst [vmem:[#allocation5 + $0x4] sm:$0x1] %v1850
          %s1852 = sld [smem:[#allocation7 + $0x5]]
          %s1853 = sld [smem:[#allocation8 + $0x5]]
          %s1854 = scalar_lea.vmem [#allocation24], %s1852
          %v1855 = vld [vmem:[%s1854] sm:$0x1]
          %1856 = vst [vmem:[#allocation4 + $0x5] sm:$0x1] %v1855
          %s1857 = scalar_lea.vmem [#allocation3], %s1853
          %v1858 = vld [vmem:[%s1857] sm:$0x1]
          %1859 = vst [vmem:[#allocation5 + $0x5] sm:$0x1] %v1858
          %s1860 = sld [smem:[#allocation7 + $0x6]]
          %s1861 = sld [smem:[#allocation8 + $0x6]]
          %s1862 = scalar_lea.vmem [#allocation24], %s1860
          %v1863 = vld [vmem:[%s1862] sm:$0x1]
          %1864 = vst [vmem:[#allocation4 + $0x6] sm:$0x1] %v1863
          %s1865 = scalar_lea.vmem [#allocation3], %s1861
          %v1866 = vld [vmem:[%s1865] sm:$0x1]
          %1867 = vst [vmem:[#allocation5 + $0x6] sm:$0x1] %v1866
          %s1868 = sld [smem:[#allocation7 + $0x7]]
          %s1869 = sld [smem:[#allocation8 + $0x7]]
          %s1870 = scalar_lea.vmem [#allocation24], %s1868
          %v1871 = vld [vmem:[%s1870] sm:$0x1]
          %1872 = vst [vmem:[#allocation4 + $0x7] sm:$0x1] %v1871
          %s1873 = scalar_lea.vmem [#allocation3], %s1869
          %v1874 = vld [vmem:[%s1873] sm:$0x1]
          %1875 = vst [vmem:[#allocation5 + $0x7] sm:$0x1] %v1874
          %v1876 = vld [vmem:[#allocation4] sm:$0xff]
          %v1877 = vld [vmem:[#allocation5] sm:$0xff]
          %vm1878 = vcmp.gt.f32.partialorder %v1876, 0.0
          %v1879 = vmul.f32 %v1876, 0.01
          %v1880 = vsel %vm1878, %v1876, %v1879
          %vm1881 = vcmp.gt.f32.partialorder %v1877, 0.0
          %v1882 = vmul.f32 %v1877, 0.01
          %v1883 = vsel %vm1881, %v1877, %v1882
          %v1884 = vadd.f32 %v1880, %v1883
          %v1885 = vmul.f32 %v1884, 0.5
          %1886 = vst [vmem:[#allocation23] sm:$0xff] %v1885
          %1887 = vmatprep.subr.mxu0 0.0
          %1888 = vmatpush1.xpose.msra.mxu0 0.0
          %1889 = vmatprep.subr.mxu0 0.0
          %1890 = vmatpush1.xpose.msra.mxu0 0.0
          %1891 = vmatprep.subr.mxu0 0.0
          %1892 = vmatpush1.xpose.msra.mxu0 0.0
          %1893 = vmatprep.subr.mxu0 0.0
          %1894 = vmatpush1.xpose.msra.mxu0 0.0
          %1895 = vmatprep.subr.mxu0 0.0
          %1896 = vmatpush1.xpose.msra.mxu0 0.0
          %1897 = vmatprep.subr.mxu0 0.0
          %1898 = vmatpush1.xpose.msra.mxu0 0.0
          %1899 = vmatprep.subr.mxu0 0.0
          %1900 = vmatpush1.xpose.msra.mxu0 0.0
          %1901 = vmatprep.subr.mxu0 0.0
          %1902 = vmatpush1.xpose.msra.mxu0 0.0
          %1903 = vmatprep.subr.mxu0 0.0
          %1904 = vmatpush1.xpose.msra.mxu0 0.0
          %1905 = vmatprep.subr.mxu0 0.0
          %1906 = vmatpush1.xpose.msra.mxu0 0.0
          %1907 = vmatprep.subr.mxu0 0.0
          %1908 = vmatpush1.xpose.msra.mxu0 0.0
          %1909 = vmatprep.subr.mxu0 0.0
          %1910 = vmatpush1.xpose.msra.mxu0 0.0
          %1911 = vmatprep.subr.mxu0 0.0
          %1912 = vmatpush1.xpose.msra.mxu0 0.0
          %1913 = vmatprep.subr.mxu0 0.0
          %1914 = vmatpush1.xpose.msra.mxu0 0.0
          %1915 = vmatprep.subr.mxu0 0.0
          %1916 = vmatpush1.xpose.msra.mxu0 0.0
          %1917 = vmatprep.subr.mxu0 0.0
          %1918 = vmatpush1.xpose.msra.mxu0 %v1885
          %1919 = vmatprep.subr.mxu0 0.0
          %1920 = vmatpush2.xpose.msra.mxu0 0.0
          %1921 = vmatprep.subr.mxu0 0.0
          %1922 = vmatpush2.xpose.msra.mxu0 0.0
          %1923 = vmatprep.subr.mxu0 0.0
          %1924 = vmatpush2.xpose.msra.mxu0 0.0
          %1925 = vmatprep.subr.mxu0 0.0
          %1926 = vmatpush2.xpose.msra.mxu0 0.0
          %1927 = vmatprep.subr.mxu0 0.0
          %1928 = vmatpush2.xpose.msra.mxu0 0.0
          %1929 = vmatprep.subr.mxu0 0.0
          %1930 = vmatpush2.xpose.msra.mxu0 0.0
          %1931 = vmatprep.subr.mxu0 0.0
          %1932 = vmatpush2.xpose.msra.mxu0 0.0
          %1933 = vmatprep.subr.mxu0 0.0
          %1934 = vmatpush2.xpose.msra.mxu0 0.0
          %1935 = vmatprep.subr.mxu0 0.0
          %1936 = vmatpush2.xpose.msra.mxu0 0.0
          %1937 = vmatprep.subr.mxu0 0.0
          %1938 = vmatpush2.xpose.msra.mxu0 0.0
          %1939 = vmatprep.subr.mxu0 0.0
          %1940 = vmatpush2.xpose.msra.mxu0 0.0
          %1941 = vmatprep.subr.mxu0 0.0
          %1942 = vmatpush2.xpose.msra.mxu0 0.0
          %1943 = vmatprep.subr.mxu0 0.0
          %1944 = vmatpush2.xpose.msra.mxu0 0.0
          %1945 = vmatprep.subr.mxu0 0.0
          %1946 = vmatpush2.xpose.msra.mxu0 0.0
          %1947 = vmatprep.subr.mxu0 0.0
          %1948 = vmatpush2.xpose.msra.mxu0 0.0
          %1949 = vmatprep.subr.mxu0 0.0
          %1950 = vmatpush2.xpose.msra.mxu0 0.0
          %1951 = vmatprep.mubr.f32.mxu0 0.0
          %1952 = vmatmul.mubr.f32.gmra.mxu0 %v1885
          %v1953 = vpop.f32.mrf.mxu0
          %v1954 = vadd.f32 0.0, %v1953
          %v1955 = vpop.f32.mrf.mxu0
          %1956 = vdwg.mxu0
          %v1957 = vmul.f32 %v1954, %v1954
          %vm1958 = vcmask 64512
          %v1959 = vsel %vm1958, %v1957, 0.0
          %1960 = vadd.xlane.f32.xlu0 %v1959
          %v1961 = vpop.xlane.xlu0 %1960
          %v1962 = vrsqrt.pop %v1961
          %v1963 = vmul.f32 %v1961, %v1962
          %vm1964 = vcmp.eq.f32.partialorder %v1961, inf
          %v1965 = vsel %vm1964, %v1961, %v1963
          %vm1966 = vcmp.eq.f32.partialorder %v1961, 0.0
          %v1967 = vand.u32 %v1961, 2147483648
          %v1968 = vsel %vm1966, %v1967, %v1965
          %v1969 = vmax.f32 %v1968, 1e-12
          %v1970 = vrcp.pop %v1969
          %v1971 = vmul.f32 %v1954, %v1970
          %1972 = vst.msk [vmem:[#allocation26] sm:$0xff] %vm1958, %v1971
          %v1973 = vadd.f32 %v1971, 1e-08
          %v1974 = vsel %vm1958, %v1973, -inf
          %1975 = vmax.xlane.f32.xlu0 %v1974
          %v1976 = vpop.xlane.xlu0 %1975
          %v1977 = vsub.f32 %v1973, %v1976
          %v1978 = vmul.f32 %v1977, 1.442695
          %v1979 = vpow.pop %v1978
          %v1980 = vsel %vm1958, %v1979, 0.0
          %1981 = vadd.xlane.f32.xlu0 %v1980
          %v1982 = vpop.xlane.xlu0 %1981
          %v1983 = vlog2.pop %v1982
          %v1984 = vmul.f32 %v1983, 0.6931472
          %v1985 = vadd.f32 %v1984, %v1976
          %v1986 = vld [vmem:[%s21] sm:$0xff]
          %v1987 = vsub.f32 %v1985, %v1973
          %v1988 = vmul.f32 %v1986, %v1987
          %v1989 = vsel %vm1958, %v1988, 0.0
          %1990 = vadd.xlane.f32.xlu0 %v1989
          %v1991 = vpop.xlane.xlu0 %1990
          %vm1992 = vcmask 7168
          %v1993 = vsel %vm1992, %v1991, 0.0
          %1994 = vadd.xlane.f32.xlu0 %v1993
          %v1995 = vpop.xlane.xlu0 %1994
          %v1996 = vrot.slane %v1995, 4
          %v1997 = vadd.f32 %v1995, %v1996
          %v1998 = vrot.slane %v1997, 2
          %v1999 = vadd.f32 %v1997, %v1998
          %v2000 = vrot.slane %v1999, 1
          %v2001 = vadd.f32 %v1999, %v2000
          %s2002 = vtos %v2001
          %v2003 = vstv %s2002
          %v2004 = vrcp.pop 8.0
          %v2005 = vmul.f32 %v2003, %v2004
          %v2006 = vmul.f32 %v1565, %v1565
          %v2007 = vmul.f32 %v1568, %v1568
          %2008 = vadd.xlane.f32.xlu0 %v2006
          %v2009 = vpop.xlane.xlu0 %2008
          %2010 = vadd.xlane.f32.xlu0 %v2007
          %v2011 = vpop.xlane.xlu0 %2010
          %v2012 = vrsqrt.pop %v2009
          %v2013 = vmul.f32 %v2009, %v2012
          %vm2014 = vcmp.eq.f32.partialorder %v2009, inf
          %v2015 = vsel %vm2014, %v2009, %v2013
          %vm2016 = vcmp.eq.f32.partialorder %v2009, 0.0
          %v2017 = vand.u32 %v2009, 2147483648
          %v2018 = vsel %vm2016, %v2017, %v2015
          %v2019 = vrsqrt.pop %v2011
          %v2020 = vmul.f32 %v2011, %v2019
          %vm2021 = vcmp.eq.f32.partialorder %v2011, inf
          %v2022 = vsel %vm2021, %v2011, %v2020
          %vm2023 = vcmp.eq.f32.partialorder %v2011, 0.0
          %v2024 = vand.u32 %v2011, 2147483648
          %v2025 = vsel %vm2023, %v2024, %v2022
          %v2026 = vmax.f32 %v2018, 1e-12
          %v2027 = vmax.f32 %v2025, 1e-12
          %v2028 = vrcp.pop %v2026
          %v2029 = vmul.f32 %v1565, %v2028
          %v2030 = vrcp.pop %v2027
          %v2031 = vmul.f32 %v1568, %v2030
          %v2032 = vmul.f32 %v1573, %v1573
          %v2033 = vmul.f32 %v1576, %v1576
          %2034 = vadd.xlane.f32.xlu0 %v2032
          %v2035 = vpop.xlane.xlu0 %2034
          %2036 = vadd.xlane.f32.xlu0 %v2033
          %v2037 = vpop.xlane.xlu0 %2036
          %v2038 = vrsqrt.pop %v2035
          %v2039 = vmul.f32 %v2035, %v2038
          %vm2040 = vcmp.eq.f32.partialorder %v2035, inf
          %v2041 = vsel %vm2040, %v2035, %v2039
          %vm2042 = vcmp.eq.f32.partialorder %v2035, 0.0
          %v2043 = vand.u32 %v2035, 2147483648
          %v2044 = vsel %vm2042, %v2043, %v2041
          %v2045 = vrsqrt.pop %v2037
          %v2046 = vmul.f32 %v2037, %v2045
          %vm2047 = vcmp.eq.f32.partialorder %v2037, inf
          %v2048 = vsel %vm2047, %v2037, %v2046
          %vm2049 = vcmp.eq.f32.partialorder %v2037, 0.0
          %v2050 = vand.u32 %v2037, 2147483648
          %v2051 = vsel %vm2049, %v2050, %v2048
          %v2052 = vmax.f32 %v2044, 1e-12
          %v2053 = vmax.f32 %v2051, 1e-12
          %v2054 = vrcp.pop %v2052
          %v2055 = vmul.f32 %v1573, %v2054
          %v2056 = vrcp.pop %v2053
          %v2057 = vmul.f32 %v1576, %v2056
          %2058 = vmatprep.subr.mxu0 0.0
          %2059 = vmatpush1.xpose.msra.mxu0 0.0
          %2060 = vmatprep.subr.mxu0 0.0
          %2061 = vmatpush1.xpose.msra.mxu0 0.0
          %2062 = vmatprep.subr.mxu0 0.0
          %2063 = vmatpush1.xpose.msra.mxu0 0.0
          %2064 = vmatprep.subr.mxu0 0.0
          %2065 = vmatpush1.xpose.msra.mxu0 0.0
          %2066 = vmatprep.subr.mxu0 0.0
          %2067 = vmatpush1.xpose.msra.mxu0 0.0
          %2068 = vmatprep.subr.mxu0 0.0
          %2069 = vmatpush1.xpose.msra.mxu0 0.0
          %2070 = vmatprep.subr.mxu0 0.0
          %2071 = vmatpush1.xpose.msra.mxu0 0.0
          %2072 = vmatprep.subr.mxu0 0.0
          %2073 = vmatpush1.xpose.msra.mxu0 0.0
          %2074 = vmatprep.subr.mxu0 0.0
          %2075 = vmatpush1.xpose.msra.mxu0 0.0
          %2076 = vmatprep.subr.mxu0 0.0
          %2077 = vmatpush1.xpose.msra.mxu0 0.0
          %2078 = vmatprep.subr.mxu0 0.0
          %2079 = vmatpush1.xpose.msra.mxu0 0.0
          %2080 = vmatprep.subr.mxu0 0.0
          %2081 = vmatpush1.xpose.msra.mxu0 0.0
          %2082 = vmatprep.subr.mxu0 0.0
          %2083 = vmatpush1.xpose.msra.mxu0 0.0
          %2084 = vmatprep.subr.mxu0 0.0
          %2085 = vmatpush1.xpose.msra.mxu0 0.0
          %2086 = vmatprep.subr.mxu0 0.0
          %2087 = vmatpush1.xpose.msra.mxu0 %v2057
          %2088 = vmatprep.subr.mxu0 0.0
          %2089 = vmatpush1.xpose.msra.mxu0 %v2055
          %2090 = vmatprep.subr.mxu0 0.0
          %2091 = vmatpush2.xpose.msra.mxu0 0.0
          %2092 = vmatprep.subr.mxu0 0.0
          %2093 = vmatpush2.xpose.msra.mxu0 0.0
          %2094 = vmatprep.subr.mxu0 0.0
          %2095 = vmatpush2.xpose.msra.mxu0 0.0
          %2096 = vmatprep.subr.mxu0 0.0
          %2097 = vmatpush2.xpose.msra.mxu0 0.0
          %2098 = vmatprep.subr.mxu0 0.0
          %2099 = vmatpush2.xpose.msra.mxu0 0.0
          %2100 = vmatprep.subr.mxu0 0.0
          %2101 = vmatpush2.xpose.msra.mxu0 0.0
          %2102 = vmatprep.subr.mxu0 0.0
          %2103 = vmatpush2.xpose.msra.mxu0 0.0
          %2104 = vmatprep.subr.mxu0 0.0
          %2105 = vmatpush2.xpose.msra.mxu0 0.0
          %2106 = vmatprep.subr.mxu0 0.0
          %2107 = vmatpush2.xpose.msra.mxu0 0.0
          %2108 = vmatprep.subr.mxu0 0.0
          %2109 = vmatpush2.xpose.msra.mxu0 0.0
          %2110 = vmatprep.subr.mxu0 0.0
          %2111 = vmatpush2.xpose.msra.mxu0 0.0
          %2112 = vmatprep.subr.mxu0 0.0
          %2113 = vmatpush2.xpose.msra.mxu0 0.0
          %2114 = vmatprep.subr.mxu0 0.0
          %2115 = vmatpush2.xpose.msra.mxu0 0.0
          %2116 = vmatprep.subr.mxu0 0.0
          %2117 = vmatpush2.xpose.msra.mxu0 0.0
          %2118 = vmatprep.subr.mxu0 0.0
          %2119 = vmatpush2.xpose.msra.mxu0 0.0
          %2120 = vmatprep.subr.mxu0 0.0
          %2121 = vmatpush2.xpose.msra.mxu0 0.0
          %2122 = vmatprep.mubr.f32.mxu0 0.0
          %2123 = vmatmul.mubr.f32.gmra.mxu0 %v2029
          %v2124 = vpop.f32.mrf.mxu0
          %v2125 = vadd.f32 0.0, %v2124
          %v2126 = vpop.f32.mrf.mxu0
          %2127 = vmatprep.mubr.f32.mxu0 0.0
          %2128 = vmatmul.mubr.f32.gmra.mxu0 %v2031
          %v2129 = vpop.f32.mrf.mxu0
          %v2130 = vadd.f32 0.0, %v2129
          %v2131 = vpop.f32.mrf.mxu0
          %2132 = vdwg.mxu0
          %v2133 = vmul.f32 %v2125, 2.0
          %v2134 = vmul.f32 %v2130, 2.0
          %v2135 = vmul.f32 %v2133, 1.442695
          %v2136 = vpow.pop %v2135
          %v2137 = vmul.f32 %v2134, 1.442695
          %v2138 = vpow.pop %v2137
          %v2139 = vsel %vm978, %v2136, 0.0
          %2140 = vadd.xlane.f32.xlu0 %v2139
          %v2141 = vpop.xlane.xlu0 %2140
          %v2142 = vsel %vm978, %v2138, 0.0
          %2143 = vadd.xlane.f32.xlu0 %v2142
          %v2144 = vpop.xlane.xlu0 %2143
          %v2145 = vmul.f32 %v2029, %v2055
          %v2146 = vmul.f32 %v2031, %v2057
          %2147 = vadd.xlane.f32.xlu0 %v2145
          %v2148 = vpop.xlane.xlu0 %2147
          %2149 = vadd.xlane.f32.xlu0 %v2146
          %v2150 = vpop.xlane.xlu0 %2149
          %v2151 = vmul.f32 %v2148, 2.0
          %v2152 = vmul.f32 %v2150, 2.0
          %v2153 = vmul.f32 %v2151, 1.442695
          %v2154 = vpow.pop %v2153
          %v2155 = vmul.f32 %v2152, 1.442695
          %v2156 = vpow.pop %v2155
          %v2157 = vrcp.pop %v2141
          %v2158 = vmul.f32 %v2154, %v2157
          %v2159 = vrcp.pop %v2144
          %v2160 = vmul.f32 %v2156, %v2159
          %v2161 = vadd.f32 %v2158, 1e-08
          %v2162 = vadd.f32 %v2160, 1e-08
          %v2163 = vlog2.pop %v2161
          %v2164 = vmul.f32 %v2163, 0.6931472
          %v2165 = vlog2.pop %v2162
          %v2166 = vmul.f32 %v2165, 0.6931472
          %v2167 = vsub.f32 0.0, %v2164
          %v2168 = vsub.f32 0.0, %v2166
          %v2169 = vsel %vm1992, %v2167, 0.0
          %v2170 = vsel %vm1992, %v2168, 0.0
          %v2171 = vadd.f32 %v2169, %v2170
          %2172 = vadd.xlane.f32.xlu0 %v2171
          %v2173 = vpop.xlane.xlu0 %2172
          %v2174 = vrot.slane %v2173, 4
          %v2175 = vadd.f32 %v2173, %v2174
          %v2176 = vrot.slane %v2175, 2
          %v2177 = vadd.f32 %v2175, %v2176
          %v2178 = vrot.slane %v2177, 1
          %v2179 = vadd.f32 %v2177, %v2178
          %s2180 = vtos %v2179
          %v2181 = vstv %s2180
          %v2182 = vrcp.pop 16.0
          %v2183 = vmul.f32 %v2181, %v2182
          %v2184 = vmul.f32 %v1880, %v1880
          %2185 = vadd.xlane.f32.xlu0 %v2184
          %v2186 = vpop.xlane.xlu0 %2185
          %v2187 = vrsqrt.pop %v2186
          %v2188 = vmul.f32 %v2186, %v2187
          %vm2189 = vcmp.eq.f32.partialorder %v2186, inf
          %v2190 = vsel %vm2189, %v2186, %v2188
          %vm2191 = vcmp.eq.f32.partialorder %v2186, 0.0
          %v2192 = vand.u32 %v2186, 2147483648
          %v2193 = vsel %vm2191, %v2192, %v2190
          %v2194 = vmax.f32 %v2193, 1e-12
          %v2195 = vrcp.pop %v2194
          %v2196 = vmul.f32 %v1880, %v2195
          %v2197 = vmul.f32 %v1883, %v1883
          %2198 = vadd.xlane.f32.xlu0 %v2197
          %v2199 = vpop.xlane.xlu0 %2198
          %v2200 = vrsqrt.pop %v2199
          %v2201 = vmul.f32 %v2199, %v2200
          %vm2202 = vcmp.eq.f32.partialorder %v2199, inf
          %v2203 = vsel %vm2202, %v2199, %v2201
          %vm2204 = vcmp.eq.f32.partialorder %v2199, 0.0
          %v2205 = vand.u32 %v2199, 2147483648
          %v2206 = vsel %vm2204, %v2205, %v2203
          %v2207 = vmax.f32 %v2206, 1e-12
          %v2208 = vrcp.pop %v2207
          %v2209 = vmul.f32 %v1883, %v2208
          %2210 = vmatprep.subr.mxu0 0.0
          %2211 = vmatpush1.xpose.msra.mxu0 0.0
          %2212 = vmatprep.subr.mxu0 0.0
          %2213 = vmatpush1.xpose.msra.mxu0 0.0
          %2214 = vmatprep.subr.mxu0 0.0
          %2215 = vmatpush1.xpose.msra.mxu0 0.0
          %2216 = vmatprep.subr.mxu0 0.0
          %2217 = vmatpush1.xpose.msra.mxu0 0.0
          %2218 = vmatprep.subr.mxu0 0.0
          %2219 = vmatpush1.xpose.msra.mxu0 0.0
          %2220 = vmatprep.subr.mxu0 0.0
          %2221 = vmatpush1.xpose.msra.mxu0 0.0
          %2222 = vmatprep.subr.mxu0 0.0
          %2223 = vmatpush1.xpose.msra.mxu0 0.0
          %2224 = vmatprep.subr.mxu0 0.0
          %2225 = vmatpush1.xpose.msra.mxu0 0.0
          %2226 = vmatprep.subr.mxu0 0.0
          %2227 = vmatpush1.xpose.msra.mxu0 0.0
          %2228 = vmatprep.subr.mxu0 0.0
          %2229 = vmatpush1.xpose.msra.mxu0 0.0
          %2230 = vmatprep.subr.mxu0 0.0
          %2231 = vmatpush1.xpose.msra.mxu0 0.0
          %2232 = vmatprep.subr.mxu0 0.0
          %2233 = vmatpush1.xpose.msra.mxu0 0.0
          %2234 = vmatprep.subr.mxu0 0.0
          %2235 = vmatpush1.xpose.msra.mxu0 0.0
          %2236 = vmatprep.subr.mxu0 0.0
          %2237 = vmatpush1.xpose.msra.mxu0 0.0
          %2238 = vmatprep.subr.mxu0 0.0
          %2239 = vmatpush1.xpose.msra.mxu0 0.0
          %2240 = vmatprep.subr.mxu0 0.0
          %2241 = vmatpush1.xpose.msra.mxu0 %v2209
          %2242 = vmatprep.subr.mxu0 0.0
          %2243 = vmatpush2.xpose.msra.mxu0 0.0
          %2244 = vmatprep.subr.mxu0 0.0
          %2245 = vmatpush2.xpose.msra.mxu0 0.0
          %2246 = vmatprep.subr.mxu0 0.0
          %2247 = vmatpush2.xpose.msra.mxu0 0.0
          %2248 = vmatprep.subr.mxu0 0.0
          %2249 = vmatpush2.xpose.msra.mxu0 0.0
          %2250 = vmatprep.subr.mxu0 0.0
          %2251 = vmatpush2.xpose.msra.mxu0 0.0
          %2252 = vmatprep.subr.mxu0 0.0
          %2253 = vmatpush2.xpose.msra.mxu0 0.0
          %2254 = vmatprep.subr.mxu0 0.0
          %2255 = vmatpush2.xpose.msra.mxu0 0.0
          %2256 = vmatprep.subr.mxu0 0.0
          %2257 = vmatpush2.xpose.msra.mxu0 0.0
          %2258 = vmatprep.subr.mxu0 0.0
          %2259 = vmatpush2.xpose.msra.mxu0 0.0
          %2260 = vmatprep.subr.mxu0 0.0
          %2261 = vmatpush2.xpose.msra.mxu0 0.0
          %2262 = vmatprep.subr.mxu0 0.0
          %2263 = vmatpush2.xpose.msra.mxu0 0.0
          %2264 = vmatprep.subr.mxu0 0.0
          %2265 = vmatpush2.xpose.msra.mxu0 0.0
          %2266 = vmatprep.subr.mxu0 0.0
          %2267 = vmatpush2.xpose.msra.mxu0 0.0
          %2268 = vmatprep.subr.mxu0 0.0
          %2269 = vmatpush2.xpose.msra.mxu0 0.0
          %2270 = vmatprep.subr.mxu0 0.0
          %2271 = vmatpush2.xpose.msra.mxu0 0.0
          %2272 = vmatprep.subr.mxu0 0.0
          %2273 = vmatpush2.xpose.msra.mxu0 0.0
          %2274 = vmatprep.mubr.f32.mxu0 0.0
          %2275 = vmatmul.mubr.f32.gmra.mxu0 %v2196
          %v2276 = vpop.f32.mrf.mxu0
          %v2277 = vadd.f32 0.0, %v2276
          %v2278 = vpop.f32.mrf.mxu0
          %2279 = vdwg.mxu0
          %v2280 = vmul.f32 %v2277, 2.0
          %v2281 = vmul.f32 %v2280, 1.442695
          %v2282 = vpow.pop %v2281
          %v2283 = vsel %vm1958, %v2282, 0.0
          %2284 = vadd.xlane.f32.xlu0 %v2283
          %v2285 = vpop.xlane.xlu0 %2284
          %v2286 = vmul.f32 %v2196, %v2209
          %2287 = vadd.xlane.f32.xlu0 %v2286
          %v2288 = vpop.xlane.xlu0 %2287
          %v2289 = vmul.f32 %v2288, 2.0
          %v2290 = vmul.f32 %v2289, 1.442695
          %v2291 = vpow.pop %v2290
          %v2292 = vrcp.pop %v2285
          %v2293 = vmul.f32 %v2291, %v2292
          %v2294 = vadd.f32 %v2293, 1e-08
          %v2295 = vlog2.pop %v2294
          %v2296 = vmul.f32 %v2295, 0.6931472
          %v2297 = vsub.f32 0.0, %v2296
          %v2298 = vsel %vm1992, %v2297, 0.0
          %2299 = vadd.xlane.f32.xlu0 %v2298
          %v2300 = vpop.xlane.xlu0 %2299
          %v2301 = vrot.slane %v2300, 4
          %v2302 = vadd.f32 %v2300, %v2301
          %v2303 = vrot.slane %v2302, 2
          %v2304 = vadd.f32 %v2302, %v2303
          %v2305 = vrot.slane %v2304, 1
          %v2306 = vadd.f32 %v2304, %v2305
          %s2307 = vtos %v2306
          %v2308 = vstv %s2307
          %v2309 = vmul.f32 %v2308, %v2004
          %v2310 = vmul.f32 %v2183, 0.6
          %v2311 = vadd.f32 %v2005, %v2310
          %v2312 = vmul.f32 %v2309, 0.4
          %v2313 = vadd.f32 %v2311, %v2312
          %v2314 = vadd.f32 %v2313, 0.0
          %2315 = vst [vmem:[#allocation27] sm:$0x1] %v2314
        $region140: #{tpu_custom_call.1} parent=99 // pred_fallthru
          _
        // Predicated region
        $region141: #{tpu_custom_call.1} parent=99 // pred_check
          %p2316 = pneg %p496
        $region142: #{tpu_custom_call.1} parent=99 // pred_check_branch
          %2318 = sbr.rel (%p2316) target = $region144
        $region143: #{tpu_custom_call.1} parent=99 // pred_region
          %s2320 = ssub.s32 128, 128
          %2321 = vsyncadd [#allocation11], %s2320
          %s2323 = sshll.u32 [#allocation23], 4
          %s2324 = int_to_ptr.vmem [resolvable:$true] %s2323
          %2326 = dma.vmem_to_hbm [thread:$0]  %s2324, 128, %s22, [#allocation11]
        $region144: #{tpu_custom_call.1} parent=99 // pred_fallthru
          _
        // Predicated region
        $region145: #{tpu_custom_call.1} parent=99 // pred_check
          %p2327 = pneg %p517
        $region146: #{tpu_custom_call.1} parent=99 // pred_check_branch
          %2329 = sbr.rel (%p2327) target = $region148
        $region147: #{tpu_custom_call.1} parent=99 // pred_region
          %s2331 = ssub.s32 128, 128
          %2332 = vsyncadd [#allocation25], %s2331
          %s2334 = sshll.u32 [#allocation24], 4
          %s2335 = int_to_ptr.vmem [resolvable:$true] %s2334
          %2337 = dma.vmem_to_hbm [thread:$0]  %s2335, 128, %s23, [#allocation25]
        $region148: #{tpu_custom_call.1} parent=99 // pred_fallthru
          _
        // Predicated region
        $region149: #{tpu_custom_call.1} parent=99 // pred_check
          %p2338 = pneg %p538
        $region150: #{tpu_custom_call.1} parent=99 // pred_check_branch
          %2340 = sbr.rel (%p2338) target = $region152
        $region151: #{tpu_custom_call.1} parent=99 // pred_region
          %s2342 = ssub.s32 128, 128
          %2343 = vsyncadd [#allocation25], %s2342
          %s2345 = sshll.u32 [#allocation26], 4
          %s2346 = int_to_ptr.vmem [resolvable:$true] %s2345
          %2348 = dma.vmem_to_hbm [thread:$0]  %s2346, 128, %s24, [#allocation25]
        $region152: #{tpu_custom_call.1} parent=99 // pred_fallthru
          _
        // Predicated region
        $region153: #{tpu_custom_call.1} parent=99 // pred_check
          %p2349 = pneg %p559
        $region154: #{tpu_custom_call.1} parent=99 // pred_check_branch
          %2351 = sbr.rel (%p2349) target = $region156
        $region155: #{tpu_custom_call.1} parent=99 // pred_region
          %s2353 = ssub.s32 16, 16
          %2354 = vsyncadd [#allocation28], %s2353
          %s2356 = sshll.u32 [#allocation27], 4
          %s2357 = int_to_ptr.vmem [resolvable:$true] %s2356
          %2359 = dma.vmem_to_hbm [thread:$0]  %s2357, 16, %s25, [#allocation28]
        $region156: #{tpu_custom_call.1} parent=99 // pred_fallthru
          _
        // Predicated region
        $region157: #{tpu_custom_call.1} parent=99 // pred_check
          %p2360 = pneg %p496
        $region158: #{tpu_custom_call.1} parent=99 // pred_check_branch
          %2362 = sbr.rel (%p2360) target = $region160
        $region159: #{tpu_custom_call.1} parent=99 // pred_region
          %2363 = dma.done [#allocation11], 128
        $region160: #{tpu_custom_call.1} parent=99 // pred_fallthru
          _
        // Predicated region
        $region161: #{tpu_custom_call.1} parent=99 // pred_check
          %p2364 = pneg %p517
        $region162: #{tpu_custom_call.1} parent=99 // pred_check_branch
          %2366 = sbr.rel (%p2364) target = $region164
        $region163: #{tpu_custom_call.1} parent=99 // pred_region
          %2367 = dma.done [#allocation25], 128
        $region164: #{tpu_custom_call.1} parent=99 // pred_fallthru
          _
        // Predicated region
        $region165: #{tpu_custom_call.1} parent=99 // pred_check
          %p2368 = pneg %p538
        $region166: #{tpu_custom_call.1} parent=99 // pred_check_branch
          %2370 = sbr.rel (%p2368) target = $region168
        $region167: #{tpu_custom_call.1} parent=99 // pred_region
          %2371 = dma.done [#allocation25], 128
        $region168: #{tpu_custom_call.1} parent=99 // pred_fallthru
          _
        // Predicated region
        $region169: #{tpu_custom_call.1} parent=99 // pred_check
          %p2372 = pneg %p559
        $region170: #{tpu_custom_call.1} parent=99 // pred_check_branch
          %2374 = sbr.rel (%p2372) target = $region172
        $region171: #{tpu_custom_call.1} parent=99 // pred_region
          %2375 = dma.done [#allocation28], 16
        $region172: #{tpu_custom_call.1} parent=99 // pred_fallthru
          _
      $region100: #{tpu_custom_call.1} parent=5 // pred_fallthru
        _
      %p2376 = scmp.le.s32.totalorder 2, %s48
      // Predicated region
      $region173: #{tpu_custom_call.1} parent=5 // pred_check
        %p2377 = pneg %p2376
      $region174: #{tpu_custom_call.1} parent=5 // pred_check_branch
        %2379 = sbr.rel (%p2377) target = $region176
      $region175: #{tpu_custom_call.1} parent=5 // pred_region
        %s2380 = ssub.s32 %s48, 2
      $region176: #{tpu_custom_call.1} parent=5 // pred_fallthru
        _
    $region6: #{tpu_custom_call.1} parent=1 // loop_footer
      %s52 = sadd.s32 1, %s48
    $region7: #{tpu_custom_call.1} parent=1 // loop_footer_branch
      %47 = sbr.rel target = $region3
    $region8: #{tpu_custom_call.1} parent=1 // loop_exit
      _
    %2381 = vsyncpa [#allocation10], 1
    %s2382 = scalar_lea.sflag [#allocation10], 1
    %2383 = vsyncpa %s2382, 1
    %2384 = vsyncpa [#allocation13], 1
    %2385 = vsyncpa [#allocation16], 1
    %2386 = vsyncpa [#allocation19], 1
    %2387 = vsyncpa [#allocation22], 1
    %2388 = vsyncpa [#allocation11], 1
    %s2389 = scalar_lea.sflag [#allocation11], 1
    %2390 = vsyncpa %s2389, 1
    %2391 = vsyncpa [#allocation25], 1
    %2392 = vsyncpa [#allocation28], 1

</llo_original>
